<compile_context>
chip_gen: v7x
topology: tpu7x:2x2x1
jax: 0.10.0
libtpu: 0.0.40
codegen_flags: <defaults>
</compile_context>

<pallas_src>
from functools import partial

import numpy as np

import jax
import jax.numpy as jnp
from jax.experimental import pallas as pl
from jax.experimental.pallas import tpu as pltpu


C = 12            # unified channel count (see TODO above); divisible by groups=3
H0, W0 = 26, 40   # input spatial size from the spec
_LANE = 128


# ----------------------------------------------------------------------------
# Host-side (one-time) constant construction.
# ----------------------------------------------------------------------------
def _build_selection(h, w, k, s, p, d):
    """0/1 tap-selection matrices: S[kk, y*w+x, oy*ow+ox] = 1 iff input position
    (y, x) feeds output (oy, ox) through kernel tap kk (all-zero cols = padding)."""
    kh, kw = k
    sh, sw = s
    ph, pw = p
    dh, dw = d
    oh = (h + 2 * ph - dh * (kh - 1) - 1) // sh + 1
    ow = (w + 2 * pw - dw * (kw - 1) - 1) // sw + 1
    sel = np.zeros((kh * kw, h * w, oh * ow), np.float32)
    for i in range(kh):
        for j in range(kw):
            kk = i * kw + j
            for oy in range(oh):
                y = oy * sh + i * dh - ph
                if not 0 <= y < h:
                    continue
                for ox in range(ow):
                    x = ox * sw + j * dw - pw
                    if not 0 <= x < w:
                        continue
                    sel[kk, y * w + x, oy * ow + ox] = 1.0
    return sel, oh, ow


def _weight_taps(w):
    """(Cout, Cin, KH, KW) -> (KH*KW, Cout, Cin), tap order kk = i*KW + j."""
    w = np.asarray(w, np.float32)
    co, ci, kh, kw = w.shape
    return np.transpose(w.reshape(co, ci, kh * kw), (2, 0, 1))


def build_fused_operands(params, block_batch):
    """Build per-stage (merged selection, block-diag weights, pre-broadcast bias,
    tanh flag) constants for a given batch-block size B_blk."""
    (w1, b1), (w2, b2), (w3, b3), (w4, b4), (w5, b5), (w6, b6) = [
        (np.asarray(w, np.float32), np.asarray(b, np.float32)) for (w, b) in params]
    B = block_batch
    eye_b = np.eye(B, dtype=np.float32)
    stages = []

    def add_stage(sel_taps, w_taps, bias_chw, apply_tanh):
        k_taps, hw_in, hw_out = sel_taps.shape
        # Start-align each tap's column block to a 128-lane boundary so the
        # in-kernel slices of the merged gather are lane-aligned.
        stride = hw_out if k_taps == 1 else -(-hw_out // _LANE) * _LANE
        s_cat = np.zeros((hw_in, k_taps * stride), np.float32)
        for kk in range(k_taps):
            s_cat[:, kk * stride:kk * stride + hw_out] = sel_taps[kk]
        # Block-diagonal I_B ⊗ W_kk: one matmul with contraction depth B*C per
        # tap instead of B near-empty 12-deep matmuls.
        w_bd = np.stack([np.kron(eye_b, w_taps[kk]) for kk in range(k_taps)])
        bias_full = np.tile(np.asarray(bias_chw, np.float32), (B, 1))  # (B*C, hw_out)
        stages.append(dict(
            s=jnp.asarray(s_cat, jnp.bfloat16),        # 0/1 entries -> exact in bf16
            w=jnp.asarray(w_bd, jnp.bfloat16),
            b=jnp.asarray(bias_full, jnp.float32),
            taps=int(k_taps), hw_out=int(hw_out), stride=int(stride),
            tanh=bool(apply_tanh)))

    # ---- stage A: conv1 (1x1, s(2,2), p(3,3), d(4,4)) + tanh ----
    sel1, h, w = _build_selection(H0, W0, (1, 1), (2, 2), (3, 3), (4, 4))
    add_stage(sel1, _weight_taps(w1), np.tile(b1.reshape(C, 1), (1, h * w)), True)

    # ---- stage B: conv2 (3x3, s(3,3)) + tanh ----
    sel2, h, w = _build_selection(h, w, (3, 3), (3, 3), (0, 0), (1, 1))
    add_stage(sel2, _weight_taps(w2), np.tile(b2.reshape(C, 1), (1, h * w)), True)

    # ---- stage C: conv3 (2x2, s(1,2)) ∘ conv4 (1x1) ∘ conv5 (1x1, grouped) + tanh
    #      (all linear, no activation in between -> fold on the host) ----
    sel3, h, w = _build_selection(h, w, (2, 2), (1, 2), (0, 0), (1, 1))
    sel5, h, w = _build_selection(h, w, (1, 1), (2, 2), (3, 3), (4, 4))
    s5 = sel5[0]                                       # (12, 25) single 1x1 tap
    w3t = _weight_taps(w3)                             # (4, C, C)
    w4m = w4[:, :, 0, 0]                               # (C, C)
    w34 = np.einsum('oc,kci->koi', w4m, w3t)           # conv4 ∘ conv3 per tap
    b34 = w4m @ b3 + b4                                # (C,)
    cg = C // 3                                        # conv5 groups=3 -> block-diag
    w5bd = np.zeros((C, C), np.float32)
    for g in range(3):
        w5bd[g * cg:(g + 1) * cg, g * cg:(g + 1) * cg] = w5[g * cg:(g + 1) * cg, :, 0, 0]
    w345 = np.einsum('oc,kci->koi', w5bd, w34)         # conv5 ∘ conv4 ∘ conv3 per tap
    sel35 = np.einsum('kio,oj->kij', sel3, s5)         # S3_kk @ S5 per tap
    nonpad = s5.sum(axis=0, keepdims=True)             # (1, 25); 0 on conv5 pad cols
    bias_c = b5.reshape(C, 1) + (w5bd @ b34).reshape(C, 1) * nonpad   # (C, 25)
    add_stage(sel35, w345, bias_c, True)

    # ---- stage D: conv6 (2x2, s(2,2), p(3,3)) ----
    sel6, h, w = _build_selection(h, w, (2, 2), (2, 2), (3, 3), (1, 1))
    add_stage(sel6, _weight_taps(w6), np.tile(b6.reshape(C, 1), (1, h * w)), False)

    return stages, (h, w)


# ----------------------------------------------------------------------------
# The fused Pallas kernel: whole forward pass for B_blk samples per grid step.
# ----------------------------------------------------------------------------
def _fused_forward_kernel(*refs, meta):
    x_ref, o_ref = refs[0], refs[-1]
    stage_refs = refs[1:-1]
    act_bf = x_ref[...].astype(jnp.bfloat16)            # (B_blk*C, HW_in)
    n_stages = len(meta)
    acc = None
    for i, (taps, hw_out, stride, apply_tanh) in enumerate(meta):
        s_ref, w_ref, b_ref = stage_refs[3 * i:3 * i + 3]
        # One merged gather matmul per stage; selection columns have <= 1
        # nonzero, so this bf16 matmul is exact.
        g = jnp.dot(act_bf, s_ref[...],
                    preferred_element_type=jnp.float32).astype(jnp.bfloat16)
        acc = b_ref[...]                                 # bias-initialised f32 acc
        for kk in range(taps):                           # static unroll (<= 9 taps)
            rhs = g if taps == 1 else g[:, kk * stride:kk * stride + hw_out]
            acc = acc + jnp.dot(w_ref[kk], rhs, preferred_element_type=jnp.float32)
        if apply_tanh:
            acc = jnp.tanh(acc)
        if i + 1 < n_stages:
            act_bf = acc.astype(jnp.bfloat16)
    o_ref[...] = acc                                     # (B_blk*C, 25) f32


def _choose_block_batch(n, requested):
    """B_blk*C ~ 240 rows (one ~256-row MXU pass on v6e/v7x; pass ~10 for v5e),
    keep >= 2 grid steps when batch >= 2 (feeds both v7x TensorCores), and keep
    B_blk even so the block's sublane extent 12*B_blk is a multiple of 8."""
    bb = 20 if requested is None else int(requested)
    bb = max(2, min(bb, n))
    if n > 2:
        bb = min(bb, -(-n // 2))
    if bb % 2:
        bb += 1
    return bb


def make_model_tanh(params, block_batch=None):
    """Returns a jitted forward(x: (N, C, 26, 40)) -> (N, C, 5, 5)."""
    operand_cache = {}

    def _operands(bb):
        if bb not in operand_cache:
            operand_cache[bb] = build_fused_operands(params, bb)
        return operand_cache[bb]

    @jax.jit
    def forward(x):
        n = x.shape[0]
        assert x.shape[1:] == (C, H0, W0), x.shape
        bb = _choose_block_batch(n, block_batch)
        stages, (oh, ow) = _operands(bb)
        m_out = oh * ow
        bc = bb * C

        n_pad = -(-n // bb) * bb
        x2 = x.reshape(n, C, H0 * W0)
        if n_pad != n:
            x2 = jnp.concatenate(
                [x2, jnp.zeros((n_pad - n, C, H0 * W0), x2.dtype)], axis=0)
        x2 = x2.reshape(n_pad * C, H0 * W0)     # batch*channel rows, spatial lanes

        arrays = []
        in_specs = [pl.BlockSpec((bc, H0 * W0), lambda b: (b, 0))]
        for st in stages:
            for a in (st['s'], st['w'], st['b']):
                arrays.append(a)
                in_specs.append(                 # whole-array, grid-resident constants
                    pl.BlockSpec(a.shape, lambda b, _nd=a.ndim: (0,) * _nd))
        meta = tuple((st['taps'], st['hw_out'], st['stride'], st['tanh'])
                     for st in stages)

        out = pl.pallas_call(
            partial(_fused_forward_kernel, meta=meta),
            out_shape=jax.ShapeDtypeStruct((n_pad * C, m_out), jnp.float32),
            grid=(n_pad // bb,),
            in_specs=in_specs,
            out_specs=pl.BlockSpec((bc, m_out), lambda b: (b, 0)),
            compiler_params=pltpu.CompilerParams(
                dimension_semantics=("parallel",),   # shards batch over v7x's 2 TCs
                vmem_limit_bytes=32 * 1024 * 1024),
        )(x2, *arrays)
        return out.reshape(n_pad, C, oh, ow)[:n]

    return forward


# ----------------------------------------------------------------------------
# Parameters + plain-JAX reference (original, unfused 6-conv structure).
# ----------------------------------------------------------------------------
def init_conv_params(key, cin, cout, kh, kw, groups=1):
    cin_g = cin // groups
    k1, k2 = jax.random.split(key)
    fan_in = cin_g * kh * kw
    bound = 1.0 / float(fan_in) ** 0.5
    w = jax.random.uniform(k1, (cout, cin_g, kh, kw), jnp.float32, -bound, bound)
    bvec = jax.random.uniform(k2, (cout,), jnp.float32, -bound, bound)
    return w, bvec


def init_model_params(key):
    keys = jax.random.split(key, 6)
    return [
        init_conv_params(keys[0], C, C, 1, 1),             # conv1
        init_conv_params(keys[1], C, C, 3, 3),             # conv2 ((3,) -> (3,3))
        init_conv_params(keys[2], C, C, 2, 2),             # conv3
        init_conv_params(keys[3], C, C, 1, 1),             # conv4
        init_conv_params(keys[4], C, C, 1, 1, groups=3),   # conv5 (groups=3)
        init_conv_params(keys[5], C, C, 2, 2),             # conv6
    ]


def reference_forward(x, params):
    """f32 XLA-conv reference of the original module (no folds, per-group conv5)."""
    (w1, b1), (w2, b2), (w3, b3), (w4, b4), (w5, b5), (w6, b6) = params

    def conv(x, w, b, stride, padding, dilation, groups):
        y = jax.lax.conv_general_dilated(
            x, w, window_strides=stride,
            padding=[(padding[0], padding[0]), (padding[1], padding[1])],
            rhs_dilation=dilation, feature_group_count=groups,
            dimension_numbers=("NCHW", "OIHW", "NCHW"))
        return y + b.reshape(1, -1, 1, 1)

    x = jnp.tanh(conv(x, w1, b1, (2, 2), (3, 3), (4, 4), 1))
    x = jnp.tanh(conv(x, w2, b2, (3, 3), (0, 0), (1, 1), 1))
    x = conv(x, w3, b3, (1, 2), (0, 0), (1, 1), 1)
    x = conv(x, w4, b4, (1, 1), (0, 0), (1, 1), 1)
    x = jnp.tanh(conv(x, w5, b5, (2, 2), (3, 3), (4, 4), 3))
    x = conv(x, w6, b6, (2, 2), (3, 3), (1, 1), 1)
    return x


if __name__ == "__main__":
    key = jax.random.PRNGKey(0)
    k_x, k_p = jax.random.split(key)

    params = init_model_params(k_p)
    forward = make_model_tanh(params)

    # Main check: batch of 8 -> B_blk=4, grid=2 (batch-blocked, both v7x cores).
    n = 8
    x = jax.random.normal(k_x, (n, C, H0, W0), dtype=jnp.float32)
    out = jax.block_until_ready(forward(x))
    assert out.shape == (n, C, 5, 5), out.shape
    assert bool(jnp.all(jnp.isfinite(out)))

    ref = jax.block_until_ready(reference_forward(x, params))
    max_err = float(jnp.max(jnp.abs(out - ref)))
    assert max_err < 0.15, f"max abs err vs reference: {max_err}"

    # Secondary check: odd batch exercises the zero-pad + slice path (n=3 -> B_blk=2).
    x3 = x[:3]
    out3 = jax.block_until_ready(forward(x3))
    assert out3.shape == (3, C, 5, 5), out3.shape
    max_err3 = float(jnp.max(jnp.abs(out3 - ref[:3])))
    assert max_err3 < 0.15, f"max abs err (padded batch) vs reference: {max_err3}"

    print("KERNEL_OK")
</pallas_src>

<mosaic_0001>
module attributes {stable_mosaic.version = 11 : i64} {
  func.func @_fused_forward_kernel(%arg0: i32, %arg1: memref<48x1040xf32, #tpu.memory_space<vmem>>, %arg2: memref<1040x368xbf16, #tpu.memory_space<vmem>>, %arg3: memref<1x48x48xbf16, #tpu.memory_space<vmem>>, %arg4: memref<48x368xf32, #tpu.memory_space<vmem>>, %arg5: memref<368x1152xbf16, #tpu.memory_space<vmem>>, %arg6: memref<9x48x48xbf16, #tpu.memory_space<vmem>>, %arg7: memref<48x35xf32, #tpu.memory_space<vmem>>, %arg8: memref<35x512xbf16, #tpu.memory_space<vmem>>, %arg9: memref<4x48x48xbf16, #tpu.memory_space<vmem>>, %arg10: memref<48x25xf32, #tpu.memory_space<vmem>>, %arg11: memref<25x512xbf16, #tpu.memory_space<vmem>>, %arg12: memref<4x48x48xbf16, #tpu.memory_space<vmem>>, %arg13: memref<48x25xf32, #tpu.memory_space<vmem>>, %arg14: memref<48x25xf32, #tpu.memory_space<vmem>>) attributes {dimension_semantics = [#tpu.dimension_semantics<parallel>], iteration_bounds = array<i64: 2>, scalar_prefetch = 0 : i64, scratch_operands = 0 : i64, tpu.core_type = #tpu.core_type<tc>, window_params = [{transform_indices = @transform_0, window_bounds = array<i64: 48, 1040>}, {pipeline_mode = #tpu.pipeline_mode<synchronous>, transform_indices = @transform_1, window_bounds = array<i64: 1040, 368>}, {pipeline_mode = #tpu.pipeline_mode<synchronous>, transform_indices = @transform_2, window_bounds = array<i64: 1, 48, 48>}, {pipeline_mode = #tpu.pipeline_mode<synchronous>, transform_indices = @transform_3, window_bounds = array<i64: 48, 368>}, {pipeline_mode = #tpu.pipeline_mode<synchronous>, transform_indices = @transform_4, window_bounds = array<i64: 368, 1152>}, {pipeline_mode = #tpu.pipeline_mode<synchronous>, transform_indices = @transform_5, window_bounds = array<i64: 9, 48, 48>}, {pipeline_mode = #tpu.pipeline_mode<synchronous>, transform_indices = @transform_6, window_bounds = array<i64: 48, 35>}, {pipeline_mode = #tpu.pipeline_mode<synchronous>, transform_indices = @transform_7, window_bounds = array<i64: 35, 512>}, {pipeline_mode = #tpu.pipeline_mode<synchronous>, transform_indices = @transform_8, window_bounds = array<i64: 4, 48, 48>}, {pipeline_mode = #tpu.pipeline_mode<synchronous>, transform_indices = @transform_9, window_bounds = array<i64: 48, 25>}, {pipeline_mode = #tpu.pipeline_mode<synchronous>, transform_indices = @transform_10, window_bounds = array<i64: 25, 512>}, {pipeline_mode = #tpu.pipeline_mode<synchronous>, transform_indices = @transform_11, window_bounds = array<i64: 4, 48, 48>}, {pipeline_mode = #tpu.pipeline_mode<synchronous>, transform_indices = @transform_12, window_bounds = array<i64: 48, 25>}, {transform_indices = @transform_13, window_bounds = array<i64: 48, 25>}]} {
    %c0 = arith.constant 0 : index
    %c0_0 = arith.constant 0 : index
    %0 = vector.load %arg1[%c0, %c0_0] : memref<48x1040xf32, #tpu.memory_space<vmem>>, vector<48x1040xf32>
    %1 = arith.truncf %0 : vector<48x1040xf32> to vector<48x1040xbf16>
    %c0_1 = arith.constant 0 : index
    %c0_2 = arith.constant 0 : index
    %2 = vector.load %arg2[%c0_1, %c0_2] : memref<1040x368xbf16, #tpu.memory_space<vmem>>, vector<1040x368xbf16>
    %cst = arith.constant dense<0.000000e+00> : vector<48x368xf32>
    %3 = tpu.matmul %1, %2, %cst {dimension_numbers = #tpu.dot_dimension_numbers<[1], [0], [0], [1], [0, 0, 1, 1], [], []>} : vector<48x1040xbf16>, vector<1040x368xbf16>, vector<48x368xf32> -> vector<48x368xf32>
    %4 = arith.truncf %3 : vector<48x368xf32> to vector<48x368xbf16>
    %c0_3 = arith.constant 0 : index
    %c0_4 = arith.constant 0 : index
    %5 = vector.load %arg4[%c0_3, %c0_4] : memref<48x368xf32, #tpu.memory_space<vmem>>, vector<48x368xf32>
    %c0_5 = arith.constant 0 : index
    %c0_6 = arith.constant 0 : index
    %c0_7 = arith.constant 0 : index
    %6 = vector.load %arg3[%c0_5, %c0_6, %c0_7] : memref<1x48x48xbf16, #tpu.memory_space<vmem>>, vector<1x48x48xbf16>
    %7 = vector.shape_cast %6 : vector<1x48x48xbf16> to vector<48x48xbf16>
    %cst_8 = arith.constant dense<0.000000e+00> : vector<48x368xf32>
    %8 = tpu.matmul %7, %4, %cst_8 {dimension_numbers = #tpu.dot_dimension_numbers<[1], [0], [0], [1], [0, 0, 1, 1], [], []>} : vector<48x48xbf16>, vector<48x368xbf16>, vector<48x368xf32> -> vector<48x368xf32>
    %9 = arith.addf %5, %8 : vector<48x368xf32>
    %10 = math.tanh %9 : vector<48x368xf32>
    %11 = arith.truncf %10 : vector<48x368xf32> to vector<48x368xbf16>
    %c0_9 = arith.constant 0 : index
    %c0_10 = arith.constant 0 : index
    %12 = vector.load %arg5[%c0_9, %c0_10] : memref<368x1152xbf16, #tpu.memory_space<vmem>>, vector<368x1152xbf16>
    %cst_11 = arith.constant dense<0.000000e+00> : vector<48x1152xf32>
    %13 = tpu.matmul %11, %12, %cst_11 {dimension_numbers = #tpu.dot_dimension_numbers<[1], [0], [0], [1], [0, 0, 1, 1], [], []>} : vector<48x368xbf16>, vector<368x1152xbf16>, vector<48x1152xf32> -> vector<48x1152xf32>
    %14 = arith.truncf %13 : vector<48x1152xf32> to vector<48x1152xbf16>
    %c0_12 = arith.constant 0 : index
    %c0_13 = arith.constant 0 : index
    %15 = vector.load %arg7[%c0_12, %c0_13] : memref<48x35xf32, #tpu.memory_space<vmem>>, vector<48x35xf32>
    %16 = vector.extract_strided_slice %14 {offsets = [0, 0], sizes = [48, 35], strides = [1, 1]} : vector<48x1152xbf16> to vector<48x35xbf16>
    %c0_14 = arith.constant 0 : index
    %c0_15 = arith.constant 0 : index
    %c0_16 = arith.constant 0 : index
    %17 = vector.load %arg6[%c0_14, %c0_15, %c0_16] : memref<9x48x48xbf16, #tpu.memory_space<vmem>>, vector<1x48x48xbf16>
    %18 = vector.shape_cast %17 : vector<1x48x48xbf16> to vector<48x48xbf16>
    %cst_17 = arith.constant dense<0.000000e+00> : vector<48x35xf32>
    %19 = tpu.matmul %18, %16, %cst_17 {dimension_numbers = #tpu.dot_dimension_numbers<[1], [0], [0], [1], [0, 0, 1, 1], [], []>} : vector<48x48xbf16>, vector<48x35xbf16>, vector<48x35xf32> -> vector<48x35xf32>
    %20 = arith.addf %15, %19 : vector<48x35xf32>
    %21 = vector.extract_strided_slice %14 {offsets = [0, 128], sizes = [48, 35], strides = [1, 1]} : vector<48x1152xbf16> to vector<48x35xbf16>
    %c1 = arith.constant 1 : index
    %c0_18 = arith.constant 0 : index
    %c0_19 = arith.constant 0 : index
    %22 = vector.load %arg6[%c1, %c0_18, %c0_19] : memref<9x48x48xbf16, #tpu.memory_space<vmem>>, vector<1x48x48xbf16>
    %23 = vector.shape_cast %22 : vector<1x48x48xbf16> to vector<48x48xbf16>
    %cst_20 = arith.constant dense<0.000000e+00> : vector<48x35xf32>
    %24 = tpu.matmul %23, %21, %cst_20 {dimension_numbers = #tpu.dot_dimension_numbers<[1], [0], [0], [1], [0, 0, 1, 1], [], []>} : vector<48x48xbf16>, vector<48x35xbf16>, vector<48x35xf32> -> vector<48x35xf32>
    %25 = arith.addf %20, %24 : vector<48x35xf32>
    %26 = vector.extract_strided_slice %14 {offsets = [0, 256], sizes = [48, 35], strides = [1, 1]} : vector<48x1152xbf16> to vector<48x35xbf16>
    %c2 = arith.constant 2 : index
    %c0_21 = arith.constant 0 : index
    %c0_22 = arith.constant 0 : index
    %27 = vector.load %arg6[%c2, %c0_21, %c0_22] : memref<9x48x48xbf16, #tpu.memory_space<vmem>>, vector<1x48x48xbf16>
    %28 = vector.shape_cast %27 : vector<1x48x48xbf16> to vector<48x48xbf16>
    %cst_23 = arith.constant dense<0.000000e+00> : vector<48x35xf32>
    %29 = tpu.matmul %28, %26, %cst_23 {dimension_numbers = #tpu.dot_dimension_numbers<[1], [0], [0], [1], [0, 0, 1, 1], [], []>} : vector<48x48xbf16>, vector<48x35xbf16>, vector<48x35xf32> -> vector<48x35xf32>
    %30 = arith.addf %25, %29 : vector<48x35xf32>
    %31 = vector.extract_strided_slice %14 {offsets = [0, 384], sizes = [48, 35], strides = [1, 1]} : vector<48x1152xbf16> to vector<48x35xbf16>
    %c3 = arith.constant 3 : index
    %c0_24 = arith.constant 0 : index
    %c0_25 = arith.constant 0 : index
    %32 = vector.load %arg6[%c3, %c0_24, %c0_25] : memref<9x48x48xbf16, #tpu.memory_space<vmem>>, vector<1x48x48xbf16>
    %33 = vector.shape_cast %32 : vector<1x48x48xbf16> to vector<48x48xbf16>
    %cst_26 = arith.constant dense<0.000000e+00> : vector<48x35xf32>
    %34 = tpu.matmul %33, %31, %cst_26 {dimension_numbers = #tpu.dot_dimension_numbers<[1], [0], [0], [1], [0, 0, 1, 1], [], []>} : vector<48x48xbf16>, vector<48x35xbf16>, vector<48x35xf32> -> vector<48x35xf32>
    %35 = arith.addf %30, %34 : vector<48x35xf32>
    %36 = vector.extract_strided_slice %14 {offsets = [0, 512], sizes = [48, 35], strides = [1, 1]} : vector<48x1152xbf16> to vector<48x35xbf16>
    %c4 = arith.constant 4 : index
    %c0_27 = arith.constant 0 : index
    %c0_28 = arith.constant 0 : index
    %37 = vector.load %arg6[%c4, %c0_27, %c0_28] : memref<9x48x48xbf16, #tpu.memory_space<vmem>>, vector<1x48x48xbf16>
    %38 = vector.shape_cast %37 : vector<1x48x48xbf16> to vector<48x48xbf16>
    %cst_29 = arith.constant dense<0.000000e+00> : vector<48x35xf32>
    %39 = tpu.matmul %38, %36, %cst_29 {dimension_numbers = #tpu.dot_dimension_numbers<[1], [0], [0], [1], [0, 0, 1, 1], [], []>} : vector<48x48xbf16>, vector<48x35xbf16>, vector<48x35xf32> -> vector<48x35xf32>
    %40 = arith.addf %35, %39 : vector<48x35xf32>
    %41 = vector.extract_strided_slice %14 {offsets = [0, 640], sizes = [48, 35], strides = [1, 1]} : vector<48x1152xbf16> to vector<48x35xbf16>
    %c5 = arith.constant 5 : index
    %c0_30 = arith.constant 0 : index
    %c0_31 = arith.constant 0 : index
    %42 = vector.load %arg6[%c5, %c0_30, %c0_31] : memref<9x48x48xbf16, #tpu.memory_space<vmem>>, vector<1x48x48xbf16>
    %43 = vector.shape_cast %42 : vector<1x48x48xbf16> to vector<48x48xbf16>
    %cst_32 = arith.constant dense<0.000000e+00> : vector<48x35xf32>
    %44 = tpu.matmul %43, %41, %cst_32 {dimension_numbers = #tpu.dot_dimension_numbers<[1], [0], [0], [1], [0, 0, 1, 1], [], []>} : vector<48x48xbf16>, vector<48x35xbf16>, vector<48x35xf32> -> vector<48x35xf32>
    %45 = arith.addf %40, %44 : vector<48x35xf32>
    %46 = vector.extract_strided_slice %14 {offsets = [0, 768], sizes = [48, 35], strides = [1, 1]} : vector<48x1152xbf16> to vector<48x35xbf16>
    %c6 = arith.constant 6 : index
    %c0_33 = arith.constant 0 : index
    %c0_34 = arith.constant 0 : index
    %47 = vector.load %arg6[%c6, %c0_33, %c0_34] : memref<9x48x48xbf16, #tpu.memory_space<vmem>>, vector<1x48x48xbf16>
    %48 = vector.shape_cast %47 : vector<1x48x48xbf16> to vector<48x48xbf16>
    %cst_35 = arith.constant dense<0.000000e+00> : vector<48x35xf32>
    %49 = tpu.matmul %48, %46, %cst_35 {dimension_numbers = #tpu.dot_dimension_numbers<[1], [0], [0], [1], [0, 0, 1, 1], [], []>} : vector<48x48xbf16>, vector<48x35xbf16>, vector<48x35xf32> -> vector<48x35xf32>
    %50 = arith.addf %45, %49 : vector<48x35xf32>
    %51 = vector.extract_strided_slice %14 {offsets = [0, 896], sizes = [48, 35], strides = [1, 1]} : vector<48x1152xbf16> to vector<48x35xbf16>
    %c7 = arith.constant 7 : index
    %c0_36 = arith.constant 0 : index
    %c0_37 = arith.constant 0 : index
    %52 = vector.load %arg6[%c7, %c0_36, %c0_37] : memref<9x48x48xbf16, #tpu.memory_space<vmem>>, vector<1x48x48xbf16>
    %53 = vector.shape_cast %52 : vector<1x48x48xbf16> to vector<48x48xbf16>
    %cst_38 = arith.constant dense<0.000000e+00> : vector<48x35xf32>
    %54 = tpu.matmul %53, %51, %cst_38 {dimension_numbers = #tpu.dot_dimension_numbers<[1], [0], [0], [1], [0, 0, 1, 1], [], []>} : vector<48x48xbf16>, vector<48x35xbf16>, vector<48x35xf32> -> vector<48x35xf32>
    %55 = arith.addf %50, %54 : vector<48x35xf32>
    %56 = vector.extract_strided_slice %14 {offsets = [0, 1024], sizes = [48, 35], strides = [1, 1]} : vector<48x1152xbf16> to vector<48x35xbf16>
    %c8 = arith.constant 8 : index
    %c0_39 = arith.constant 0 : index
    %c0_40 = arith.constant 0 : index
    %57 = vector.load %arg6[%c8, %c0_39, %c0_40] : memref<9x48x48xbf16, #tpu.memory_space<vmem>>, vector<1x48x48xbf16>
    %58 = vector.shape_cast %57 : vector<1x48x48xbf16> to vector<48x48xbf16>
    %cst_41 = arith.constant dense<0.000000e+00> : vector<48x35xf32>
    %59 = tpu.matmul %58, %56, %cst_41 {dimension_numbers = #tpu.dot_dimension_numbers<[1], [0], [0], [1], [0, 0, 1, 1], [], []>} : vector<48x48xbf16>, vector<48x35xbf16>, vector<48x35xf32> -> vector<48x35xf32>
    %60 = arith.addf %55, %59 : vector<48x35xf32>
    %61 = math.tanh %60 : vector<48x35xf32>
    %62 = arith.truncf %61 : vector<48x35xf32> to vector<48x35xbf16>
    %c0_42 = arith.constant 0 : index
    %c0_43 = arith.constant 0 : index
    %63 = vector.load %arg8[%c0_42, %c0_43] : memref<35x512xbf16, #tpu.memory_space<vmem>>, vector<35x512xbf16>
    %cst_44 = arith.constant dense<0.000000e+00> : vector<48x512xf32>
    %64 = tpu.matmul %62, %63, %cst_44 {dimension_numbers = #tpu.dot_dimension_numbers<[1], [0], [0], [1], [0, 0, 1, 1], [], []>} : vector<48x35xbf16>, vector<35x512xbf16>, vector<48x512xf32> -> vector<48x512xf32>
    %65 = arith.truncf %64 : vector<48x512xf32> to vector<48x512xbf16>
    %c0_45 = arith.constant 0 : index
    %c0_46 = arith.constant 0 : index
    %66 = vector.load %arg10[%c0_45, %c0_46] : memref<48x25xf32, #tpu.memory_space<vmem>>, vector<48x25xf32>
    %67 = vector.extract_strided_slice %65 {offsets = [0, 0], sizes = [48, 25], strides = [1, 1]} : vector<48x512xbf16> to vector<48x25xbf16>
    %c0_47 = arith.constant 0 : index
    %c0_48 = arith.constant 0 : index
    %c0_49 = arith.constant 0 : index
    %68 = vector.load %arg9[%c0_47, %c0_48, %c0_49] : memref<4x48x48xbf16, #tpu.memory_space<vmem>>, vector<1x48x48xbf16>
    %69 = vector.shape_cast %68 : vector<1x48x48xbf16> to vector<48x48xbf16>
    %cst_50 = arith.constant dense<0.000000e+00> : vector<48x25xf32>
    %70 = tpu.matmul %69, %67, %cst_50 {dimension_numbers = #tpu.dot_dimension_numbers<[1], [0], [0], [1], [0, 0, 1, 1], [], []>} : vector<48x48xbf16>, vector<48x25xbf16>, vector<48x25xf32> -> vector<48x25xf32>
    %71 = arith.addf %66, %70 : vector<48x25xf32>
    %72 = vector.extract_strided_slice %65 {offsets = [0, 128], sizes = [48, 25], strides = [1, 1]} : vector<48x512xbf16> to vector<48x25xbf16>
    %c1_51 = arith.constant 1 : index
    %c0_52 = arith.constant 0 : index
    %c0_53 = arith.constant 0 : index
    %73 = vector.load %arg9[%c1_51, %c0_52, %c0_53] : memref<4x48x48xbf16, #tpu.memory_space<vmem>>, vector<1x48x48xbf16>
    %74 = vector.shape_cast %73 : vector<1x48x48xbf16> to vector<48x48xbf16>
    %cst_54 = arith.constant dense<0.000000e+00> : vector<48x25xf32>
    %75 = tpu.matmul %74, %72, %cst_54 {dimension_numbers = #tpu.dot_dimension_numbers<[1], [0], [0], [1], [0, 0, 1, 1], [], []>} : vector<48x48xbf16>, vector<48x25xbf16>, vector<48x25xf32> -> vector<48x25xf32>
    %76 = arith.addf %71, %75 : vector<48x25xf32>
    %77 = vector.extract_strided_slice %65 {offsets = [0, 256], sizes = [48, 25], strides = [1, 1]} : vector<48x512xbf16> to vector<48x25xbf16>
    %c2_55 = arith.constant 2 : index
    %c0_56 = arith.constant 0 : index
    %c0_57 = arith.constant 0 : index
    %78 = vector.load %arg9[%c2_55, %c0_56, %c0_57] : memref<4x48x48xbf16, #tpu.memory_space<vmem>>, vector<1x48x48xbf16>
    %79 = vector.shape_cast %78 : vector<1x48x48xbf16> to vector<48x48xbf16>
    %cst_58 = arith.constant dense<0.000000e+00> : vector<48x25xf32>
    %80 = tpu.matmul %79, %77, %cst_58 {dimension_numbers = #tpu.dot_dimension_numbers<[1], [0], [0], [1], [0, 0, 1, 1], [], []>} : vector<48x48xbf16>, vector<48x25xbf16>, vector<48x25xf32> -> vector<48x25xf32>
    %81 = arith.addf %76, %80 : vector<48x25xf32>
    %82 = vector.extract_strided_slice %65 {offsets = [0, 384], sizes = [48, 25], strides = [1, 1]} : vector<48x512xbf16> to vector<48x25xbf16>
    %c3_59 = arith.constant 3 : index
    %c0_60 = arith.constant 0 : index
    %c0_61 = arith.constant 0 : index
    %83 = vector.load %arg9[%c3_59, %c0_60, %c0_61] : memref<4x48x48xbf16, #tpu.memory_space<vmem>>, vector<1x48x48xbf16>
    %84 = vector.shape_cast %83 : vector<1x48x48xbf16> to vector<48x48xbf16>
    %cst_62 = arith.constant dense<0.000000e+00> : vector<48x25xf32>
    %85 = tpu.matmul %84, %82, %cst_62 {dimension_numbers = #tpu.dot_dimension_numbers<[1], [0], [0], [1], [0, 0, 1, 1], [], []>} : vector<48x48xbf16>, vector<48x25xbf16>, vector<48x25xf32> -> vector<48x25xf32>
    %86 = arith.addf %81, %85 : vector<48x25xf32>
    %87 = math.tanh %86 : vector<48x25xf32>
    %88 = arith.truncf %87 : vector<48x25xf32> to vector<48x25xbf16>
    %c0_63 = arith.constant 0 : index
    %c0_64 = arith.constant 0 : index
    %89 = vector.load %arg11[%c0_63, %c0_64] : memref<25x512xbf16, #tpu.memory_space<vmem>>, vector<25x512xbf16>
    %cst_65 = arith.constant dense<0.000000e+00> : vector<48x512xf32>
    %90 = tpu.matmul %88, %89, %cst_65 {dimension_numbers = #tpu.dot_dimension_numbers<[1], [0], [0], [1], [0, 0, 1, 1], [], []>} : vector<48x25xbf16>, vector<25x512xbf16>, vector<48x512xf32> -> vector<48x512xf32>
    %91 = arith.truncf %90 : vector<48x512xf32> to vector<48x512xbf16>
    %c0_66 = arith.constant 0 : index
    %c0_67 = arith.constant 0 : index
    %92 = vector.load %arg13[%c0_66, %c0_67] : memref<48x25xf32, #tpu.memory_space<vmem>>, vector<48x25xf32>
    %93 = vector.extract_strided_slice %91 {offsets = [0, 0], sizes = [48, 25], strides = [1, 1]} : vector<48x512xbf16> to vector<48x25xbf16>
    %c0_68 = arith.constant 0 : index
    %c0_69 = arith.constant 0 : index
    %c0_70 = arith.constant 0 : index
    %94 = vector.load %arg12[%c0_68, %c0_69, %c0_70] : memref<4x48x48xbf16, #tpu.memory_space<vmem>>, vector<1x48x48xbf16>
    %95 = vector.shape_cast %94 : vector<1x48x48xbf16> to vector<48x48xbf16>
    %cst_71 = arith.constant dense<0.000000e+00> : vector<48x25xf32>
    %96 = tpu.matmul %95, %93, %cst_71 {dimension_numbers = #tpu.dot_dimension_numbers<[1], [0], [0], [1], [0, 0, 1, 1], [], []>} : vector<48x48xbf16>, vector<48x25xbf16>, vector<48x25xf32> -> vector<48x25xf32>
    %97 = arith.addf %92, %96 : vector<48x25xf32>
    %98 = vector.extract_strided_slice %91 {offsets = [0, 128], sizes = [48, 25], strides = [1, 1]} : vector<48x512xbf16> to vector<48x25xbf16>
    %c1_72 = arith.constant 1 : index
    %c0_73 = arith.constant 0 : index
    %c0_74 = arith.constant 0 : index
    %99 = vector.load %arg12[%c1_72, %c0_73, %c0_74] : memref<4x48x48xbf16, #tpu.memory_space<vmem>>, vector<1x48x48xbf16>
    %100 = vector.shape_cast %99 : vector<1x48x48xbf16> to vector<48x48xbf16>
    %cst_75 = arith.constant dense<0.000000e+00> : vector<48x25xf32>
    %101 = tpu.matmul %100, %98, %cst_75 {dimension_numbers = #tpu.dot_dimension_numbers<[1], [0], [0], [1], [0, 0, 1, 1], [], []>} : vector<48x48xbf16>, vector<48x25xbf16>, vector<48x25xf32> -> vector<48x25xf32>
    %102 = arith.addf %97, %101 : vector<48x25xf32>
    %103 = vector.extract_strided_slice %91 {offsets = [0, 256], sizes = [48, 25], strides = [1, 1]} : vector<48x512xbf16> to vector<48x25xbf16>
    %c2_76 = arith.constant 2 : index
    %c0_77 = arith.constant 0 : index
    %c0_78 = arith.constant 0 : index
    %104 = vector.load %arg12[%c2_76, %c0_77, %c0_78] : memref<4x48x48xbf16, #tpu.memory_space<vmem>>, vector<1x48x48xbf16>
    %105 = vector.shape_cast %104 : vector<1x48x48xbf16> to vector<48x48xbf16>
    %cst_79 = arith.constant dense<0.000000e+00> : vector<48x25xf32>
    %106 = tpu.matmul %105, %103, %cst_79 {dimension_numbers = #tpu.dot_dimension_numbers<[1], [0], [0], [1], [0, 0, 1, 1], [], []>} : vector<48x48xbf16>, vector<48x25xbf16>, vector<48x25xf32> -> vector<48x25xf32>
    %107 = arith.addf %102, %106 : vector<48x25xf32>
    %108 = vector.extract_strided_slice %91 {offsets = [0, 384], sizes = [48, 25], strides = [1, 1]} : vector<48x512xbf16> to vector<48x25xbf16>
    %c3_80 = arith.constant 3 : index
    %c0_81 = arith.constant 0 : index
    %c0_82 = arith.constant 0 : index
    %109 = vector.load %arg12[%c3_80, %c0_81, %c0_82] : memref<4x48x48xbf16, #tpu.memory_space<vmem>>, vector<1x48x48xbf16>
    %110 = vector.shape_cast %109 : vector<1x48x48xbf16> to vector<48x48xbf16>
    %cst_83 = arith.constant dense<0.000000e+00> : vector<48x25xf32>
    %111 = tpu.matmul %110, %108, %cst_83 {dimension_numbers = #tpu.dot_dimension_numbers<[1], [0], [0], [1], [0, 0, 1, 1], [], []>} : vector<48x48xbf16>, vector<48x25xbf16>, vector<48x25xf32> -> vector<48x25xf32>
    %112 = arith.addf %107, %111 : vector<48x25xf32>
    %c0_84 = arith.constant 0 : index
    %c0_85 = arith.constant 0 : index
    %113 = vector.load %arg14[%c0_84, %c0_85] : memref<48x25xf32, #tpu.memory_space<vmem>>, vector<48x25xf32>
    tpu.vector_store %arg14[%c0_84, %c0_85], %112 {strides = array<i32>} : memref<48x25xf32, #tpu.memory_space<vmem>>, vector<48x25xf32>,
    return
  }
  func.func @transform_0(%arg0: i32) -> (i32, i32) {
    %c0_i32 = arith.constant 0 : i32
    %c0_i32_0 = arith.constant 0 : i32
    return %arg0, %c0_i32 : i32, i32
  }
  func.func @transform_1(%arg0: i32) -> (i32, i32) {
    %c0_i32 = arith.constant 0 : i32
    %c0_i32_0 = arith.constant 0 : i32
    %c0_i32_1 = arith.constant 0 : i32
    return %c0_i32, %c0_i32_0 : i32, i32
  }
  func.func @transform_2(%arg0: i32) -> (i32, i32, i32) {
    %c0_i32 = arith.constant 0 : i32
    %c0_i32_0 = arith.constant 0 : i32
    %c0_i32_1 = arith.constant 0 : i32
    %c0_i32_2 = arith.constant 0 : i32
    return %c0_i32, %c0_i32_0, %c0_i32_1 : i32, i32, i32
  }
  func.func @transform_3(%arg0: i32) -> (i32, i32) {
    %c0_i32 = arith.constant 0 : i32
    %c0_i32_0 = arith.constant 0 : i32
    %c0_i32_1 = arith.constant 0 : i32
    return %c0_i32, %c0_i32_0 : i32, i32
  }
  func.func @transform_4(%arg0: i32) -> (i32, i32) {
    %c0_i32 = arith.constant 0 : i32
    %c0_i32_0 = arith.constant 0 : i32
    %c0_i32_1 = arith.constant 0 : i32
    return %c0_i32, %c0_i32_0 : i32, i32
  }
  func.func @transform_5(%arg0: i32) -> (i32, i32, i32) {
    %c0_i32 = arith.constant 0 : i32
    %c0_i32_0 = arith.constant 0 : i32
    %c0_i32_1 = arith.constant 0 : i32
    %c0_i32_2 = arith.constant 0 : i32
    return %c0_i32, %c0_i32_0, %c0_i32_1 : i32, i32, i32
  }
  func.func @transform_6(%arg0: i32) -> (i32, i32) {
    %c0_i32 = arith.constant 0 : i32
    %c0_i32_0 = arith.constant 0 : i32
    %c0_i32_1 = arith.constant 0 : i32
    return %c0_i32, %c0_i32_0 : i32, i32
  }
  func.func @transform_7(%arg0: i32) -> (i32, i32) {
    %c0_i32 = arith.constant 0 : i32
    %c0_i32_0 = arith.constant 0 : i32
    %c0_i32_1 = arith.constant 0 : i32
    return %c0_i32, %c0_i32_0 : i32, i32
  }
  func.func @transform_8(%arg0: i32) -> (i32, i32, i32) {
    %c0_i32 = arith.constant 0 : i32
    %c0_i32_0 = arith.constant 0 : i32
    %c0_i32_1 = arith.constant 0 : i32
    %c0_i32_2 = arith.constant 0 : i32
    return %c0_i32, %c0_i32_0, %c0_i32_1 : i32, i32, i32
  }
  func.func @transform_9(%arg0: i32) -> (i32, i32) {
    %c0_i32 = arith.constant 0 : i32
    %c0_i32_0 = arith.constant 0 : i32
    %c0_i32_1 = arith.constant 0 : i32
    return %c0_i32, %c0_i32_0 : i32, i32
  }
  func.func @transform_10(%arg0: i32) -> (i32, i32) {
    %c0_i32 = arith.constant 0 : i32
    %c0_i32_0 = arith.constant 0 : i32
    %c0_i32_1 = arith.constant 0 : i32
    return %c0_i32, %c0_i32_0 : i32, i32
  }
  func.func @transform_11(%arg0: i32) -> (i32, i32, i32) {
    %c0_i32 = arith.constant 0 : i32
    %c0_i32_0 = arith.constant 0 : i32
    %c0_i32_1 = arith.constant 0 : i32
    %c0_i32_2 = arith.constant 0 : i32
    return %c0_i32, %c0_i32_0, %c0_i32_1 : i32, i32, i32
  }
  func.func @transform_12(%arg0: i32) -> (i32, i32) {
    %c0_i32 = arith.constant 0 : i32
    %c0_i32_0 = arith.constant 0 : i32
    %c0_i32_1 = arith.constant 0 : i32
    return %c0_i32, %c0_i32_0 : i32, i32
  }
  func.func @transform_13(%arg0: i32) -> (i32, i32) {
    %c0_i32 = arith.constant 0 : i32
    %c0_i32_0 = arith.constant 0 : i32
    return %arg0, %c0_i32 : i32, i32
  }
}

</mosaic_0001>

<llo_original>
// kernel: forward.1
$region0: #{forward.1}
  #allocation0 [shape = 'u32[]', space=smem, size = 0x4, offset = 0x4, fixed_abs, tag = 'smem constant byte address 0x4 - core index']
  #allocation1 [shape = 'u32[144,128]{1,0:T(1,128)}', space=vmem, size = 0x12000, scoped, tag = 'internal scratch']
  %s0 = inlined_call_operand.vmem [shape: f32[96,1040], index: 0, kind: input, shape index: {}]
  %s1 = inlined_call_operand.vmem [shape: bf16[1040,368], index: 1, kind: input, shape index: {}]
  %s2 = inlined_call_operand.vmem [shape: bf16[1,48,48], index: 2, kind: input, shape index: {}]
  %s3 = inlined_call_operand.vmem [shape: f32[48,368], index: 3, kind: input, shape index: {}]
  %s4 = inlined_call_operand.vmem [shape: bf16[368,1152], index: 4, kind: input, shape index: {}]
  %s5 = inlined_call_operand.vmem [shape: bf16[9,48,48], index: 5, kind: input, shape index: {}]
  %s6 = inlined_call_operand.vmem [shape: f32[48,35], index: 6, kind: input, shape index: {}]
  %s7 = inlined_call_operand.vmem [shape: bf16[35,512], index: 7, kind: input, shape index: {}]
  %s8 = inlined_call_operand.vmem [shape: bf16[4,48,48], index: 8, kind: input, shape index: {}]
  %s9 = inlined_call_operand.vmem [shape: f32[48,25], index: 9, kind: input, shape index: {}]
  %s10 = inlined_call_operand.vmem [shape: bf16[25,512], index: 10, kind: input, shape index: {}]
  %s11 = inlined_call_operand.vmem [shape: bf16[4,48,48], index: 11, kind: input, shape index: {}]
  %s12 = inlined_call_operand.vmem [shape: f32[48,25], index: 12, kind: input, shape index: {}]
  %s13 = inlined_call_operand.vmem [shape: f32[96,25], index: 13, kind: output, shape index: {}]
  %s14 = sld [smem:[#allocation0]]
  $region85: #{forward.1} parent=0
    _
  %s16 = ssub.s32 1, %s14
  %s17 = scalar_select 0, %s16, %s14
  loop: start=0, step=1, limit=4
  $region2: #{forward.1} parent=0 // loop_pre_header
    _
  $region3: #{forward.1} parent=0 // loop_header
    %s19 = sphi 0, %s23
    %p20 = scmp.ge.s32.totalorder %s19, 4
    %s29 = sphi 0, %s31
    %s32 = sphi 0, %s29
    %s33 = sphi 0, %s32
    %s49 = sphi 0, %s33
    %s53 = sphi 0, %s53
    %s55 = sphi 0, %s53
    %s56 = sphi 0, %s55
    %s70 = sphi 0, %s56
    %s74 = sphi 0, %s74
    %s76 = sphi 0, %s74
    %s77 = sphi 0, %s76
    %s91 = sphi 0, %s77
    %s95 = sphi 0, %s95
    %s97 = sphi 0, %s95
    %s98 = sphi 0, %s97
    %s112 = sphi 0, %s98
    %s116 = sphi 0, %s116
    %s118 = sphi 0, %s116
    %s119 = sphi 0, %s118
    %s133 = sphi 0, %s119
    %s137 = sphi 0, %s137
    %s139 = sphi 0, %s137
    %s140 = sphi 0, %s139
    %s154 = sphi 0, %s140
    %s158 = sphi 0, %s158
    %s160 = sphi 0, %s158
    %s161 = sphi 0, %s160
    %s175 = sphi 0, %s161
    %s179 = sphi 0, %s179
    %s181 = sphi 0, %s179
    %s182 = sphi 0, %s181
    %s196 = sphi 0, %s182
    %s200 = sphi 0, %s200
    %s202 = sphi 0, %s200
    %s203 = sphi 0, %s202
    %s217 = sphi 0, %s203
    %s221 = sphi 0, %s221
    %s223 = sphi 0, %s221
    %s224 = sphi 0, %s223
    %s238 = sphi 0, %s224
    %s242 = sphi 0, %s242
    %s244 = sphi 0, %s242
    %s245 = sphi 0, %s244
    %s259 = sphi 0, %s245
    %s263 = sphi 0, %s263
    %s265 = sphi 0, %s263
    %s266 = sphi 0, %s265
    %s280 = sphi 0, %s266
    %s284 = sphi 0, %s284
    %s286 = sphi 0, %s284
    %s287 = sphi 0, %s286
    %s301 = sphi 0, %s287
    %s307 = sphi 0, %s309
    %s310 = sphi 0, %s307
    %s311 = sphi 0, %s310
    %s327 = sphi 0, %s311
  $region4: #{forward.1} parent=0 // loop_header_branch
    %22 = sbr.rel (%p20) target = $region8
  $region5: #{forward.1} parent=0 // loop_body
    %s24 = ssub.s32 %s19, 1
    %s25 = ssub.s32 %s19, 2
    %s26 = sadd.s32 %s19, 1
    %s27 = ssub.s32 %s19, %s26
    %p28 = scmp.eq.s32.totalorder %s27, 0
    %s30 = sadd.s32 %s29, 1
    %s31 = scalar_select %p28, %s29, %s30
    %p34 = pneg %p28
    %p35 = scmp.eq.s32.totalorder %s19, 1
    %p36 = por %p34, %p35
    %p37 = scmp.ne.s32.totalorder %s29, %s32
    %p38 = scmp.eq.s32.totalorder %s19, 0
    %p39 = por %p37, %p38
    %p40 = scmp.ne.s32.totalorder %s29, %s32
    %p41 = scmp.eq.s32.totalorder %s24, 1
    %p42 = por %p40, %p41
    %p43 = scmp.ne.s32.totalorder %s32, %s33
    %p44 = scmp.eq.s32.totalorder %s24, 0
    %p45 = por %p43, %p44
    %p46 = scmp.ne.s32.totalorder %s32, %s33
    %p47 = scmp.eq.s32.totalorder %s25, 1
    %p48 = por %p46, %p47
    %p50 = scmp.ne.s32.totalorder %s33, %s49
    %p51 = scmp.eq.s32.totalorder %s25, 0
    %p52 = por %p50, %p51
    %s54 = sadd.s32 %s53, 1
    %p57 = scmp.eq.s32.totalorder %s19, 1
    %p58 = scmp.ne.s32.totalorder %s53, %s55
    %p59 = scmp.eq.s32.totalorder %s19, 0
    %p60 = por %p58, %p59
    %p61 = scmp.ne.s32.totalorder %s53, %s55
    %p62 = scmp.eq.s32.totalorder %s24, 1
    %p63 = por %p61, %p62
    %p64 = scmp.ne.s32.totalorder %s55, %s56
    %p65 = scmp.eq.s32.totalorder %s24, 0
    %p66 = por %p64, %p65
    %p67 = scmp.ne.s32.totalorder %s55, %s56
    %p68 = scmp.eq.s32.totalorder %s25, 1
    %p69 = por %p67, %p68
    %p71 = scmp.ne.s32.totalorder %s56, %s70
    %p72 = scmp.eq.s32.totalorder %s25, 0
    %p73 = por %p71, %p72
    %s75 = sadd.s32 %s74, 1
    %p78 = scmp.eq.s32.totalorder %s19, 1
    %p79 = scmp.ne.s32.totalorder %s74, %s76
    %p80 = scmp.eq.s32.totalorder %s19, 0
    %p81 = por %p79, %p80
    %p82 = scmp.ne.s32.totalorder %s74, %s76
    %p83 = scmp.eq.s32.totalorder %s24, 1
    %p84 = por %p82, %p83
    %p85 = scmp.ne.s32.totalorder %s76, %s77
    %p86 = scmp.eq.s32.totalorder %s24, 0
    %p87 = por %p85, %p86
    %p88 = scmp.ne.s32.totalorder %s76, %s77
    %p89 = scmp.eq.s32.totalorder %s25, 1
    %p90 = por %p88, %p89
    %p92 = scmp.ne.s32.totalorder %s77, %s91
    %p93 = scmp.eq.s32.totalorder %s25, 0
    %p94 = por %p92, %p93
    %s96 = sadd.s32 %s95, 1
    %p99 = scmp.eq.s32.totalorder %s19, 1
    %p100 = scmp.ne.s32.totalorder %s95, %s97
    %p101 = scmp.eq.s32.totalorder %s19, 0
    %p102 = por %p100, %p101
    %p103 = scmp.ne.s32.totalorder %s95, %s97
    %p104 = scmp.eq.s32.totalorder %s24, 1
    %p105 = por %p103, %p104
    %p106 = scmp.ne.s32.totalorder %s97, %s98
    %p107 = scmp.eq.s32.totalorder %s24, 0
    %p108 = por %p106, %p107
    %p109 = scmp.ne.s32.totalorder %s97, %s98
    %p110 = scmp.eq.s32.totalorder %s25, 1
    %p111 = por %p109, %p110
    %p113 = scmp.ne.s32.totalorder %s98, %s112
    %p114 = scmp.eq.s32.totalorder %s25, 0
    %p115 = por %p113, %p114
    %s117 = sadd.s32 %s116, 1
    %p120 = scmp.eq.s32.totalorder %s19, 1
    %p121 = scmp.ne.s32.totalorder %s116, %s118
    %p122 = scmp.eq.s32.totalorder %s19, 0
    %p123 = por %p121, %p122
    %p124 = scmp.ne.s32.totalorder %s116, %s118
    %p125 = scmp.eq.s32.totalorder %s24, 1
    %p126 = por %p124, %p125
    %p127 = scmp.ne.s32.totalorder %s118, %s119
    %p128 = scmp.eq.s32.totalorder %s24, 0
    %p129 = por %p127, %p128
    %p130 = scmp.ne.s32.totalorder %s118, %s119
    %p131 = scmp.eq.s32.totalorder %s25, 1
    %p132 = por %p130, %p131
    %p134 = scmp.ne.s32.totalorder %s119, %s133
    %p135 = scmp.eq.s32.totalorder %s25, 0
    %p136 = por %p134, %p135
    %s138 = sadd.s32 %s137, 1
    %p141 = scmp.eq.s32.totalorder %s19, 1
    %p142 = scmp.ne.s32.totalorder %s137, %s139
    %p143 = scmp.eq.s32.totalorder %s19, 0
    %p144 = por %p142, %p143
    %p145 = scmp.ne.s32.totalorder %s137, %s139
    %p146 = scmp.eq.s32.totalorder %s24, 1
    %p147 = por %p145, %p146
    %p148 = scmp.ne.s32.totalorder %s139, %s140
    %p149 = scmp.eq.s32.totalorder %s24, 0
    %p150 = por %p148, %p149
    %p151 = scmp.ne.s32.totalorder %s139, %s140
    %p152 = scmp.eq.s32.totalorder %s25, 1
    %p153 = por %p151, %p152
    %p155 = scmp.ne.s32.totalorder %s140, %s154
    %p156 = scmp.eq.s32.totalorder %s25, 0
    %p157 = por %p155, %p156
    %s159 = sadd.s32 %s158, 1
    %p162 = scmp.eq.s32.totalorder %s19, 1
    %p163 = scmp.ne.s32.totalorder %s158, %s160
    %p164 = scmp.eq.s32.totalorder %s19, 0
    %p165 = por %p163, %p164
    %p166 = scmp.ne.s32.totalorder %s158, %s160
    %p167 = scmp.eq.s32.totalorder %s24, 1
    %p168 = por %p166, %p167
    %p169 = scmp.ne.s32.totalorder %s160, %s161
    %p170 = scmp.eq.s32.totalorder %s24, 0
    %p171 = por %p169, %p170
    %p172 = scmp.ne.s32.totalorder %s160, %s161
    %p173 = scmp.eq.s32.totalorder %s25, 1
    %p174 = por %p172, %p173
    %p176 = scmp.ne.s32.totalorder %s161, %s175
    %p177 = scmp.eq.s32.totalorder %s25, 0
    %p178 = por %p176, %p177
    %s180 = sadd.s32 %s179, 1
    %p183 = scmp.eq.s32.totalorder %s19, 1
    %p184 = scmp.ne.s32.totalorder %s179, %s181
    %p185 = scmp.eq.s32.totalorder %s19, 0
    %p186 = por %p184, %p185
    %p187 = scmp.ne.s32.totalorder %s179, %s181
    %p188 = scmp.eq.s32.totalorder %s24, 1
    %p189 = por %p187, %p188
    %p190 = scmp.ne.s32.totalorder %s181, %s182
    %p191 = scmp.eq.s32.totalorder %s24, 0
    %p192 = por %p190, %p191
    %p193 = scmp.ne.s32.totalorder %s181, %s182
    %p194 = scmp.eq.s32.totalorder %s25, 1
    %p195 = por %p193, %p194
    %p197 = scmp.ne.s32.totalorder %s182, %s196
    %p198 = scmp.eq.s32.totalorder %s25, 0
    %p199 = por %p197, %p198
    %s201 = sadd.s32 %s200, 1
    %p204 = scmp.eq.s32.totalorder %s19, 1
    %p205 = scmp.ne.s32.totalorder %s200, %s202
    %p206 = scmp.eq.s32.totalorder %s19, 0
    %p207 = por %p205, %p206
    %p208 = scmp.ne.s32.totalorder %s200, %s202
    %p209 = scmp.eq.s32.totalorder %s24, 1
    %p210 = por %p208, %p209
    %p211 = scmp.ne.s32.totalorder %s202, %s203
    %p212 = scmp.eq.s32.totalorder %s24, 0
    %p213 = por %p211, %p212
    %p214 = scmp.ne.s32.totalorder %s202, %s203
    %p215 = scmp.eq.s32.totalorder %s25, 1
    %p216 = por %p214, %p215
    %p218 = scmp.ne.s32.totalorder %s203, %s217
    %p219 = scmp.eq.s32.totalorder %s25, 0
    %p220 = por %p218, %p219
    %s222 = sadd.s32 %s221, 1
    %p225 = scmp.eq.s32.totalorder %s19, 1
    %p226 = scmp.ne.s32.totalorder %s221, %s223
    %p227 = scmp.eq.s32.totalorder %s19, 0
    %p228 = por %p226, %p227
    %p229 = scmp.ne.s32.totalorder %s221, %s223
    %p230 = scmp.eq.s32.totalorder %s24, 1
    %p231 = por %p229, %p230
    %p232 = scmp.ne.s32.totalorder %s223, %s224
    %p233 = scmp.eq.s32.totalorder %s24, 0
    %p234 = por %p232, %p233
    %p235 = scmp.ne.s32.totalorder %s223, %s224
    %p236 = scmp.eq.s32.totalorder %s25, 1
    %p237 = por %p235, %p236
    %p239 = scmp.ne.s32.totalorder %s224, %s238
    %p240 = scmp.eq.s32.totalorder %s25, 0
    %p241 = por %p239, %p240
    %s243 = sadd.s32 %s242, 1
    %p246 = scmp.eq.s32.totalorder %s19, 1
    %p247 = scmp.ne.s32.totalorder %s242, %s244
    %p248 = scmp.eq.s32.totalorder %s19, 0
    %p249 = por %p247, %p248
    %p250 = scmp.ne.s32.totalorder %s242, %s244
    %p251 = scmp.eq.s32.totalorder %s24, 1
    %p252 = por %p250, %p251
    %p253 = scmp.ne.s32.totalorder %s244, %s245
    %p254 = scmp.eq.s32.totalorder %s24, 0
    %p255 = por %p253, %p254
    %p256 = scmp.ne.s32.totalorder %s244, %s245
    %p257 = scmp.eq.s32.totalorder %s25, 1
    %p258 = por %p256, %p257
    %p260 = scmp.ne.s32.totalorder %s245, %s259
    %p261 = scmp.eq.s32.totalorder %s25, 0
    %p262 = por %p260, %p261
    %s264 = sadd.s32 %s263, 1
    %p267 = scmp.eq.s32.totalorder %s19, 1
    %p268 = scmp.ne.s32.totalorder %s263, %s265
    %p269 = scmp.eq.s32.totalorder %s19, 0
    %p270 = por %p268, %p269
    %p271 = scmp.ne.s32.totalorder %s263, %s265
    %p272 = scmp.eq.s32.totalorder %s24, 1
    %p273 = por %p271, %p272
    %p274 = scmp.ne.s32.totalorder %s265, %s266
    %p275 = scmp.eq.s32.totalorder %s24, 0
    %p276 = por %p274, %p275
    %p277 = scmp.ne.s32.totalorder %s265, %s266
    %p278 = scmp.eq.s32.totalorder %s25, 1
    %p279 = por %p277, %p278
    %p281 = scmp.ne.s32.totalorder %s266, %s280
    %p282 = scmp.eq.s32.totalorder %s25, 0
    %p283 = por %p281, %p282
    %s285 = sadd.s32 %s284, 1
    %p288 = scmp.eq.s32.totalorder %s19, 1
    %p289 = scmp.ne.s32.totalorder %s284, %s286
    %p290 = scmp.eq.s32.totalorder %s19, 0
    %p291 = por %p289, %p290
    %p292 = scmp.ne.s32.totalorder %s284, %s286
    %p293 = scmp.eq.s32.totalorder %s24, 1
    %p294 = por %p292, %p293
    %p295 = scmp.ne.s32.totalorder %s286, %s287
    %p296 = scmp.eq.s32.totalorder %s24, 0
    %p297 = por %p295, %p296
    %p298 = scmp.ne.s32.totalorder %s286, %s287
    %p299 = scmp.eq.s32.totalorder %s25, 1
    %p300 = por %p298, %p299
    %p302 = scmp.ne.s32.totalorder %s287, %s301
    %p303 = scmp.eq.s32.totalorder %s25, 0
    %p304 = por %p302, %p303
    %s305 = ssub.s32 %s19, %s26
    %p306 = scmp.eq.s32.totalorder %s305, 0
    %s308 = sadd.s32 %s307, 1
    %s309 = scalar_select %p306, %s307, %s308
    %p312 = pneg %p306
    %p313 = scmp.eq.s32.totalorder %s19, 1
    %p314 = por %p312, %p313
    %p315 = scmp.ne.s32.totalorder %s307, %s310
    %p316 = scmp.eq.s32.totalorder %s19, 0
    %p317 = por %p315, %p316
    %p318 = scmp.ne.s32.totalorder %s307, %s310
    %p319 = scmp.eq.s32.totalorder %s24, 1
    %p320 = por %p318, %p319
    %p321 = scmp.ne.s32.totalorder %s310, %s311
    %p322 = scmp.eq.s32.totalorder %s24, 0
    %p323 = por %p321, %p322
    %p324 = scmp.ne.s32.totalorder %s310, %s311
    %p325 = scmp.eq.s32.totalorder %s25, 1
    %p326 = por %p324, %p325
    %p328 = scmp.ne.s32.totalorder %s311, %s327
    %p329 = scmp.eq.s32.totalorder %s25, 0
    %p330 = por %p328, %p329
    %p331 = scmp.le.s32.totalorder 1, %s19
    %p332 = scmp.lt.s32.totalorder %s19, 3
    %p333 = pnand %p331, %p332
    %p334 = pneg %p333
    // Predicated region
    $region9: #{forward.1} parent=5 // pred_check
      _
    $region10: #{forward.1} parent=5 // pred_check_branch
      %336 = sbr.rel (%p333) target = $region12
    $region11: #{forward.1} parent=5 // pred_region
      %s337 = ssub.s32 %s19, 1
      // Predicated region
      $region13: #{forward.1} parent=11 // pred_check
        %p338 = pneg %p66
      $region14: #{forward.1} parent=11 // pred_check_branch
        %340 = sbr.rel (%p338) target = $region16
      $region15: #{forward.1} parent=11 // pred_region
        _
      $region16: #{forward.1} parent=11 // pred_fallthru
        _
      // Predicated region
      $region17: #{forward.1} parent=11 // pred_check
        %p341 = pneg %p87
      $region18: #{forward.1} parent=11 // pred_check_branch
        %343 = sbr.rel (%p341) target = $region20
      $region19: #{forward.1} parent=11 // pred_region
        _
      $region20: #{forward.1} parent=11 // pred_fallthru
        _
      // Predicated region
      $region21: #{forward.1} parent=11 // pred_check
        %p344 = pneg %p108
      $region22: #{forward.1} parent=11 // pred_check_branch
        %346 = sbr.rel (%p344) target = $region24
      $region23: #{forward.1} parent=11 // pred_region
        _
      $region24: #{forward.1} parent=11 // pred_fallthru
        _
      // Predicated region
      $region25: #{forward.1} parent=11 // pred_check
        %p347 = pneg %p129
      $region26: #{forward.1} parent=11 // pred_check_branch
        %349 = sbr.rel (%p347) target = $region28
      $region27: #{forward.1} parent=11 // pred_region
        _
      $region28: #{forward.1} parent=11 // pred_fallthru
        _
      // Predicated region
      $region29: #{forward.1} parent=11 // pred_check
        %p350 = pneg %p150
      $region30: #{forward.1} parent=11 // pred_check_branch
        %352 = sbr.rel (%p350) target = $region32
      $region31: #{forward.1} parent=11 // pred_region
        _
      $region32: #{forward.1} parent=11 // pred_fallthru
        _
      // Predicated region
      $region33: #{forward.1} parent=11 // pred_check
        %p353 = pneg %p171
      $region34: #{forward.1} parent=11 // pred_check_branch
        %355 = sbr.rel (%p353) target = $region36
      $region35: #{forward.1} parent=11 // pred_region
        _
      $region36: #{forward.1} parent=11 // pred_fallthru
        _
      // Predicated region
      $region37: #{forward.1} parent=11 // pred_check
        %p356 = pneg %p192
      $region38: #{forward.1} parent=11 // pred_check_branch
        %358 = sbr.rel (%p356) target = $region40
      $region39: #{forward.1} parent=11 // pred_region
        _
      $region40: #{forward.1} parent=11 // pred_fallthru
        _
      // Predicated region
      $region41: #{forward.1} parent=11 // pred_check
        %p359 = pneg %p213
      $region42: #{forward.1} parent=11 // pred_check_branch
        %361 = sbr.rel (%p359) target = $region44
      $region43: #{forward.1} parent=11 // pred_region
        _
      $region44: #{forward.1} parent=11 // pred_fallthru
        _
      // Predicated region
      $region45: #{forward.1} parent=11 // pred_check
        %p362 = pneg %p234
      $region46: #{forward.1} parent=11 // pred_check_branch
        %364 = sbr.rel (%p362) target = $region48
      $region47: #{forward.1} parent=11 // pred_region
        _
      $region48: #{forward.1} parent=11 // pred_fallthru
        _
      // Predicated region
      $region49: #{forward.1} parent=11 // pred_check
        %p365 = pneg %p255
      $region50: #{forward.1} parent=11 // pred_check_branch
        %367 = sbr.rel (%p365) target = $region52
      $region51: #{forward.1} parent=11 // pred_region
        _
      $region52: #{forward.1} parent=11 // pred_fallthru
        _
      // Predicated region
      $region53: #{forward.1} parent=11 // pred_check
        %p368 = pneg %p276
      $region54: #{forward.1} parent=11 // pred_check_branch
        %370 = sbr.rel (%p368) target = $region56
      $region55: #{forward.1} parent=11 // pred_region
        _
      $region56: #{forward.1} parent=11 // pred_fallthru
        _
      // Predicated region
      $region57: #{forward.1} parent=11 // pred_check
        %p371 = pneg %p297
      $region58: #{forward.1} parent=11 // pred_check_branch
        %373 = sbr.rel (%p371) target = $region60
      $region59: #{forward.1} parent=11 // pred_region
        _
      $region60: #{forward.1} parent=11 // pred_fallthru
        _
    $region12: #{forward.1} parent=5 // pred_fallthru
      _
    %p374 = scmp.lt.s32.totalorder %s19, 2
    // Predicated region
    $region61: #{forward.1} parent=5 // pred_check
      %p375 = pneg %p374
    $region62: #{forward.1} parent=5 // pred_check_branch
      %377 = sbr.rel (%p375) target = $region64
    $region63: #{forward.1} parent=5 // pred_region
      // Predicated region
      $region65: #{forward.1} parent=63 // pred_check
        %p378 = pneg %p39
      $region66: #{forward.1} parent=63 // pred_check_branch
        %380 = sbr.rel (%p378) target = $region68
      $region67: #{forward.1} parent=63 // pred_region
        %s381 = smul.u32 6, %s19
        %p382 = scmp.lt.s32.totalorder %s381, 11
        %s383 = scalar_select %p382, %s381, 11
        %s384 = smul.addr %s383, 9
        %s385 = smul.addr %s384, 8
        %s386 = scalar_lea.vmem %s0, %s385
        %s387 = smul.u32 6, %s19
      $region68: #{forward.1} parent=63 // pred_fallthru
        _
    $region64: #{forward.1} parent=5 // pred_fallthru
      _
    %p388 = scmp.le.s32.totalorder 1, %s19
    %p389 = scmp.lt.s32.totalorder %s19, 3
    %p390 = pnand %p388, %p389
    %p391 = pneg %p390
    // Predicated region
    $region69: #{forward.1} parent=5 // pred_check
      _
    $region70: #{forward.1} parent=5 // pred_check_branch
      %393 = sbr.rel (%p390) target = $region72
    $region71: #{forward.1} parent=5 // pred_region
      %s394 = ssub.s32 %s19, 1
      %s395 = smul.u32 6, %s24
      %p396 = scmp.lt.s32.totalorder %s395, 11
      %s397 = scalar_select %p396, %s395, 11
      %s398 = smul.addr %s397, 9
      %s399 = smul.addr %s398, 8
      %s400 = scalar_lea.vmem %s0, %s399
      %p401 = pneg %p45
      %p402 = pneg %p42
      %p403 = pneg %p66
      %p404 = pneg %p63
      %p405 = pneg %p87
      %p406 = pneg %p84
      %p407 = pneg %p108
      %p408 = pneg %p105
      %p409 = pneg %p129
      %p410 = pneg %p126
      %p411 = pneg %p150
      %p412 = pneg %p147
      %p413 = pneg %p171
      %p414 = pneg %p168
      %p415 = pneg %p192
      %p416 = pneg %p189
      %p417 = pneg %p213
      %p418 = pneg %p210
      %p419 = pneg %p234
      %p420 = pneg %p231
      %p421 = pneg %p255
      %p422 = pneg %p252
      %p423 = pneg %p276
      %p424 = pneg %p273
      %p425 = pneg %p297
      %p426 = pneg %p294
      %p427 = pneg %p323
      %p428 = pneg %p320
      %s429 = smul.u32 6, %s24
      %p430 = scmp.lt.s32.totalorder %s429, 11
      %s431 = scalar_select %p430, %s429, 11
      %s432 = smul.addr %s431, 8
      %s433 = scalar_lea.vmem %s13, %s432
      %s434 = smul.u32 6, %s24
      %p435 = scmp.lt.s32.totalorder %s434, 11
      %s436 = scalar_select %p435, %s434, 11
      %s437 = smul.addr %s436, 9
      %s438 = smul.addr %s437, 8
      %s439 = scalar_lea.vmem %s0, %s438
      %s440 = smul.u32 6, %s24
      %s441 = smul.u32 6, %s24
      %p442 = scmp.lt.s32.totalorder %s441, 11
      %s443 = scalar_select %p442, %s441, 11
      %s444 = smul.addr %s443, 8
      %s445 = scalar_lea.vmem %s13, %s444
      %s446 = smul.u32 6, %s24
      %v448 = vld [vmem:[%s439] sm:$0xff]
      %v449 = vld [vmem:[%s439 + $0x8] sm:$0xff]
      %v450 = vld [vmem:[%s439 + $0x10] sm:$0xff]
      %v451 = vld [vmem:[%s439 + $0x18] sm:$0xff]
      %v452 = vld [vmem:[%s439 + $0x20] sm:$0xff]
      %v453 = vld [vmem:[%s439 + $0x28] sm:$0xff]
      %v454 = vld [vmem:[%s439 + $0x30] sm:$0xff]
      %v455 = vld [vmem:[%s439 + $0x38] sm:$0xff]
      %v456 = vld [vmem:[%s439 + $0x40] sm:$0xff]
      %v457 = vld [vmem:[%s439 + $0x48] sm:$0xff]
      %v458 = vld [vmem:[%s439 + $0x50] sm:$0xff]
      %v459 = vld [vmem:[%s439 + $0x58] sm:$0xff]
      %v460 = vld [vmem:[%s439 + $0x60] sm:$0xff]
      %v461 = vld [vmem:[%s439 + $0x68] sm:$0xff]
      %v462 = vld [vmem:[%s439 + $0x70] sm:$0xff]
      %v463 = vld [vmem:[%s439 + $0x78] sm:$0xff]
      %v464 = vld [vmem:[%s439 + $0x80] sm:$0xff]
      %v465 = vld [vmem:[%s439 + $0x88] sm:$0xff]
      %v466 = vld [vmem:[%s439 + $0x90] sm:$0xff]
      %v467 = vld [vmem:[%s439 + $0x98] sm:$0xff]
      %v468 = vld [vmem:[%s439 + $0xa0] sm:$0xff]
      %v469 = vld [vmem:[%s439 + $0xa8] sm:$0xff]
      %v470 = vld [vmem:[%s439 + $0xb0] sm:$0xff]
      %v471 = vld [vmem:[%s439 + $0xb8] sm:$0xff]
      %v472 = vld [vmem:[%s439 + $0xc0] sm:$0xff]
      %v473 = vld [vmem:[%s439 + $0xc8] sm:$0xff]
      %v474 = vld [vmem:[%s439 + $0xd0] sm:$0xff]
      %v475 = vld [vmem:[%s439 + $0xd8] sm:$0xff]
      %v476 = vld [vmem:[%s439 + $0xe0] sm:$0xff]
      %v477 = vld [vmem:[%s439 + $0xe8] sm:$0xff]
      %v478 = vld [vmem:[%s439 + $0xf0] sm:$0xff]
      %v479 = vld [vmem:[%s439 + $0xf8] sm:$0xff]
      %v480 = vld [vmem:[%s439 + $0x100] sm:$0xff]
      %v481 = vld [vmem:[%s439 + $0x108] sm:$0xff]
      %v482 = vld [vmem:[%s439 + $0x110] sm:$0xff]
      %v483 = vld [vmem:[%s439 + $0x118] sm:$0xff]
      %v484 = vld [vmem:[%s439 + $0x120] sm:$0xff]
      %v485 = vld [vmem:[%s439 + $0x128] sm:$0xff]
      %v486 = vld [vmem:[%s439 + $0x130] sm:$0xff]
      %v487 = vld [vmem:[%s439 + $0x138] sm:$0xff]
      %v488 = vld [vmem:[%s439 + $0x140] sm:$0xff]
      %v489 = vld [vmem:[%s439 + $0x148] sm:$0xff]
      %v490 = vld [vmem:[%s439 + $0x150] sm:$0xff]
      %v491 = vld [vmem:[%s439 + $0x158] sm:$0xff]
      %v492 = vld [vmem:[%s439 + $0x160] sm:$0xff]
      %v493 = vld [vmem:[%s439 + $0x168] sm:$0xff]
      %v494 = vld [vmem:[%s439 + $0x170] sm:$0xff]
      %v495 = vld [vmem:[%s439 + $0x178] sm:$0xff]
      %v496 = vld [vmem:[%s439 + $0x180] sm:$0xff]
      %v497 = vld [vmem:[%s439 + $0x188] sm:$0xff]
      %v498 = vld [vmem:[%s439 + $0x190] sm:$0xff]
      %v499 = vld [vmem:[%s439 + $0x198] sm:$0xff]
      %v500 = vld [vmem:[%s439 + $0x1a0] sm:$0xff]
      %v501 = vld [vmem:[%s439 + $0x1a8] sm:$0xff]
      %v502 = vpack.c.bf16 %v457, %v448
      %v503 = vpack.c.bf16 %v458, %v449
      %v504 = vpack.c.bf16 %v459, %v450
      %v505 = vpack.c.bf16 %v460, %v451
      %v506 = vpack.c.bf16 %v461, %v452
      %v507 = vpack.c.bf16 %v462, %v453
      %v508 = vpack.c.bf16 %v463, %v454
      %v509 = vpack.c.bf16 %v464, %v455
      %v510 = vpack.c.bf16 %v465, %v456
      %v511 = vpack.c.bf16 %v475, %v466
      %v512 = vpack.c.bf16 %v476, %v467
      %v513 = vpack.c.bf16 %v477, %v468
      %v514 = vpack.c.bf16 %v478, %v469
      %v515 = vpack.c.bf16 %v479, %v470
      %v516 = vpack.c.bf16 %v480, %v471
      %v517 = vpack.c.bf16 %v481, %v472
      %v518 = vpack.c.bf16 %v482, %v473
      %v519 = vpack.c.bf16 %v483, %v474
      %v520 = vpack.c.bf16 %v493, %v484
      %v521 = vpack.c.bf16 %v494, %v485
      %v522 = vpack.c.bf16 %v495, %v486
      %v523 = vpack.c.bf16 %v496, %v487
      %v524 = vpack.c.bf16 %v497, %v488
      %v525 = vpack.c.bf16 %v498, %v489
      %v526 = vpack.c.bf16 %v499, %v490
      %v527 = vpack.c.bf16 %v500, %v491
      %v528 = vpack.c.bf16 %v501, %v492
      %v529 = vld [vmem:[%s1] sm:$0xff]
      %v530 = vld [vmem:[%s1 + $0x8] sm:$0xf]
      %v531 = vld [vmem:[%s1 + $0xc] sm:$0xff]
      %v532 = vld [vmem:[%s1 + $0x14] sm:$0xf]
      %v533 = vld [vmem:[%s1 + $0x18] sm:$0xff]
      %v534 = vld [vmem:[%s1 + $0x20] sm:$0xf]
      %v535 = vld [vmem:[%s1 + $0x24] sm:$0xff]
      %v536 = vld [vmem:[%s1 + $0x2c] sm:$0xf]
      %v537 = vld [vmem:[%s1 + $0x30] sm:$0xff]
      %v538 = vld [vmem:[%s1 + $0x38] sm:$0xf]
      %v539 = vld [vmem:[%s1 + $0x3c] sm:$0xff]
      %v540 = vld [vmem:[%s1 + $0x44] sm:$0xf]
      %v541 = vld [vmem:[%s1 + $0x48] sm:$0xff]
      %v542 = vld [vmem:[%s1 + $0x50] sm:$0xf]
      %v543 = vld [vmem:[%s1 + $0x54] sm:$0xff]
      %v544 = vld [vmem:[%s1 + $0x5c] sm:$0xf]
      %v545 = vld [vmem:[%s1 + $0x60] sm:$0xff]
      %v546 = vld [vmem:[%s1 + $0x68] sm:$0xf]
      %v547 = vld [vmem:[%s1 + $0x6c] sm:$0xff]
      %v548 = vld [vmem:[%s1 + $0x74] sm:$0xf]
      %v549 = vld [vmem:[%s1 + $0x78] sm:$0xff]
      %v550 = vld [vmem:[%s1 + $0x80] sm:$0xf]
      %v551 = vld [vmem:[%s1 + $0x84] sm:$0xff]
      %v552 = vld [vmem:[%s1 + $0x8c] sm:$0xf]
      %v553 = vld [vmem:[%s1 + $0x90] sm:$0xff]
      %v554 = vld [vmem:[%s1 + $0x98] sm:$0xf]
      %v555 = vld [vmem:[%s1 + $0x9c] sm:$0xff]
      %v556 = vld [vmem:[%s1 + $0xa4] sm:$0xf]
      %v557 = vld [vmem:[%s1 + $0xa8] sm:$0xff]
      %v558 = vld [vmem:[%s1 + $0xb0] sm:$0xf]
      %v559 = vld [vmem:[%s1 + $0xb4] sm:$0xff]
      %v560 = vld [vmem:[%s1 + $0xbc] sm:$0xf]
      %v561 = vld [vmem:[%s1 + $0xc0] sm:$0xff]
      %v562 = vld [vmem:[%s1 + $0xc8] sm:$0xf]
      %v563 = vld [vmem:[%s1 + $0xcc] sm:$0xff]
      %v564 = vld [vmem:[%s1 + $0xd4] sm:$0xf]
      %v565 = vld [vmem:[%s1 + $0xd8] sm:$0xff]
      %v566 = vld [vmem:[%s1 + $0xe0] sm:$0xf]
      %v567 = vld [vmem:[%s1 + $0xe4] sm:$0xff]
      %v568 = vld [vmem:[%s1 + $0xec] sm:$0xf]
      %v569 = vld [vmem:[%s1 + $0xf0] sm:$0xff]
      %v570 = vld [vmem:[%s1 + $0xf8] sm:$0xf]
      %v571 = vld [vmem:[%s1 + $0xfc] sm:$0xff]
      %v572 = vld [vmem:[%s1 + $0x104] sm:$0xf]
      %v573 = vld [vmem:[%s1 + $0x108] sm:$0xff]
      %v574 = vld [vmem:[%s1 + $0x110] sm:$0xf]
      %v575 = vld [vmem:[%s1 + $0x114] sm:$0xff]
      %v576 = vld [vmem:[%s1 + $0x11c] sm:$0xf]
      %v577 = vld [vmem:[%s1 + $0x120] sm:$0xff]
      %v578 = vld [vmem:[%s1 + $0x128] sm:$0xf]
      %v579 = vld [vmem:[%s1 + $0x12c] sm:$0xff]
      %v580 = vld [vmem:[%s1 + $0x134] sm:$0xf]
      %v581 = vld [vmem:[%s1 + $0x138] sm:$0xff]
      %v582 = vld [vmem:[%s1 + $0x140] sm:$0xf]
      %v583 = vld [vmem:[%s1 + $0x144] sm:$0xff]
      %v584 = vld [vmem:[%s1 + $0x14c] sm:$0xf]
      %v585 = vld [vmem:[%s1 + $0x150] sm:$0xff]
      %v586 = vld [vmem:[%s1 + $0x158] sm:$0xf]
      %v587 = vld [vmem:[%s1 + $0x15c] sm:$0xff]
      %v588 = vld [vmem:[%s1 + $0x164] sm:$0xf]
      %v589 = vld [vmem:[%s1 + $0x168] sm:$0xff]
      %v590 = vld [vmem:[%s1 + $0x170] sm:$0xf]
      %v591 = vld [vmem:[%s1 + $0x174] sm:$0xff]
      %v592 = vld [vmem:[%s1 + $0x17c] sm:$0xf]
      %v593 = vld [vmem:[%s1 + $0x180] sm:$0xff]
      %v594 = vld [vmem:[%s1 + $0x188] sm:$0xf]
      %v595 = vld [vmem:[%s1 + $0x18c] sm:$0xff]
      %v596 = vld [vmem:[%s1 + $0x194] sm:$0xf]
      %v597 = vld [vmem:[%s1 + $0x198] sm:$0xff]
      %v598 = vld [vmem:[%s1 + $0x1a0] sm:$0xf]
      %v599 = vld [vmem:[%s1 + $0x1a4] sm:$0xff]
      %v600 = vld [vmem:[%s1 + $0x1ac] sm:$0xf]
      %v601 = vld [vmem:[%s1 + $0x1b0] sm:$0xff]
      %v602 = vld [vmem:[%s1 + $0x1b8] sm:$0xf]
      %v603 = vld [vmem:[%s1 + $0x1bc] sm:$0xff]
      %v604 = vld [vmem:[%s1 + $0x1c4] sm:$0xf]
      %v605 = vld [vmem:[%s1 + $0x1c8] sm:$0xff]
      %v606 = vld [vmem:[%s1 + $0x1d0] sm:$0xf]
      %v607 = vld [vmem:[%s1 + $0x1d4] sm:$0xff]
      %v608 = vld [vmem:[%s1 + $0x1dc] sm:$0xf]
      %v609 = vld [vmem:[%s1 + $0x1e0] sm:$0xff]
      %v610 = vld [vmem:[%s1 + $0x1e8] sm:$0xf]
      %v611 = vld [vmem:[%s1 + $0x1ec] sm:$0xff]
      %v612 = vld [vmem:[%s1 + $0x1f4] sm:$0xf]
      %v613 = vld [vmem:[%s1 + $0x1f8] sm:$0xff]
      %v614 = vld [vmem:[%s1 + $0x200] sm:$0xf]
      %v615 = vld [vmem:[%s1 + $0x204] sm:$0xff]
      %v616 = vld [vmem:[%s1 + $0x20c] sm:$0xf]
      %v617 = vld [vmem:[%s1 + $0x210] sm:$0xff]
      %v618 = vld [vmem:[%s1 + $0x218] sm:$0xf]
      %v619 = vld [vmem:[%s1 + $0x21c] sm:$0xff]
      %v620 = vld [vmem:[%s1 + $0x224] sm:$0xf]
      %v621 = vld [vmem:[%s1 + $0x228] sm:$0xff]
      %v622 = vld [vmem:[%s1 + $0x230] sm:$0xf]
      %v623 = vld [vmem:[%s1 + $0x234] sm:$0xff]
      %v624 = vld [vmem:[%s1 + $0x23c] sm:$0xf]
      %v625 = vld [vmem:[%s1 + $0x240] sm:$0xff]
      %v626 = vld [vmem:[%s1 + $0x248] sm:$0xf]
      %v627 = vld [vmem:[%s1 + $0x24c] sm:$0xff]
      %v628 = vld [vmem:[%s1 + $0x254] sm:$0xf]
      %v629 = vld [vmem:[%s1 + $0x258] sm:$0xff]
      %v630 = vld [vmem:[%s1 + $0x260] sm:$0xf]
      %v631 = vld [vmem:[%s1 + $0x264] sm:$0xff]
      %v632 = vld [vmem:[%s1 + $0x26c] sm:$0xf]
      %v633 = vld [vmem:[%s1 + $0x270] sm:$0xff]
      %v634 = vld [vmem:[%s1 + $0x278] sm:$0xf]
      %v635 = vld [vmem:[%s1 + $0x27c] sm:$0xff]
      %v636 = vld [vmem:[%s1 + $0x284] sm:$0xf]
      %v637 = vld [vmem:[%s1 + $0x288] sm:$0xff]
      %v638 = vld [vmem:[%s1 + $0x290] sm:$0xf]
      %v639 = vld [vmem:[%s1 + $0x294] sm:$0xff]
      %v640 = vld [vmem:[%s1 + $0x29c] sm:$0xf]
      %v641 = vld [vmem:[%s1 + $0x2a0] sm:$0xff]
      %v642 = vld [vmem:[%s1 + $0x2a8] sm:$0xf]
      %v643 = vld [vmem:[%s1 + $0x2ac] sm:$0xff]
      %v644 = vld [vmem:[%s1 + $0x2b4] sm:$0xf]
      %v645 = vld [vmem:[%s1 + $0x2b8] sm:$0xff]
      %v646 = vld [vmem:[%s1 + $0x2c0] sm:$0xf]
      %v647 = vld [vmem:[%s1 + $0x2c4] sm:$0xff]
      %v648 = vld [vmem:[%s1 + $0x2cc] sm:$0xf]
      %v649 = vld [vmem:[%s1 + $0x2d0] sm:$0xff]
      %v650 = vld [vmem:[%s1 + $0x2d8] sm:$0xf]
      %v651 = vld [vmem:[%s1 + $0x2dc] sm:$0xff]
      %v652 = vld [vmem:[%s1 + $0x2e4] sm:$0xf]
      %v653 = vld [vmem:[%s1 + $0x2e8] sm:$0xff]
      %v654 = vld [vmem:[%s1 + $0x2f0] sm:$0xf]
      %v655 = vld [vmem:[%s1 + $0x2f4] sm:$0xff]
      %v656 = vld [vmem:[%s1 + $0x2fc] sm:$0xf]
      %v657 = vld [vmem:[%s1 + $0x300] sm:$0xff]
      %v658 = vld [vmem:[%s1 + $0x308] sm:$0xf]
      %v659 = vld [vmem:[%s1 + $0x30c] sm:$0xff]
      %v660 = vld [vmem:[%s1 + $0x314] sm:$0xf]
      %v661 = vld [vmem:[%s1 + $0x318] sm:$0xff]
      %v662 = vld [vmem:[%s1 + $0x320] sm:$0xf]
      %v663 = vld [vmem:[%s1 + $0x324] sm:$0xff]
      %v664 = vld [vmem:[%s1 + $0x32c] sm:$0xf]
      %v665 = vld [vmem:[%s1 + $0x330] sm:$0xff]
      %v666 = vld [vmem:[%s1 + $0x338] sm:$0xf]
      %v667 = vld [vmem:[%s1 + $0x33c] sm:$0xff]
      %v668 = vld [vmem:[%s1 + $0x344] sm:$0xf]
      %v669 = vld [vmem:[%s1 + $0x348] sm:$0xff]
      %v670 = vld [vmem:[%s1 + $0x350] sm:$0xf]
      %v671 = vld [vmem:[%s1 + $0x354] sm:$0xff]
      %v672 = vld [vmem:[%s1 + $0x35c] sm:$0xf]
      %v673 = vld [vmem:[%s1 + $0x360] sm:$0xff]
      %v674 = vld [vmem:[%s1 + $0x368] sm:$0xf]
      %v675 = vld [vmem:[%s1 + $0x36c] sm:$0xff]
      %v676 = vld [vmem:[%s1 + $0x374] sm:$0xf]
      %v677 = vld [vmem:[%s1 + $0x378] sm:$0xff]
      %v678 = vld [vmem:[%s1 + $0x380] sm:$0xf]
      %v679 = vld [vmem:[%s1 + $0x384] sm:$0xff]
      %v680 = vld [vmem:[%s1 + $0x38c] sm:$0xf]
      %v681 = vld [vmem:[%s1 + $0x390] sm:$0xff]
      %v682 = vld [vmem:[%s1 + $0x398] sm:$0xf]
      %v683 = vld [vmem:[%s1 + $0x39c] sm:$0xff]
      %v684 = vld [vmem:[%s1 + $0x3a4] sm:$0xf]
      %v685 = vld [vmem:[%s1 + $0x3a8] sm:$0xff]
      %v686 = vld [vmem:[%s1 + $0x3b0] sm:$0xf]
      %v687 = vld [vmem:[%s1 + $0x3b4] sm:$0xff]
      %v688 = vld [vmem:[%s1 + $0x3bc] sm:$0xf]
      %v689 = vld [vmem:[%s1 + $0x3c0] sm:$0xff]
      %v690 = vld [vmem:[%s1 + $0x3c8] sm:$0xf]
      %v691 = vld [vmem:[%s1 + $0x3cc] sm:$0xff]
      %v692 = vld [vmem:[%s1 + $0x3d4] sm:$0xf]
      %v693 = vld [vmem:[%s1 + $0x3d8] sm:$0xff]
      %v694 = vld [vmem:[%s1 + $0x3e0] sm:$0xf]
      %v695 = vld [vmem:[%s1 + $0x3e4] sm:$0xff]
      %v696 = vld [vmem:[%s1 + $0x3ec] sm:$0xf]
      %v697 = vld [vmem:[%s1 + $0x3f0] sm:$0xff]
      %v698 = vld [vmem:[%s1 + $0x3f8] sm:$0xf]
      %v699 = vld [vmem:[%s1 + $0x3fc] sm:$0xff]
      %v700 = vld [vmem:[%s1 + $0x404] sm:$0xf]
      %v701 = vld [vmem:[%s1 + $0x408] sm:$0xff]
      %v702 = vld [vmem:[%s1 + $0x410] sm:$0xf]
      %v703 = vld [vmem:[%s1 + $0x414] sm:$0xff]
      %v704 = vld [vmem:[%s1 + $0x41c] sm:$0xf]
      %v705 = vld [vmem:[%s1 + $0x420] sm:$0xff]
      %v706 = vld [vmem:[%s1 + $0x428] sm:$0xf]
      %v707 = vld [vmem:[%s1 + $0x42c] sm:$0xff]
      %v708 = vld [vmem:[%s1 + $0x434] sm:$0xf]
      %v709 = vld [vmem:[%s1 + $0x438] sm:$0xff]
      %v710 = vld [vmem:[%s1 + $0x440] sm:$0xf]
      %v711 = vld [vmem:[%s1 + $0x444] sm:$0xff]
      %v712 = vld [vmem:[%s1 + $0x44c] sm:$0xf]
      %v713 = vld [vmem:[%s1 + $0x450] sm:$0xff]
      %v714 = vld [vmem:[%s1 + $0x458] sm:$0xf]
      %v715 = vld [vmem:[%s1 + $0x45c] sm:$0xff]
      %v716 = vld [vmem:[%s1 + $0x464] sm:$0xf]
      %v717 = vld [vmem:[%s1 + $0x468] sm:$0xff]
      %v718 = vld [vmem:[%s1 + $0x470] sm:$0xf]
      %v719 = vld [vmem:[%s1 + $0x474] sm:$0xff]
      %v720 = vld [vmem:[%s1 + $0x47c] sm:$0xf]
      %v721 = vld [vmem:[%s1 + $0x480] sm:$0xff]
      %v722 = vld [vmem:[%s1 + $0x488] sm:$0xf]
      %v723 = vld [vmem:[%s1 + $0x48c] sm:$0xff]
      %v724 = vld [vmem:[%s1 + $0x494] sm:$0xf]
      %v725 = vld [vmem:[%s1 + $0x498] sm:$0xff]
      %v726 = vld [vmem:[%s1 + $0x4a0] sm:$0xf]
      %v727 = vld [vmem:[%s1 + $0x4a4] sm:$0xff]
      %v728 = vld [vmem:[%s1 + $0x4ac] sm:$0xf]
      %v729 = vld [vmem:[%s1 + $0x4b0] sm:$0xff]
      %v730 = vld [vmem:[%s1 + $0x4b8] sm:$0xf]
      %v731 = vld [vmem:[%s1 + $0x4bc] sm:$0xff]
      %v732 = vld [vmem:[%s1 + $0x4c4] sm:$0xf]
      %v733 = vld [vmem:[%s1 + $0x4c8] sm:$0xff]
      %v734 = vld [vmem:[%s1 + $0x4d0] sm:$0xf]
      %v735 = vld [vmem:[%s1 + $0x4d4] sm:$0xff]
      %v736 = vld [vmem:[%s1 + $0x4dc] sm:$0xf]
      %v737 = vld [vmem:[%s1 + $0x4e0] sm:$0xff]
      %v738 = vld [vmem:[%s1 + $0x4e8] sm:$0xf]
      %v739 = vld [vmem:[%s1 + $0x4ec] sm:$0xff]
      %v740 = vld [vmem:[%s1 + $0x4f4] sm:$0xf]
      %v741 = vld [vmem:[%s1 + $0x4f8] sm:$0xff]
      %v742 = vld [vmem:[%s1 + $0x500] sm:$0xf]
      %v743 = vld [vmem:[%s1 + $0x504] sm:$0xff]
      %v744 = vld [vmem:[%s1 + $0x50c] sm:$0xf]
      %v745 = vld [vmem:[%s1 + $0x510] sm:$0xff]
      %v746 = vld [vmem:[%s1 + $0x518] sm:$0xf]
      %v747 = vld [vmem:[%s1 + $0x51c] sm:$0xff]
      %v748 = vld [vmem:[%s1 + $0x524] sm:$0xf]
      %v749 = vld [vmem:[%s1 + $0x528] sm:$0xff]
      %v750 = vld [vmem:[%s1 + $0x530] sm:$0xf]
      %v751 = vld [vmem:[%s1 + $0x534] sm:$0xff]
      %v752 = vld [vmem:[%s1 + $0x53c] sm:$0xf]
      %v753 = vld [vmem:[%s1 + $0x540] sm:$0xff]
      %v754 = vld [vmem:[%s1 + $0x548] sm:$0xf]
      %v755 = vld [vmem:[%s1 + $0x54c] sm:$0xff]
      %v756 = vld [vmem:[%s1 + $0x554] sm:$0xf]
      %v757 = vld [vmem:[%s1 + $0x558] sm:$0xff]
      %v758 = vld [vmem:[%s1 + $0x560] sm:$0xf]
      %v759 = vld [vmem:[%s1 + $0x564] sm:$0xff]
      %v760 = vld [vmem:[%s1 + $0x56c] sm:$0xf]
      %v761 = vld [vmem:[%s1 + $0x570] sm:$0xff]
      %v762 = vld [vmem:[%s1 + $0x578] sm:$0xf]
      %v763 = vld [vmem:[%s1 + $0x57c] sm:$0xff]
      %v764 = vld [vmem:[%s1 + $0x584] sm:$0xf]
      %v765 = vld [vmem:[%s1 + $0x588] sm:$0xff]
      %v766 = vld [vmem:[%s1 + $0x590] sm:$0xf]
      %v767 = vld [vmem:[%s1 + $0x594] sm:$0xff]
      %v768 = vld [vmem:[%s1 + $0x59c] sm:$0xf]
      %v769 = vld [vmem:[%s1 + $0x5a0] sm:$0xff]
      %v770 = vld [vmem:[%s1 + $0x5a8] sm:$0xf]
      %v771 = vld [vmem:[%s1 + $0x5ac] sm:$0xff]
      %v772 = vld [vmem:[%s1 + $0x5b4] sm:$0xf]
      %v773 = vld [vmem:[%s1 + $0x5b8] sm:$0xff]
      %v774 = vld [vmem:[%s1 + $0x5c0] sm:$0xf]
      %v775 = vld [vmem:[%s1 + $0x5c4] sm:$0xff]
      %v776 = vld [vmem:[%s1 + $0x5cc] sm:$0xf]
      %v777 = vld [vmem:[%s1 + $0x5d0] sm:$0xff]
      %v778 = vld [vmem:[%s1 + $0x5d8] sm:$0xf]
      %v779 = vld [vmem:[%s1 + $0x5dc] sm:$0xff]
      %v780 = vld [vmem:[%s1 + $0x5e4] sm:$0xf]
      %v781 = vld [vmem:[%s1 + $0x5e8] sm:$0xff]
      %v782 = vld [vmem:[%s1 + $0x5f0] sm:$0xf]
      %v783 = vld [vmem:[%s1 + $0x5f4] sm:$0xff]
      %v784 = vld [vmem:[%s1 + $0x5fc] sm:$0xf]
      %v785 = vld [vmem:[%s1 + $0x600] sm:$0xff]
      %v786 = vld [vmem:[%s1 + $0x608] sm:$0xf]
      %v787 = vld [vmem:[%s1 + $0x60c] sm:$0xff]
      %v788 = vld [vmem:[%s1 + $0x614] sm:$0xf]
      %v1049 = vunpack.c.l.b16 %v529
      %v1050 = vunpack.c.h.b16 %v529
      %v1051 = vunpack.c.l.b16 %v530
      %v1052 = vunpack.c.l.b16 %v531
      %v1053 = vunpack.c.h.b16 %v531
      %v1054 = vunpack.c.l.b16 %v532
      %v1055 = vunpack.c.l.b16 %v533
      %v1056 = vunpack.c.h.b16 %v533
      %v1057 = vunpack.c.l.b16 %v534
      %v1058 = vunpack.c.l.b16 %v535
      %v1059 = vunpack.c.h.b16 %v535
      %v1060 = vunpack.c.l.b16 %v536
      %v1061 = vunpack.c.l.b16 %v537
      %v1062 = vunpack.c.h.b16 %v537
      %v1063 = vunpack.c.l.b16 %v538
      %v1064 = vunpack.c.l.b16 %v539
      %v1065 = vunpack.c.h.b16 %v539
      %v1066 = vunpack.c.l.b16 %v540
      %v1067 = vunpack.c.l.b16 %v541
      %v1068 = vunpack.c.h.b16 %v541
      %v1069 = vunpack.c.l.b16 %v542
      %v1070 = vunpack.c.l.b16 %v543
      %v1071 = vunpack.c.h.b16 %v543
      %v1072 = vunpack.c.l.b16 %v544
      %v1073 = vunpack.c.l.b16 %v545
      %v1074 = vunpack.c.h.b16 %v545
      %v1075 = vunpack.c.l.b16 %v546
      %v1076 = vunpack.c.l.b16 %v547
      %v1077 = vunpack.c.h.b16 %v547
      %v1078 = vunpack.c.l.b16 %v548
      %v1079 = vunpack.c.l.b16 %v549
      %v1080 = vunpack.c.h.b16 %v549
      %v1081 = vunpack.c.l.b16 %v550
      %v1082 = vunpack.c.l.b16 %v551
      %v1083 = vunpack.c.h.b16 %v551
      %v1084 = vunpack.c.l.b16 %v552
      %v1085 = vunpack.c.l.b16 %v553
      %v1086 = vunpack.c.h.b16 %v553
      %v1087 = vunpack.c.l.b16 %v554
      %v1088 = vunpack.c.l.b16 %v555
      %v1089 = vunpack.c.h.b16 %v555
      %v1090 = vunpack.c.l.b16 %v556
      %v1091 = vunpack.c.l.b16 %v557
      %v1092 = vunpack.c.h.b16 %v557
      %v1093 = vunpack.c.l.b16 %v558
      %v1094 = vunpack.c.l.b16 %v559
      %v1095 = vunpack.c.h.b16 %v559
      %v1096 = vunpack.c.l.b16 %v560
      %v1097 = vunpack.c.l.b16 %v561
      %v1098 = vunpack.c.h.b16 %v561
      %v1099 = vunpack.c.l.b16 %v562
      %v1100 = vunpack.c.l.b16 %v563
      %v1101 = vunpack.c.h.b16 %v563
      %v1102 = vunpack.c.l.b16 %v564
      %v1103 = vunpack.c.l.b16 %v565
      %v1104 = vunpack.c.h.b16 %v565
      %v1105 = vunpack.c.l.b16 %v566
      %v1106 = vunpack.c.l.b16 %v567
      %v1107 = vunpack.c.h.b16 %v567
      %v1108 = vunpack.c.l.b16 %v568
      %v1109 = vunpack.c.l.b16 %v569
      %v1110 = vunpack.c.h.b16 %v569
      %v1111 = vunpack.c.l.b16 %v570
      %v1112 = vunpack.c.l.b16 %v571
      %v1113 = vunpack.c.h.b16 %v571
      %v1114 = vunpack.c.l.b16 %v572
      %v1115 = vunpack.c.l.b16 %v573
      %v1116 = vunpack.c.h.b16 %v573
      %v1117 = vunpack.c.l.b16 %v574
      %v1118 = vunpack.c.l.b16 %v575
      %v1119 = vunpack.c.h.b16 %v575
      %v1120 = vunpack.c.l.b16 %v576
      %v1121 = vunpack.c.l.b16 %v577
      %v1122 = vunpack.c.h.b16 %v577
      %v1123 = vunpack.c.l.b16 %v578
      %v1124 = vunpack.c.l.b16 %v579
      %v1125 = vunpack.c.h.b16 %v579
      %v1126 = vunpack.c.l.b16 %v580
      %v1127 = vunpack.c.l.b16 %v581
      %v1128 = vunpack.c.h.b16 %v581
      %v1129 = vunpack.c.l.b16 %v582
      %v1130 = vunpack.c.l.b16 %v583
      %v1131 = vunpack.c.h.b16 %v583
      %v1132 = vunpack.c.l.b16 %v584
      %v1133 = vunpack.c.l.b16 %v585
      %v1134 = vunpack.c.h.b16 %v585
      %v1135 = vunpack.c.l.b16 %v586
      %v1136 = vunpack.c.l.b16 %v587
      %v1137 = vunpack.c.h.b16 %v587
      %v1138 = vunpack.c.l.b16 %v588
      %v1139 = vunpack.c.l.b16 %v589
      %v1140 = vunpack.c.h.b16 %v589
      %v1141 = vunpack.c.l.b16 %v590
      %v1142 = vunpack.c.l.b16 %v591
      %v1143 = vunpack.c.h.b16 %v591
      %v1144 = vunpack.c.l.b16 %v592
      %v1145 = vunpack.c.l.b16 %v593
      %v1146 = vunpack.c.h.b16 %v593
      %v1147 = vunpack.c.l.b16 %v594
      %v1148 = vunpack.c.l.b16 %v595
      %v1149 = vunpack.c.h.b16 %v595
      %v1150 = vunpack.c.l.b16 %v596
      %v1151 = vunpack.c.l.b16 %v597
      %v1152 = vunpack.c.h.b16 %v597
      %v1153 = vunpack.c.l.b16 %v598
      %v1154 = vunpack.c.l.b16 %v599
      %v1155 = vunpack.c.h.b16 %v599
      %v1156 = vunpack.c.l.b16 %v600
      %v1157 = vunpack.c.l.b16 %v601
      %v1158 = vunpack.c.h.b16 %v601
      %v1159 = vunpack.c.l.b16 %v602
      %v1160 = vunpack.c.l.b16 %v603
      %v1161 = vunpack.c.h.b16 %v603
      %v1162 = vunpack.c.l.b16 %v604
      %v1163 = vunpack.c.l.b16 %v605
      %v1164 = vunpack.c.h.b16 %v605
      %v1165 = vunpack.c.l.b16 %v606
      %v1166 = vunpack.c.l.b16 %v607
      %v1167 = vunpack.c.h.b16 %v607
      %v1168 = vunpack.c.l.b16 %v608
      %v1169 = vunpack.c.l.b16 %v609
      %v1170 = vunpack.c.h.b16 %v609
      %v1171 = vunpack.c.l.b16 %v610
      %v1172 = vunpack.c.l.b16 %v611
      %v1173 = vunpack.c.h.b16 %v611
      %v1174 = vunpack.c.l.b16 %v612
      %v1175 = vunpack.c.l.b16 %v613
      %v1176 = vunpack.c.h.b16 %v613
      %v1177 = vunpack.c.l.b16 %v614
      %v1178 = vunpack.c.l.b16 %v615
      %v1179 = vunpack.c.h.b16 %v615
      %v1180 = vunpack.c.l.b16 %v616
      %v1181 = vunpack.c.l.b16 %v617
      %v1182 = vunpack.c.h.b16 %v617
      %v1183 = vunpack.c.l.b16 %v618
      %v1184 = vunpack.c.l.b16 %v619
      %v1185 = vunpack.c.h.b16 %v619
      %v1186 = vunpack.c.l.b16 %v620
      %v1187 = vunpack.c.l.b16 %v621
      %v1188 = vunpack.c.h.b16 %v621
      %v1189 = vunpack.c.l.b16 %v622
      %v1190 = vunpack.c.l.b16 %v623
      %v1191 = vunpack.c.h.b16 %v623
      %v1192 = vunpack.c.l.b16 %v624
      %v1193 = vunpack.c.l.b16 %v625
      %v1194 = vunpack.c.h.b16 %v625
      %v1195 = vunpack.c.l.b16 %v626
      %v1196 = vunpack.c.l.b16 %v627
      %v1197 = vunpack.c.h.b16 %v627
      %v1198 = vunpack.c.l.b16 %v628
      %v1199 = vunpack.c.l.b16 %v629
      %v1200 = vunpack.c.h.b16 %v629
      %v1201 = vunpack.c.l.b16 %v630
      %v1202 = vunpack.c.l.b16 %v631
      %v1203 = vunpack.c.h.b16 %v631
      %v1204 = vunpack.c.l.b16 %v632
      %v1205 = vunpack.c.l.b16 %v633
      %v1206 = vunpack.c.h.b16 %v633
      %v1207 = vunpack.c.l.b16 %v634
      %v1208 = vunpack.c.l.b16 %v635
      %v1209 = vunpack.c.h.b16 %v635
      %v1210 = vunpack.c.l.b16 %v636
      %v1211 = vunpack.c.l.b16 %v637
      %v1212 = vunpack.c.h.b16 %v637
      %v1213 = vunpack.c.l.b16 %v638
      %v1214 = vunpack.c.l.b16 %v639
      %v1215 = vunpack.c.h.b16 %v639
      %v1216 = vunpack.c.l.b16 %v640
      %v1217 = vunpack.c.l.b16 %v641
      %v1218 = vunpack.c.h.b16 %v641
      %v1219 = vunpack.c.l.b16 %v642
      %v1220 = vunpack.c.l.b16 %v643
      %v1221 = vunpack.c.h.b16 %v643
      %v1222 = vunpack.c.l.b16 %v644
      %v1223 = vunpack.c.l.b16 %v645
      %v1224 = vunpack.c.h.b16 %v645
      %v1225 = vunpack.c.l.b16 %v646
      %v1226 = vunpack.c.l.b16 %v647
      %v1227 = vunpack.c.h.b16 %v647
      %v1228 = vunpack.c.l.b16 %v648
      %v1229 = vunpack.c.l.b16 %v649
      %v1230 = vunpack.c.h.b16 %v649
      %v1231 = vunpack.c.l.b16 %v650
      %v1232 = vunpack.c.l.b16 %v651
      %v1233 = vunpack.c.h.b16 %v651
      %v1234 = vunpack.c.l.b16 %v652
      %v1235 = vunpack.c.l.b16 %v653
      %v1236 = vunpack.c.h.b16 %v653
      %v1237 = vunpack.c.l.b16 %v654
      %v1238 = vunpack.c.l.b16 %v655
      %v1239 = vunpack.c.h.b16 %v655
      %v1240 = vunpack.c.l.b16 %v656
      %v1241 = vunpack.c.l.b16 %v657
      %v1242 = vunpack.c.h.b16 %v657
      %v1243 = vunpack.c.l.b16 %v658
      %v1244 = vunpack.c.l.b16 %v659
      %v1245 = vunpack.c.h.b16 %v659
      %v1246 = vunpack.c.l.b16 %v660
      %v1247 = vunpack.c.l.b16 %v661
      %v1248 = vunpack.c.h.b16 %v661
      %v1249 = vunpack.c.l.b16 %v662
      %v1250 = vunpack.c.l.b16 %v663
      %v1251 = vunpack.c.h.b16 %v663
      %v1252 = vunpack.c.l.b16 %v664
      %v1253 = vunpack.c.l.b16 %v665
      %v1254 = vunpack.c.h.b16 %v665
      %v1255 = vunpack.c.l.b16 %v666
      %v1256 = vunpack.c.l.b16 %v667
      %v1257 = vunpack.c.h.b16 %v667
      %v1258 = vunpack.c.l.b16 %v668
      %v1259 = vunpack.c.l.b16 %v669
      %v1260 = vunpack.c.h.b16 %v669
      %v1261 = vunpack.c.l.b16 %v670
      %v1262 = vunpack.c.l.b16 %v671
      %v1263 = vunpack.c.h.b16 %v671
      %v1264 = vunpack.c.l.b16 %v672
      %v1265 = vunpack.c.l.b16 %v673
      %v1266 = vunpack.c.h.b16 %v673
      %v1267 = vunpack.c.l.b16 %v674
      %v1268 = vunpack.c.l.b16 %v675
      %v1269 = vunpack.c.h.b16 %v675
      %v1270 = vunpack.c.l.b16 %v676
      %v1271 = vunpack.c.l.b16 %v677
      %v1272 = vunpack.c.h.b16 %v677
      %v1273 = vunpack.c.l.b16 %v678
      %v1274 = vunpack.c.l.b16 %v679
      %v1275 = vunpack.c.h.b16 %v679
      %v1276 = vunpack.c.l.b16 %v680
      %v1277 = vunpack.c.l.b16 %v681
      %v1278 = vunpack.c.h.b16 %v681
      %v1279 = vunpack.c.l.b16 %v682
      %v1280 = vunpack.c.l.b16 %v683
      %v1281 = vunpack.c.h.b16 %v683
      %v1282 = vunpack.c.l.b16 %v684
      %v1283 = vunpack.c.l.b16 %v685
      %v1284 = vunpack.c.h.b16 %v685
      %v1285 = vunpack.c.l.b16 %v686
      %v1286 = vunpack.c.l.b16 %v687
      %v1287 = vunpack.c.h.b16 %v687
      %v1288 = vunpack.c.l.b16 %v688
      %v1289 = vunpack.c.l.b16 %v689
      %v1290 = vunpack.c.h.b16 %v689
      %v1291 = vunpack.c.l.b16 %v690
      %v1292 = vunpack.c.l.b16 %v691
      %v1293 = vunpack.c.h.b16 %v691
      %v1294 = vunpack.c.l.b16 %v692
      %v1295 = vunpack.c.l.b16 %v693
      %v1296 = vunpack.c.h.b16 %v693
      %v1297 = vunpack.c.l.b16 %v694
      %v1298 = vunpack.c.l.b16 %v695
      %v1299 = vunpack.c.h.b16 %v695
      %v1300 = vunpack.c.l.b16 %v696
      %v1301 = vunpack.c.l.b16 %v697
      %v1302 = vunpack.c.h.b16 %v697
      %v1303 = vunpack.c.l.b16 %v698
      %v1304 = vunpack.c.l.b16 %v699
      %v1305 = vunpack.c.h.b16 %v699
      %v1306 = vunpack.c.l.b16 %v700
      %v1307 = vunpack.c.l.b16 %v701
      %v1308 = vunpack.c.h.b16 %v701
      %v1309 = vunpack.c.l.b16 %v702
      %v1310 = vunpack.c.l.b16 %v703
      %v1311 = vunpack.c.h.b16 %v703
      %v1312 = vunpack.c.l.b16 %v704
      %v1313 = vunpack.c.l.b16 %v705
      %v1314 = vunpack.c.h.b16 %v705
      %v1315 = vunpack.c.l.b16 %v706
      %v1316 = vunpack.c.l.b16 %v707
      %v1317 = vunpack.c.h.b16 %v707
      %v1318 = vunpack.c.l.b16 %v708
      %v1319 = vunpack.c.l.b16 %v709
      %v1320 = vunpack.c.h.b16 %v709
      %v1321 = vunpack.c.l.b16 %v710
      %v1322 = vunpack.c.l.b16 %v711
      %v1323 = vunpack.c.h.b16 %v711
      %v1324 = vunpack.c.l.b16 %v712
      %v1325 = vunpack.c.l.b16 %v713
      %v1326 = vunpack.c.h.b16 %v713
      %v1327 = vunpack.c.l.b16 %v714
      %v1328 = vunpack.c.l.b16 %v715
      %v1329 = vunpack.c.h.b16 %v715
      %v1330 = vunpack.c.l.b16 %v716
      %v1331 = vunpack.c.l.b16 %v717
      %v1332 = vunpack.c.h.b16 %v717
      %v1333 = vunpack.c.l.b16 %v718
      %v1334 = vunpack.c.l.b16 %v719
      %v1335 = vunpack.c.h.b16 %v719
      %v1336 = vunpack.c.l.b16 %v720
      %v1337 = vunpack.c.l.b16 %v721
      %v1338 = vunpack.c.h.b16 %v721
      %v1339 = vunpack.c.l.b16 %v722
      %v1340 = vunpack.c.l.b16 %v723
      %v1341 = vunpack.c.h.b16 %v723
      %v1342 = vunpack.c.l.b16 %v724
      %v1343 = vunpack.c.l.b16 %v725
      %v1344 = vunpack.c.h.b16 %v725
      %v1345 = vunpack.c.l.b16 %v726
      %v1346 = vunpack.c.l.b16 %v727
      %v1347 = vunpack.c.h.b16 %v727
      %v1348 = vunpack.c.l.b16 %v728
      %v1349 = vunpack.c.l.b16 %v729
      %v1350 = vunpack.c.h.b16 %v729
      %v1351 = vunpack.c.l.b16 %v730
      %v1352 = vunpack.c.l.b16 %v731
      %v1353 = vunpack.c.h.b16 %v731
      %v1354 = vunpack.c.l.b16 %v732
      %v1355 = vunpack.c.l.b16 %v733
      %v1356 = vunpack.c.h.b16 %v733
      %v1357 = vunpack.c.l.b16 %v734
      %v1358 = vunpack.c.l.b16 %v735
      %v1359 = vunpack.c.h.b16 %v735
      %v1360 = vunpack.c.l.b16 %v736
      %v1361 = vunpack.c.l.b16 %v737
      %v1362 = vunpack.c.h.b16 %v737
      %v1363 = vunpack.c.l.b16 %v738
      %v1364 = vunpack.c.l.b16 %v739
      %v1365 = vunpack.c.h.b16 %v739
      %v1366 = vunpack.c.l.b16 %v740
      %v1367 = vunpack.c.l.b16 %v741
      %v1368 = vunpack.c.h.b16 %v741
      %v1369 = vunpack.c.l.b16 %v742
      %v1370 = vunpack.c.l.b16 %v743
      %v1371 = vunpack.c.h.b16 %v743
      %v1372 = vunpack.c.l.b16 %v744
      %v1373 = vunpack.c.l.b16 %v745
      %v1374 = vunpack.c.h.b16 %v745
      %v1375 = vunpack.c.l.b16 %v746
      %v1376 = vunpack.c.l.b16 %v747
      %v1377 = vunpack.c.h.b16 %v747
      %v1378 = vunpack.c.l.b16 %v748
      %v1379 = vunpack.c.l.b16 %v749
      %v1380 = vunpack.c.h.b16 %v749
      %v1381 = vunpack.c.l.b16 %v750
      %v1382 = vunpack.c.l.b16 %v751
      %v1383 = vunpack.c.h.b16 %v751
      %v1384 = vunpack.c.l.b16 %v752
      %v1385 = vunpack.c.l.b16 %v753
      %v1386 = vunpack.c.h.b16 %v753
      %v1387 = vunpack.c.l.b16 %v754
      %v1388 = vunpack.c.l.b16 %v755
      %v1389 = vunpack.c.h.b16 %v755
      %v1390 = vunpack.c.l.b16 %v756
      %v1391 = vunpack.c.l.b16 %v757
      %v1392 = vunpack.c.h.b16 %v757
      %v1393 = vunpack.c.l.b16 %v758
      %v1394 = vunpack.c.l.b16 %v759
      %v1395 = vunpack.c.h.b16 %v759
      %v1396 = vunpack.c.l.b16 %v760
      %v1397 = vunpack.c.l.b16 %v761
      %v1398 = vunpack.c.h.b16 %v761
      %v1399 = vunpack.c.l.b16 %v762
      %v1400 = vunpack.c.l.b16 %v763
      %v1401 = vunpack.c.h.b16 %v763
      %v1402 = vunpack.c.l.b16 %v764
      %v1403 = vunpack.c.l.b16 %v765
      %v1404 = vunpack.c.h.b16 %v765
      %v1405 = vunpack.c.l.b16 %v766
      %v1406 = vunpack.c.l.b16 %v767
      %v1407 = vunpack.c.h.b16 %v767
      %v1408 = vunpack.c.l.b16 %v768
      %v1409 = vunpack.c.l.b16 %v769
      %v1410 = vunpack.c.h.b16 %v769
      %v1411 = vunpack.c.l.b16 %v770
      %v1412 = vunpack.c.l.b16 %v771
      %v1413 = vunpack.c.h.b16 %v771
      %v1414 = vunpack.c.l.b16 %v772
      %v1415 = vunpack.c.l.b16 %v773
      %v1416 = vunpack.c.h.b16 %v773
      %v1417 = vunpack.c.l.b16 %v774
      %v1418 = vunpack.c.l.b16 %v775
      %v1419 = vunpack.c.h.b16 %v775
      %v1420 = vunpack.c.l.b16 %v776
      %v1421 = vunpack.c.l.b16 %v777
      %v1422 = vunpack.c.h.b16 %v777
      %v1423 = vunpack.c.l.b16 %v778
      %v1424 = vunpack.c.l.b16 %v779
      %v1425 = vunpack.c.h.b16 %v779
      %v1426 = vunpack.c.l.b16 %v780
      %v1427 = vunpack.c.l.b16 %v781
      %v1428 = vunpack.c.h.b16 %v781
      %v1429 = vunpack.c.l.b16 %v782
      %v1430 = vunpack.c.l.b16 %v783
      %v1431 = vunpack.c.h.b16 %v783
      %v1432 = vunpack.c.l.b16 %v784
      %v1433 = vunpack.c.l.b16 %v785
      %v1434 = vunpack.c.h.b16 %v785
      %v1435 = vunpack.c.l.b16 %v786
      %v1436 = vunpack.c.l.b16 %v787
      %v1437 = vunpack.c.h.b16 %v787
      %v1438 = vunpack.c.l.b16 %v788
      %v1439 = vpack.c.b16 %v1052, %v1049
      %v1440 = vpack.c.b16 %v1053, %v1050
      %v1441 = vpack.c.b16 %v1054, %v1051
      %v1442 = vpack.c.b16 %v1058, %v1055
      %v1443 = vpack.c.b16 %v1059, %v1056
      %v1444 = vpack.c.b16 %v1060, %v1057
      %v1445 = vpack.c.b16 %v1064, %v1061
      %v1446 = vpack.c.b16 %v1065, %v1062
      %v1447 = vpack.c.b16 %v1066, %v1063
      %v1448 = vpack.c.b16 %v1070, %v1067
      %v1449 = vpack.c.b16 %v1071, %v1068
      %v1450 = vpack.c.b16 %v1072, %v1069
      %v1451 = vpack.c.b16 %v1076, %v1073
      %v1452 = vpack.c.b16 %v1077, %v1074
      %v1453 = vpack.c.b16 %v1078, %v1075
      %v1454 = vpack.c.b16 %v1082, %v1079
      %v1455 = vpack.c.b16 %v1083, %v1080
      %v1456 = vpack.c.b16 %v1084, %v1081
      %v1457 = vpack.c.b16 %v1088, %v1085
      %v1458 = vpack.c.b16 %v1089, %v1086
      %v1459 = vpack.c.b16 %v1090, %v1087
      %v1460 = vpack.c.b16 %v1094, %v1091
      %v1461 = vpack.c.b16 %v1095, %v1092
      %v1462 = vpack.c.b16 %v1096, %v1093
      %v1463 = vpack.c.b16 %v1100, %v1097
      %v1464 = vpack.c.b16 %v1101, %v1098
      %v1465 = vpack.c.b16 %v1102, %v1099
      %v1466 = vpack.c.b16 %v1106, %v1103
      %v1467 = vpack.c.b16 %v1107, %v1104
      %v1468 = vpack.c.b16 %v1108, %v1105
      %v1469 = vpack.c.b16 %v1112, %v1109
      %v1470 = vpack.c.b16 %v1113, %v1110
      %v1471 = vpack.c.b16 %v1114, %v1111
      %v1472 = vpack.c.b16 %v1118, %v1115
      %v1473 = vpack.c.b16 %v1119, %v1116
      %v1474 = vpack.c.b16 %v1120, %v1117
      %v1475 = vpack.c.b16 %v1124, %v1121
      %v1476 = vpack.c.b16 %v1125, %v1122
      %v1477 = vpack.c.b16 %v1126, %v1123
      %v1478 = vpack.c.b16 %v1130, %v1127
      %v1479 = vpack.c.b16 %v1131, %v1128
      %v1480 = vpack.c.b16 %v1132, %v1129
      %v1481 = vpack.c.b16 %v1136, %v1133
      %v1482 = vpack.c.b16 %v1137, %v1134
      %v1483 = vpack.c.b16 %v1138, %v1135
      %v1484 = vpack.c.b16 %v1142, %v1139
      %v1485 = vpack.c.b16 %v1143, %v1140
      %v1486 = vpack.c.b16 %v1144, %v1141
      %v1487 = vpack.c.b16 %v1148, %v1145
      %v1488 = vpack.c.b16 %v1149, %v1146
      %v1489 = vpack.c.b16 %v1150, %v1147
      %v1490 = vpack.c.b16 %v1154, %v1151
      %v1491 = vpack.c.b16 %v1155, %v1152
      %v1492 = vpack.c.b16 %v1156, %v1153
      %v1493 = vpack.c.b16 %v1160, %v1157
      %v1494 = vpack.c.b16 %v1161, %v1158
      %v1495 = vpack.c.b16 %v1162, %v1159
      %v1496 = vpack.c.b16 %v1166, %v1163
      %v1497 = vpack.c.b16 %v1167, %v1164
      %v1498 = vpack.c.b16 %v1168, %v1165
      %v1499 = vpack.c.b16 %v1172, %v1169
      %v1500 = vpack.c.b16 %v1173, %v1170
      %v1501 = vpack.c.b16 %v1174, %v1171
      %v1502 = vpack.c.b16 %v1178, %v1175
      %v1503 = vpack.c.b16 %v1179, %v1176
      %v1504 = vpack.c.b16 %v1180, %v1177
      %v1505 = vpack.c.b16 %v1184, %v1181
      %v1506 = vpack.c.b16 %v1185, %v1182
      %v1507 = vpack.c.b16 %v1186, %v1183
      %v1508 = vpack.c.b16 %v1190, %v1187
      %v1509 = vpack.c.b16 %v1191, %v1188
      %v1510 = vpack.c.b16 %v1192, %v1189
      %v1511 = vpack.c.b16 %v1196, %v1193
      %v1512 = vpack.c.b16 %v1197, %v1194
      %v1513 = vpack.c.b16 %v1198, %v1195
      %v1514 = vpack.c.b16 %v1202, %v1199
      %v1515 = vpack.c.b16 %v1203, %v1200
      %v1516 = vpack.c.b16 %v1204, %v1201
      %v1517 = vpack.c.b16 %v1208, %v1205
      %v1518 = vpack.c.b16 %v1209, %v1206
      %v1519 = vpack.c.b16 %v1210, %v1207
      %v1520 = vpack.c.b16 %v1214, %v1211
      %v1521 = vpack.c.b16 %v1215, %v1212
      %v1522 = vpack.c.b16 %v1216, %v1213
      %v1523 = vpack.c.b16 %v1220, %v1217
      %v1524 = vpack.c.b16 %v1221, %v1218
      %v1525 = vpack.c.b16 %v1222, %v1219
      %v1526 = vpack.c.b16 %v1226, %v1223
      %v1527 = vpack.c.b16 %v1227, %v1224
      %v1528 = vpack.c.b16 %v1228, %v1225
      %v1529 = vpack.c.b16 %v1232, %v1229
      %v1530 = vpack.c.b16 %v1233, %v1230
      %v1531 = vpack.c.b16 %v1234, %v1231
      %v1532 = vpack.c.b16 %v1238, %v1235
      %v1533 = vpack.c.b16 %v1239, %v1236
      %v1534 = vpack.c.b16 %v1240, %v1237
      %v1535 = vpack.c.b16 %v1244, %v1241
      %v1536 = vpack.c.b16 %v1245, %v1242
      %v1537 = vpack.c.b16 %v1246, %v1243
      %v1538 = vpack.c.b16 %v1250, %v1247
      %v1539 = vpack.c.b16 %v1251, %v1248
      %v1540 = vpack.c.b16 %v1252, %v1249
      %v1541 = vpack.c.b16 %v1256, %v1253
      %v1542 = vpack.c.b16 %v1257, %v1254
      %v1543 = vpack.c.b16 %v1258, %v1255
      %v1544 = vpack.c.b16 %v1262, %v1259
      %v1545 = vpack.c.b16 %v1263, %v1260
      %v1546 = vpack.c.b16 %v1264, %v1261
      %v1547 = vpack.c.b16 %v1268, %v1265
      %v1548 = vpack.c.b16 %v1269, %v1266
      %v1549 = vpack.c.b16 %v1270, %v1267
      %v1550 = vpack.c.b16 %v1274, %v1271
      %v1551 = vpack.c.b16 %v1275, %v1272
      %v1552 = vpack.c.b16 %v1276, %v1273
      %v1553 = vpack.c.b16 %v1280, %v1277
      %v1554 = vpack.c.b16 %v1281, %v1278
      %v1555 = vpack.c.b16 %v1282, %v1279
      %v1556 = vpack.c.b16 %v1286, %v1283
      %v1557 = vpack.c.b16 %v1287, %v1284
      %v1558 = vpack.c.b16 %v1288, %v1285
      %v1559 = vpack.c.b16 %v1292, %v1289
      %v1560 = vpack.c.b16 %v1293, %v1290
      %v1561 = vpack.c.b16 %v1294, %v1291
      %v1562 = vpack.c.b16 %v1298, %v1295
      %v1563 = vpack.c.b16 %v1299, %v1296
      %v1564 = vpack.c.b16 %v1300, %v1297
      %v1565 = vpack.c.b16 %v1304, %v1301
      %v1566 = vpack.c.b16 %v1305, %v1302
      %v1567 = vpack.c.b16 %v1306, %v1303
      %v1568 = vpack.c.b16 %v1310, %v1307
      %v1569 = vpack.c.b16 %v1311, %v1308
      %v1570 = vpack.c.b16 %v1312, %v1309
      %v1571 = vpack.c.b16 %v1316, %v1313
      %v1572 = vpack.c.b16 %v1317, %v1314
      %v1573 = vpack.c.b16 %v1318, %v1315
      %v1574 = vpack.c.b16 %v1322, %v1319
      %v1575 = vpack.c.b16 %v1323, %v1320
      %v1576 = vpack.c.b16 %v1324, %v1321
      %v1577 = vpack.c.b16 %v1328, %v1325
      %v1578 = vpack.c.b16 %v1329, %v1326
      %v1579 = vpack.c.b16 %v1330, %v1327
      %v1580 = vpack.c.b16 %v1334, %v1331
      %v1581 = vpack.c.b16 %v1335, %v1332
      %v1582 = vpack.c.b16 %v1336, %v1333
      %v1583 = vpack.c.b16 %v1340, %v1337
      %v1584 = vpack.c.b16 %v1341, %v1338
      %v1585 = vpack.c.b16 %v1342, %v1339
      %v1586 = vpack.c.b16 %v1346, %v1343
      %v1587 = vpack.c.b16 %v1347, %v1344
      %v1588 = vpack.c.b16 %v1348, %v1345
      %v1589 = vpack.c.b16 %v1352, %v1349
      %v1590 = vpack.c.b16 %v1353, %v1350
      %v1591 = vpack.c.b16 %v1354, %v1351
      %v1592 = vpack.c.b16 %v1358, %v1355
      %v1593 = vpack.c.b16 %v1359, %v1356
      %v1594 = vpack.c.b16 %v1360, %v1357
      %v1595 = vpack.c.b16 %v1364, %v1361
      %v1596 = vpack.c.b16 %v1365, %v1362
      %v1597 = vpack.c.b16 %v1366, %v1363
      %v1598 = vpack.c.b16 %v1370, %v1367
      %v1599 = vpack.c.b16 %v1371, %v1368
      %v1600 = vpack.c.b16 %v1372, %v1369
      %v1601 = vpack.c.b16 %v1376, %v1373
      %v1602 = vpack.c.b16 %v1377, %v1374
      %v1603 = vpack.c.b16 %v1378, %v1375
      %v1604 = vpack.c.b16 %v1382, %v1379
      %v1605 = vpack.c.b16 %v1383, %v1380
      %v1606 = vpack.c.b16 %v1384, %v1381
      %v1607 = vpack.c.b16 %v1388, %v1385
      %v1608 = vpack.c.b16 %v1389, %v1386
      %v1609 = vpack.c.b16 %v1390, %v1387
      %v1610 = vpack.c.b16 %v1394, %v1391
      %v1611 = vpack.c.b16 %v1395, %v1392
      %v1612 = vpack.c.b16 %v1396, %v1393
      %v1613 = vpack.c.b16 %v1400, %v1397
      %v1614 = vpack.c.b16 %v1401, %v1398
      %v1615 = vpack.c.b16 %v1402, %v1399
      %v1616 = vpack.c.b16 %v1406, %v1403
      %v1617 = vpack.c.b16 %v1407, %v1404
      %v1618 = vpack.c.b16 %v1408, %v1405
      %v1619 = vpack.c.b16 %v1412, %v1409
      %v1620 = vpack.c.b16 %v1413, %v1410
      %v1621 = vpack.c.b16 %v1414, %v1411
      %v1622 = vpack.c.b16 %v1418, %v1415
      %v1623 = vpack.c.b16 %v1419, %v1416
      %v1624 = vpack.c.b16 %v1420, %v1417
      %v1625 = vpack.c.b16 %v1424, %v1421
      %v1626 = vpack.c.b16 %v1425, %v1422
      %v1627 = vpack.c.b16 %v1426, %v1423
      %v1628 = vpack.c.b16 %v1430, %v1427
      %v1629 = vpack.c.b16 %v1431, %v1428
      %v1630 = vpack.c.b16 %v1432, %v1429
      %v1631 = vpack.c.b16 %v1436, %v1433
      %v1632 = vpack.c.b16 %v1437, %v1434
      %v1633 = vpack.c.b16 %v1438, %v1435
      %vm1829 = vcmask 130048
      %v1831 = vsel %vm1829, %v510, 0
      %v1834 = vsel %vm1829, %v519, 0
      %v1837 = vsel %vm1829, %v528, 0
      %1839 = vmatprep.subr.bf16.mxu0 %v1440
      %1840 = vmatpush1.bf16.msra.mxu0 %v1439
      %1841 = vmatprep.subr.bf16.mxu0 %v1443
      %1842 = vmatpush1.bf16.msra.mxu0 %v1442
      %1843 = vmatprep.subr.bf16.mxu0 %v1446
      %1844 = vmatpush1.bf16.msra.mxu0 %v1445
      %1845 = vmatprep.subr.bf16.mxu0 %v1449
      %1846 = vmatpush1.bf16.msra.mxu0 %v1448
      %1847 = vmatprep.subr.bf16.mxu0 %v1452
      %1848 = vmatpush1.bf16.msra.mxu0 %v1451
      %1849 = vmatprep.subr.bf16.mxu0 %v1455
      %1850 = vmatpush1.bf16.msra.mxu0 %v1454
      %1851 = vmatprep.subr.bf16.mxu0 %v1458
      %1852 = vmatpush1.bf16.msra.mxu0 %v1457
      %1853 = vmatprep.subr.bf16.mxu0 %v1461
      %1854 = vmatpush1.bf16.msra.mxu0 %v1460
      %1855 = vmatprep.subr.bf16.mxu0 %v1464
      %1856 = vmatpush1.bf16.msra.mxu0 %v1463
      %1857 = vmatprep.subr.bf16.mxu0 %v1467
      %1858 = vmatpush1.bf16.msra.mxu0 %v1466
      %1859 = vmatprep.subr.bf16.mxu0 %v1470
      %1860 = vmatpush1.bf16.msra.mxu0 %v1469
      %1861 = vmatprep.subr.bf16.mxu0 %v1473
      %1862 = vmatpush1.bf16.msra.mxu0 %v1472
      %1863 = vmatprep.subr.bf16.mxu0 %v1476
      %1864 = vmatpush1.bf16.msra.mxu0 %v1475
      %1865 = vmatprep.subr.bf16.mxu0 %v1479
      %1866 = vmatpush1.bf16.msra.mxu0 %v1478
      %1867 = vmatprep.subr.bf16.mxu0 %v1482
      %1868 = vmatpush1.bf16.msra.mxu0 %v1481
      %1869 = vmatprep.subr.bf16.mxu0 %v1485
      %1870 = vmatpush1.bf16.msra.mxu0 %v1484
      %1871 = vmatprep.mubr.bf16.mxu0 %v503
      %1872 = vmatmul.mubr.bf16.gmra.mrb[0].mxu0 %v502
      %v1873 = vpop.f32.mrb[0].mxu0
      %v1874 = vadd.f32 0.0, %v1873
      %v1875 = vpop.f32.mrb[0].mxu0
      %v1876 = vadd.f32 0.0, %v1875
      %v1877 = vpop.f32.mrb[0].mxu0
      %v1878 = vadd.f32 0.0, %v1877
      %v1879 = vpop.f32.mrb[0].mxu0
      %v1880 = vadd.f32 0.0, %v1879
      %1881 = vmatprep.mubr.bf16.mxu0 %v512
      %1882 = vmatmul.mubr.bf16.gmra.mrb[0].mxu0 %v511
      %v1883 = vpop.f32.mrb[0].mxu0
      %v1884 = vadd.f32 0.0, %v1883
      %v1885 = vpop.f32.mrb[0].mxu0
      %v1886 = vadd.f32 0.0, %v1885
      %v1887 = vpop.f32.mrb[0].mxu0
      %v1888 = vadd.f32 0.0, %v1887
      %v1889 = vpop.f32.mrb[0].mxu0
      %v1890 = vadd.f32 0.0, %v1889
      %1891 = vmatprep.mubr.bf16.mxu0 %v521
      %1892 = vmatmul.mubr.bf16.gmra.mrb[0].mxu0 %v520
      %v1893 = vpop.f32.mrb[0].mxu0
      %v1894 = vadd.f32 0.0, %v1893
      %v1895 = vpop.f32.mrb[0].mxu0
      %v1896 = vadd.f32 0.0, %v1895
      %v1897 = vpop.f32.mrb[0].mxu0
      %v1898 = vadd.f32 0.0, %v1897
      %v1899 = vpop.f32.mrb[0].mxu0
      %v1900 = vadd.f32 0.0, %v1899
      %1901 = vdwg.mxu0
      %1902 = vmatprep.subr.bf16.mxu0 %v1488
      %1903 = vmatpush1.bf16.msra.mxu0 %v1487
      %1904 = vmatprep.subr.bf16.mxu0 %v1491
      %1905 = vmatpush1.bf16.msra.mxu0 %v1490
      %1906 = vmatprep.subr.bf16.mxu0 %v1494
      %1907 = vmatpush1.bf16.msra.mxu0 %v1493
      %1908 = vmatprep.subr.bf16.mxu0 %v1497
      %1909 = vmatpush1.bf16.msra.mxu0 %v1496
      %1910 = vmatprep.subr.bf16.mxu0 %v1500
      %1911 = vmatpush1.bf16.msra.mxu0 %v1499
      %1912 = vmatprep.subr.bf16.mxu0 %v1503
      %1913 = vmatpush1.bf16.msra.mxu0 %v1502
      %1914 = vmatprep.subr.bf16.mxu0 %v1506
      %1915 = vmatpush1.bf16.msra.mxu0 %v1505
      %1916 = vmatprep.subr.bf16.mxu0 %v1509
      %1917 = vmatpush1.bf16.msra.mxu0 %v1508
      %1918 = vmatprep.subr.bf16.mxu0 %v1512
      %1919 = vmatpush1.bf16.msra.mxu0 %v1511
      %1920 = vmatprep.subr.bf16.mxu0 %v1515
      %1921 = vmatpush1.bf16.msra.mxu0 %v1514
      %1922 = vmatprep.subr.bf16.mxu0 %v1518
      %1923 = vmatpush1.bf16.msra.mxu0 %v1517
      %1924 = vmatprep.subr.bf16.mxu0 %v1521
      %1925 = vmatpush1.bf16.msra.mxu0 %v1520
      %1926 = vmatprep.subr.bf16.mxu0 %v1524
      %1927 = vmatpush1.bf16.msra.mxu0 %v1523
      %1928 = vmatprep.subr.bf16.mxu0 %v1527
      %1929 = vmatpush1.bf16.msra.mxu0 %v1526
      %1930 = vmatprep.subr.bf16.mxu0 %v1530
      %1931 = vmatpush1.bf16.msra.mxu0 %v1529
      %1932 = vmatprep.subr.bf16.mxu0 %v1533
      %1933 = vmatpush1.bf16.msra.mxu0 %v1532
      %1934 = vmatprep.mubr.bf16.mxu0 %v505
      %1935 = vmatmul.mubr.bf16.gmra.mrb[0].mxu0 %v504
      %v1936 = vpop.f32.mrb[0].mxu0
      %v1937 = vadd.f32 %v1874, %v1936
      %v1938 = vpop.f32.mrb[0].mxu0
      %v1939 = vadd.f32 %v1876, %v1938
      %v1940 = vpop.f32.mrb[0].mxu0
      %v1941 = vadd.f32 %v1878, %v1940
      %v1942 = vpop.f32.mrb[0].mxu0
      %v1943 = vadd.f32 %v1880, %v1942
      %1944 = vmatprep.mubr.bf16.mxu0 %v514
      %1945 = vmatmul.mubr.bf16.gmra.mrb[0].mxu0 %v513
      %v1946 = vpop.f32.mrb[0].mxu0
      %v1947 = vadd.f32 %v1884, %v1946
      %v1948 = vpop.f32.mrb[0].mxu0
      %v1949 = vadd.f32 %v1886, %v1948
      %v1950 = vpop.f32.mrb[0].mxu0
      %v1951 = vadd.f32 %v1888, %v1950
      %v1952 = vpop.f32.mrb[0].mxu0
      %v1953 = vadd.f32 %v1890, %v1952
      %1954 = vmatprep.mubr.bf16.mxu0 %v523
      %1955 = vmatmul.mubr.bf16.gmra.mrb[0].mxu0 %v522
      %v1956 = vpop.f32.mrb[0].mxu0
      %v1957 = vadd.f32 %v1894, %v1956
      %v1958 = vpop.f32.mrb[0].mxu0
      %v1959 = vadd.f32 %v1896, %v1958
      %v1960 = vpop.f32.mrb[0].mxu0
      %v1961 = vadd.f32 %v1898, %v1960
      %v1962 = vpop.f32.mrb[0].mxu0
      %v1963 = vadd.f32 %v1900, %v1962
      %1964 = vdwg.mxu0
      %1965 = vmatprep.subr.bf16.mxu0 %v1536
      %1966 = vmatpush1.bf16.msra.mxu0 %v1535
      %1967 = vmatprep.subr.bf16.mxu0 %v1539
      %1968 = vmatpush1.bf16.msra.mxu0 %v1538
      %1969 = vmatprep.subr.bf16.mxu0 %v1542
      %1970 = vmatpush1.bf16.msra.mxu0 %v1541
      %1971 = vmatprep.subr.bf16.mxu0 %v1545
      %1972 = vmatpush1.bf16.msra.mxu0 %v1544
      %1973 = vmatprep.subr.bf16.mxu0 %v1548
      %1974 = vmatpush1.bf16.msra.mxu0 %v1547
      %1975 = vmatprep.subr.bf16.mxu0 %v1551
      %1976 = vmatpush1.bf16.msra.mxu0 %v1550
      %1977 = vmatprep.subr.bf16.mxu0 %v1554
      %1978 = vmatpush1.bf16.msra.mxu0 %v1553
      %1979 = vmatprep.subr.bf16.mxu0 %v1557
      %1980 = vmatpush1.bf16.msra.mxu0 %v1556
      %1981 = vmatprep.subr.bf16.mxu0 %v1560
      %1982 = vmatpush1.bf16.msra.mxu0 %v1559
      %1983 = vmatprep.subr.bf16.mxu0 %v1563
      %1984 = vmatpush1.bf16.msra.mxu0 %v1562
      %1985 = vmatprep.subr.bf16.mxu0 %v1566
      %1986 = vmatpush1.bf16.msra.mxu0 %v1565
      %1987 = vmatprep.subr.bf16.mxu0 %v1569
      %1988 = vmatpush1.bf16.msra.mxu0 %v1568
      %1989 = vmatprep.subr.bf16.mxu0 %v1572
      %1990 = vmatpush1.bf16.msra.mxu0 %v1571
      %1991 = vmatprep.subr.bf16.mxu0 %v1575
      %1992 = vmatpush1.bf16.msra.mxu0 %v1574
      %1993 = vmatprep.subr.bf16.mxu0 %v1578
      %1994 = vmatpush1.bf16.msra.mxu0 %v1577
      %1995 = vmatprep.subr.bf16.mxu0 %v1581
      %1996 = vmatpush1.bf16.msra.mxu0 %v1580
      %1997 = vmatprep.mubr.bf16.mxu0 %v507
      %1998 = vmatmul.mubr.bf16.gmra.mrb[0].mxu0 %v506
      %v1999 = vpop.f32.mrb[0].mxu0
      %v2000 = vadd.f32 %v1937, %v1999
      %v2001 = vpop.f32.mrb[0].mxu0
      %v2002 = vadd.f32 %v1939, %v2001
      %v2003 = vpop.f32.mrb[0].mxu0
      %v2004 = vadd.f32 %v1941, %v2003
      %v2005 = vpop.f32.mrb[0].mxu0
      %v2006 = vadd.f32 %v1943, %v2005
      %2007 = vmatprep.mubr.bf16.mxu0 %v516
      %2008 = vmatmul.mubr.bf16.gmra.mrb[0].mxu0 %v515
      %v2009 = vpop.f32.mrb[0].mxu0
      %v2010 = vadd.f32 %v1947, %v2009
      %v2011 = vpop.f32.mrb[0].mxu0
      %v2012 = vadd.f32 %v1949, %v2011
      %v2013 = vpop.f32.mrb[0].mxu0
      %v2014 = vadd.f32 %v1951, %v2013
      %v2015 = vpop.f32.mrb[0].mxu0
      %v2016 = vadd.f32 %v1953, %v2015
      %2017 = vmatprep.mubr.bf16.mxu0 %v525
      %2018 = vmatmul.mubr.bf16.gmra.mrb[0].mxu0 %v524
      %v2019 = vpop.f32.mrb[0].mxu0
      %v2020 = vadd.f32 %v1957, %v2019
      %v2021 = vpop.f32.mrb[0].mxu0
      %v2022 = vadd.f32 %v1959, %v2021
      %v2023 = vpop.f32.mrb[0].mxu0
      %v2024 = vadd.f32 %v1961, %v2023
      %v2025 = vpop.f32.mrb[0].mxu0
      %v2026 = vadd.f32 %v1963, %v2025
      %2027 = vdwg.mxu0
      %2028 = vmatprep.subr.bf16.mxu0 %v1584
      %2029 = vmatpush1.bf16.msra.mxu0 %v1583
      %2030 = vmatprep.subr.bf16.mxu0 %v1587
      %2031 = vmatpush1.bf16.msra.mxu0 %v1586
      %2032 = vmatprep.subr.bf16.mxu0 %v1590
      %2033 = vmatpush1.bf16.msra.mxu0 %v1589
      %2034 = vmatprep.subr.bf16.mxu0 %v1593
      %2035 = vmatpush1.bf16.msra.mxu0 %v1592
      %2036 = vmatprep.subr.bf16.mxu0 %v1596
      %2037 = vmatpush1.bf16.msra.mxu0 %v1595
      %2038 = vmatprep.subr.bf16.mxu0 %v1599
      %2039 = vmatpush1.bf16.msra.mxu0 %v1598
      %2040 = vmatprep.subr.bf16.mxu0 %v1602
      %2041 = vmatpush1.bf16.msra.mxu0 %v1601
      %2042 = vmatprep.subr.bf16.mxu0 %v1605
      %2043 = vmatpush1.bf16.msra.mxu0 %v1604
      %2044 = vmatprep.subr.bf16.mxu0 %v1608
      %2045 = vmatpush1.bf16.msra.mxu0 %v1607
      %2046 = vmatprep.subr.bf16.mxu0 %v1611
      %2047 = vmatpush1.bf16.msra.mxu0 %v1610
      %2048 = vmatprep.subr.bf16.mxu0 %v1614
      %2049 = vmatpush1.bf16.msra.mxu0 %v1613
      %2050 = vmatprep.subr.bf16.mxu0 %v1617
      %2051 = vmatpush1.bf16.msra.mxu0 %v1616
      %2052 = vmatprep.subr.bf16.mxu0 %v1620
      %2053 = vmatpush1.bf16.msra.mxu0 %v1619
      %2054 = vmatprep.subr.bf16.mxu0 %v1623
      %2055 = vmatpush1.bf16.msra.mxu0 %v1622
      %2056 = vmatprep.subr.bf16.mxu0 %v1626
      %2057 = vmatpush1.bf16.msra.mxu0 %v1625
      %2058 = vmatprep.subr.bf16.mxu0 %v1629
      %2059 = vmatpush1.bf16.msra.mxu0 %v1628
      %2060 = vmatprep.mubr.bf16.mxu0 %v509
      %2061 = vmatmul.mubr.bf16.gmra.mrb[0].mxu0 %v508
      %v2062 = vpop.f32.mrb[0].mxu0
      %v2063 = vadd.f32 %v2000, %v2062
      %v2064 = vpop.f32.mrb[0].mxu0
      %v2065 = vadd.f32 %v2002, %v2064
      %v2066 = vpop.f32.mrb[0].mxu0
      %v2067 = vadd.f32 %v2004, %v2066
      %v2068 = vpop.f32.mrb[0].mxu0
      %v2069 = vadd.f32 %v2006, %v2068
      %2070 = vmatprep.mubr.bf16.mxu0 %v518
      %2071 = vmatmul.mubr.bf16.gmra.mrb[0].mxu0 %v517
      %v2072 = vpop.f32.mrb[0].mxu0
      %v2073 = vadd.f32 %v2010, %v2072
      %v2074 = vpop.f32.mrb[0].mxu0
      %v2075 = vadd.f32 %v2012, %v2074
      %v2076 = vpop.f32.mrb[0].mxu0
      %v2077 = vadd.f32 %v2014, %v2076
      %v2078 = vpop.f32.mrb[0].mxu0
      %v2079 = vadd.f32 %v2016, %v2078
      %2080 = vmatprep.mubr.bf16.mxu0 %v527
      %2081 = vmatmul.mubr.bf16.gmra.mrb[0].mxu0 %v526
      %v2082 = vpop.f32.mrb[0].mxu0
      %v2083 = vadd.f32 %v2020, %v2082
      %v2084 = vpop.f32.mrb[0].mxu0
      %v2085 = vadd.f32 %v2022, %v2084
      %v2086 = vpop.f32.mrb[0].mxu0
      %v2087 = vadd.f32 %v2024, %v2086
      %v2088 = vpop.f32.mrb[0].mxu0
      %v2089 = vadd.f32 %v2026, %v2088
      %2090 = vdwg.mxu0
      %2091 = vmatprep.subr.bf16.mxu0 %v1632
      %2092 = vmatpush1.bf16.msra.mxu0 %v1631
      %2093 = vmatprep.subr.bf16.mxu0 0
      %2094 = vmatpush1.bf16.msra.mxu0 0
      %2095 = vmatprep.subr.bf16.mxu0 0
      %2096 = vmatpush1.bf16.msra.mxu0 0
      %2097 = vmatprep.subr.bf16.mxu0 0
      %2098 = vmatpush1.bf16.msra.mxu0 0
      %2099 = vmatprep.subr.bf16.mxu0 0
      %2100 = vmatpush1.bf16.msra.mxu0 0
      %2101 = vmatprep.subr.bf16.mxu0 0
      %2102 = vmatpush1.bf16.msra.mxu0 0
      %2103 = vmatprep.subr.bf16.mxu0 0
      %2104 = vmatpush1.bf16.msra.mxu0 0
      %2105 = vmatprep.subr.bf16.mxu0 0
      %2106 = vmatpush1.bf16.msra.mxu0 0
      %2107 = vmatprep.subr.bf16.mxu0 0
      %2108 = vmatpush1.bf16.msra.mxu0 0
      %2109 = vmatprep.subr.bf16.mxu0 0
      %2110 = vmatpush1.bf16.msra.mxu0 0
      %2111 = vmatprep.subr.bf16.mxu0 0
      %2112 = vmatpush1.bf16.msra.mxu0 0
      %2113 = vmatprep.subr.bf16.mxu0 0
      %2114 = vmatpush1.bf16.msra.mxu0 0
      %2115 = vmatprep.subr.bf16.mxu0 0
      %2116 = vmatpush1.bf16.msra.mxu0 0
      %2117 = vmatprep.subr.bf16.mxu0 0
      %2118 = vmatpush1.bf16.msra.mxu0 0
      %2119 = vmatprep.subr.bf16.mxu0 0
      %2120 = vmatpush1.bf16.msra.mxu0 0
      %2121 = vmatprep.subr.bf16.mxu0 0
      %2122 = vmatpush1.bf16.msra.mxu0 0
      %2123 = vmatprep.mubr.bf16.mxu0 0
      %2124 = vmatmul.mubr.bf16.gmra.mrb[0].mxu0 %v1831
      %v2125 = vpop.f32.mrb[0].mxu0
      %v2126 = vadd.f32 %v2063, %v2125
      %v2127 = vpop.f32.mrb[0].mxu0
      %v2128 = vadd.f32 %v2065, %v2127
      %v2129 = vpop.f32.mrb[0].mxu0
      %v2130 = vadd.f32 %v2067, %v2129
      %v2131 = vpop.f32.mrb[0].mxu0
      %v2132 = vadd.f32 %v2069, %v2131
      %2133 = vmatprep.mubr.bf16.mxu0 0
      %2134 = vmatmul.mubr.bf16.gmra.mrb[0].mxu0 %v1834
      %v2135 = vpop.f32.mrb[0].mxu0
      %v2136 = vadd.f32 %v2073, %v2135
      %v2137 = vpop.f32.mrb[0].mxu0
      %v2138 = vadd.f32 %v2075, %v2137
      %v2139 = vpop.f32.mrb[0].mxu0
      %v2140 = vadd.f32 %v2077, %v2139
      %v2141 = vpop.f32.mrb[0].mxu0
      %v2142 = vadd.f32 %v2079, %v2141
      %2143 = vmatprep.mubr.bf16.mxu0 0
      %2144 = vmatmul.mubr.bf16.gmra.mrb[0].mxu0 %v1837
      %v2145 = vpop.f32.mrb[0].mxu0
      %v2146 = vadd.f32 %v2083, %v2145
      %v2147 = vpop.f32.mrb[0].mxu0
      %v2148 = vadd.f32 %v2085, %v2147
      %v2149 = vpop.f32.mrb[0].mxu0
      %v2150 = vadd.f32 %v2087, %v2149
      %v2151 = vpop.f32.mrb[0].mxu0
      %v2152 = vadd.f32 %v2089, %v2151
      %2153 = vdwg.mxu0
      %2154 = vmatprep.subr.bf16.mxu0 0
      %2155 = vmatpush1.bf16.msra.mxu0 %v1441
      %2156 = vmatprep.subr.bf16.mxu0 0
      %2157 = vmatpush1.bf16.msra.mxu0 %v1444
      %2158 = vmatprep.subr.bf16.mxu0 0
      %2159 = vmatpush1.bf16.msra.mxu0 %v1447
      %2160 = vmatprep.subr.bf16.mxu0 0
      %2161 = vmatpush1.bf16.msra.mxu0 %v1450
      %2162 = vmatprep.subr.bf16.mxu0 0
      %2163 = vmatpush1.bf16.msra.mxu0 %v1453
      %2164 = vmatprep.subr.bf16.mxu0 0
      %2165 = vmatpush1.bf16.msra.mxu0 %v1456
      %2166 = vmatprep.subr.bf16.mxu0 0
      %2167 = vmatpush1.bf16.msra.mxu0 %v1459
      %2168 = vmatprep.subr.bf16.mxu0 0
      %2169 = vmatpush1.bf16.msra.mxu0 %v1462
      %2170 = vmatprep.subr.bf16.mxu0 0
      %2171 = vmatpush1.bf16.msra.mxu0 %v1465
      %2172 = vmatprep.subr.bf16.mxu0 0
      %2173 = vmatpush1.bf16.msra.mxu0 %v1468
      %2174 = vmatprep.subr.bf16.mxu0 0
      %2175 = vmatpush1.bf16.msra.mxu0 %v1471
      %2176 = vmatprep.subr.bf16.mxu0 0
      %2177 = vmatpush1.bf16.msra.mxu0 %v1474
      %2178 = vmatprep.subr.bf16.mxu0 0
      %2179 = vmatpush1.bf16.msra.mxu0 %v1477
      %2180 = vmatprep.subr.bf16.mxu0 0
      %2181 = vmatpush1.bf16.msra.mxu0 %v1480
      %2182 = vmatprep.subr.bf16.mxu0 0
      %2183 = vmatpush1.bf16.msra.mxu0 %v1483
      %2184 = vmatprep.subr.bf16.mxu0 0
      %2185 = vmatpush1.bf16.msra.mxu0 %v1486
      %2186 = vmatprep.mubr.bf16.mxu0 %v503
      %2187 = vmatmul.mubr.bf16.gmra.mrb[0].mxu0 %v502
      %v2188 = vpop.f32.mrb[0].mxu0
      %v2189 = vadd.f32 0.0, %v2188
      %v2190 = vpop.f32.mrb[0].mxu0
      %v2191 = vpop.f32.mrb[0].mxu0
      %v2192 = vadd.f32 0.0, %v2191
      %v2193 = vpop.f32.mrb[0].mxu0
      %2194 = vmatprep.mubr.bf16.mxu0 %v512
      %2195 = vmatmul.mubr.bf16.gmra.mrb[0].mxu0 %v511
      %v2196 = vpop.f32.mrb[0].mxu0
      %v2197 = vadd.f32 0.0, %v2196
      %v2198 = vpop.f32.mrb[0].mxu0
      %v2199 = vpop.f32.mrb[0].mxu0
      %v2200 = vadd.f32 0.0, %v2199
      %v2201 = vpop.f32.mrb[0].mxu0
      %2202 = vmatprep.mubr.bf16.mxu0 %v521
      %2203 = vmatmul.mubr.bf16.gmra.mrb[0].mxu0 %v520
      %v2204 = vpop.f32.mrb[0].mxu0
      %v2205 = vadd.f32 0.0, %v2204
      %v2206 = vpop.f32.mrb[0].mxu0
      %v2207 = vpop.f32.mrb[0].mxu0
      %v2208 = vadd.f32 0.0, %v2207
      %v2209 = vpop.f32.mrb[0].mxu0
      %2210 = vdwg.mxu0
      %2211 = vmatprep.subr.bf16.mxu0 0
      %2212 = vmatpush1.bf16.msra.mxu0 %v1489
      %2213 = vmatprep.subr.bf16.mxu0 0
      %2214 = vmatpush1.bf16.msra.mxu0 %v1492
      %2215 = vmatprep.subr.bf16.mxu0 0
      %2216 = vmatpush1.bf16.msra.mxu0 %v1495
      %2217 = vmatprep.subr.bf16.mxu0 0
      %2218 = vmatpush1.bf16.msra.mxu0 %v1498
      %2219 = vmatprep.subr.bf16.mxu0 0
      %2220 = vmatpush1.bf16.msra.mxu0 %v1501
      %2221 = vmatprep.subr.bf16.mxu0 0
      %2222 = vmatpush1.bf16.msra.mxu0 %v1504
      %2223 = vmatprep.subr.bf16.mxu0 0
      %2224 = vmatpush1.bf16.msra.mxu0 %v1507
      %2225 = vmatprep.subr.bf16.mxu0 0
      %2226 = vmatpush1.bf16.msra.mxu0 %v1510
      %2227 = vmatprep.subr.bf16.mxu0 0
      %2228 = vmatpush1.bf16.msra.mxu0 %v1513
      %2229 = vmatprep.subr.bf16.mxu0 0
      %2230 = vmatpush1.bf16.msra.mxu0 %v1516
      %2231 = vmatprep.subr.bf16.mxu0 0
      %2232 = vmatpush1.bf16.msra.mxu0 %v1519
      %2233 = vmatprep.subr.bf16.mxu0 0
      %2234 = vmatpush1.bf16.msra.mxu0 %v1522
      %2235 = vmatprep.subr.bf16.mxu0 0
      %2236 = vmatpush1.bf16.msra.mxu0 %v1525
      %2237 = vmatprep.subr.bf16.mxu0 0
      %2238 = vmatpush1.bf16.msra.mxu0 %v1528
      %2239 = vmatprep.subr.bf16.mxu0 0
      %2240 = vmatpush1.bf16.msra.mxu0 %v1531
      %2241 = vmatprep.subr.bf16.mxu0 0
      %2242 = vmatpush1.bf16.msra.mxu0 %v1534
      %2243 = vmatprep.mubr.bf16.mxu0 %v505
      %2244 = vmatmul.mubr.bf16.gmra.mrb[0].mxu0 %v504
      %v2245 = vpop.f32.mrb[0].mxu0
      %v2246 = vadd.f32 %v2189, %v2245
      %v2247 = vpop.f32.mrb[0].mxu0
      %v2248 = vpop.f32.mrb[0].mxu0
      %v2249 = vadd.f32 %v2192, %v2248
      %v2250 = vpop.f32.mrb[0].mxu0
      %2251 = vmatprep.mubr.bf16.mxu0 %v514
      %2252 = vmatmul.mubr.bf16.gmra.mrb[0].mxu0 %v513
      %v2253 = vpop.f32.mrb[0].mxu0
      %v2254 = vadd.f32 %v2197, %v2253
      %v2255 = vpop.f32.mrb[0].mxu0
      %v2256 = vpop.f32.mrb[0].mxu0
      %v2257 = vadd.f32 %v2200, %v2256
      %v2258 = vpop.f32.mrb[0].mxu0
      %2259 = vmatprep.mubr.bf16.mxu0 %v523
      %2260 = vmatmul.mubr.bf16.gmra.mrb[0].mxu0 %v522
      %v2261 = vpop.f32.mrb[0].mxu0
      %v2262 = vadd.f32 %v2205, %v2261
      %v2263 = vpop.f32.mrb[0].mxu0
      %v2264 = vpop.f32.mrb[0].mxu0
      %v2265 = vadd.f32 %v2208, %v2264
      %v2266 = vpop.f32.mrb[0].mxu0
      %2267 = vdwg.mxu0
      %2268 = vmatprep.subr.bf16.mxu0 0
      %2269 = vmatpush1.bf16.msra.mxu0 %v1537
      %2270 = vmatprep.subr.bf16.mxu0 0
      %2271 = vmatpush1.bf16.msra.mxu0 %v1540
      %2272 = vmatprep.subr.bf16.mxu0 0
      %2273 = vmatpush1.bf16.msra.mxu0 %v1543
      %2274 = vmatprep.subr.bf16.mxu0 0
      %2275 = vmatpush1.bf16.msra.mxu0 %v1546
      %2276 = vmatprep.subr.bf16.mxu0 0
      %2277 = vmatpush1.bf16.msra.mxu0 %v1549
      %2278 = vmatprep.subr.bf16.mxu0 0
      %2279 = vmatpush1.bf16.msra.mxu0 %v1552
      %2280 = vmatprep.subr.bf16.mxu0 0
      %2281 = vmatpush1.bf16.msra.mxu0 %v1555
      %2282 = vmatprep.subr.bf16.mxu0 0
      %2283 = vmatpush1.bf16.msra.mxu0 %v1558
      %2284 = vmatprep.subr.bf16.mxu0 0
      %2285 = vmatpush1.bf16.msra.mxu0 %v1561
      %2286 = vmatprep.subr.bf16.mxu0 0
      %2287 = vmatpush1.bf16.msra.mxu0 %v1564
      %2288 = vmatprep.subr.bf16.mxu0 0
      %2289 = vmatpush1.bf16.msra.mxu0 %v1567
      %2290 = vmatprep.subr.bf16.mxu0 0
      %2291 = vmatpush1.bf16.msra.mxu0 %v1570
      %2292 = vmatprep.subr.bf16.mxu0 0
      %2293 = vmatpush1.bf16.msra.mxu0 %v1573
      %2294 = vmatprep.subr.bf16.mxu0 0
      %2295 = vmatpush1.bf16.msra.mxu0 %v1576
      %2296 = vmatprep.subr.bf16.mxu0 0
      %2297 = vmatpush1.bf16.msra.mxu0 %v1579
      %2298 = vmatprep.subr.bf16.mxu0 0
      %2299 = vmatpush1.bf16.msra.mxu0 %v1582
      %2300 = vmatprep.mubr.bf16.mxu0 %v507
      %2301 = vmatmul.mubr.bf16.gmra.mrb[0].mxu0 %v506
      %v2302 = vpop.f32.mrb[0].mxu0
      %v2303 = vadd.f32 %v2246, %v2302
      %v2304 = vpop.f32.mrb[0].mxu0
      %v2305 = vpop.f32.mrb[0].mxu0
      %v2306 = vadd.f32 %v2249, %v2305
      %v2307 = vpop.f32.mrb[0].mxu0
      %2308 = vmatprep.mubr.bf16.mxu0 %v516
      %2309 = vmatmul.mubr.bf16.gmra.mrb[0].mxu0 %v515
      %v2310 = vpop.f32.mrb[0].mxu0
      %v2311 = vadd.f32 %v2254, %v2310
      %v2312 = vpop.f32.mrb[0].mxu0
      %v2313 = vpop.f32.mrb[0].mxu0
      %v2314 = vadd.f32 %v2257, %v2313
      %v2315 = vpop.f32.mrb[0].mxu0
      %2316 = vmatprep.mubr.bf16.mxu0 %v525
      %2317 = vmatmul.mubr.bf16.gmra.mrb[0].mxu0 %v524
      %v2318 = vpop.f32.mrb[0].mxu0
      %v2319 = vadd.f32 %v2262, %v2318
      %v2320 = vpop.f32.mrb[0].mxu0
      %v2321 = vpop.f32.mrb[0].mxu0
      %v2322 = vadd.f32 %v2265, %v2321
      %v2323 = vpop.f32.mrb[0].mxu0
      %2324 = vdwg.mxu0
      %2325 = vmatprep.subr.bf16.mxu0 0
      %2326 = vmatpush1.bf16.msra.mxu0 %v1585
      %2327 = vmatprep.subr.bf16.mxu0 0
      %2328 = vmatpush1.bf16.msra.mxu0 %v1588
      %2329 = vmatprep.subr.bf16.mxu0 0
      %2330 = vmatpush1.bf16.msra.mxu0 %v1591
      %2331 = vmatprep.subr.bf16.mxu0 0
      %2332 = vmatpush1.bf16.msra.mxu0 %v1594
      %2333 = vmatprep.subr.bf16.mxu0 0
      %2334 = vmatpush1.bf16.msra.mxu0 %v1597
      %2335 = vmatprep.subr.bf16.mxu0 0
      %2336 = vmatpush1.bf16.msra.mxu0 %v1600
      %2337 = vmatprep.subr.bf16.mxu0 0
      %2338 = vmatpush1.bf16.msra.mxu0 %v1603
      %2339 = vmatprep.subr.bf16.mxu0 0
      %2340 = vmatpush1.bf16.msra.mxu0 %v1606
      %2341 = vmatprep.subr.bf16.mxu0 0
      %2342 = vmatpush1.bf16.msra.mxu0 %v1609
      %2343 = vmatprep.subr.bf16.mxu0 0
      %2344 = vmatpush1.bf16.msra.mxu0 %v1612
      %2345 = vmatprep.subr.bf16.mxu0 0
      %2346 = vmatpush1.bf16.msra.mxu0 %v1615
      %2347 = vmatprep.subr.bf16.mxu0 0
      %2348 = vmatpush1.bf16.msra.mxu0 %v1618
      %2349 = vmatprep.subr.bf16.mxu0 0
      %2350 = vmatpush1.bf16.msra.mxu0 %v1621
      %2351 = vmatprep.subr.bf16.mxu0 0
      %2352 = vmatpush1.bf16.msra.mxu0 %v1624
      %2353 = vmatprep.subr.bf16.mxu0 0
      %2354 = vmatpush1.bf16.msra.mxu0 %v1627
      %2355 = vmatprep.subr.bf16.mxu0 0
      %2356 = vmatpush1.bf16.msra.mxu0 %v1630
      %2357 = vmatprep.mubr.bf16.mxu0 %v509
      %2358 = vmatmul.mubr.bf16.gmra.mrb[0].mxu0 %v508
      %v2359 = vpop.f32.mrb[0].mxu0
      %v2360 = vadd.f32 %v2303, %v2359
      %v2361 = vpop.f32.mrb[0].mxu0
      %v2362 = vpop.f32.mrb[0].mxu0
      %v2363 = vadd.f32 %v2306, %v2362
      %v2364 = vpop.f32.mrb[0].mxu0
      %2365 = vmatprep.mubr.bf16.mxu0 %v518
      %2366 = vmatmul.mubr.bf16.gmra.mrb[0].mxu0 %v517
      %v2367 = vpop.f32.mrb[0].mxu0
      %v2368 = vadd.f32 %v2311, %v2367
      %v2369 = vpop.f32.mrb[0].mxu0
      %v2370 = vpop.f32.mrb[0].mxu0
      %v2371 = vadd.f32 %v2314, %v2370
      %v2372 = vpop.f32.mrb[0].mxu0
      %2373 = vmatprep.mubr.bf16.mxu0 %v527
      %2374 = vmatmul.mubr.bf16.gmra.mrb[0].mxu0 %v526
      %v2375 = vpop.f32.mrb[0].mxu0
      %v2376 = vadd.f32 %v2319, %v2375
      %v2377 = vpop.f32.mrb[0].mxu0
      %v2378 = vpop.f32.mrb[0].mxu0
      %v2379 = vadd.f32 %v2322, %v2378
      %v2380 = vpop.f32.mrb[0].mxu0
      %2381 = vdwg.mxu0
      %2382 = vmatprep.subr.bf16.mxu0 0
      %2383 = vmatpush1.bf16.msra.mxu0 %v1633
      %2384 = vmatprep.subr.bf16.mxu0 0
      %2385 = vmatpush1.bf16.msra.mxu0 0
      %2386 = vmatprep.subr.bf16.mxu0 0
      %2387 = vmatpush1.bf16.msra.mxu0 0
      %2388 = vmatprep.subr.bf16.mxu0 0
      %2389 = vmatpush1.bf16.msra.mxu0 0
      %2390 = vmatprep.subr.bf16.mxu0 0
      %2391 = vmatpush1.bf16.msra.mxu0 0
      %2392 = vmatprep.subr.bf16.mxu0 0
      %2393 = vmatpush1.bf16.msra.mxu0 0
      %2394 = vmatprep.subr.bf16.mxu0 0
      %2395 = vmatpush1.bf16.msra.mxu0 0
      %2396 = vmatprep.subr.bf16.mxu0 0
      %2397 = vmatpush1.bf16.msra.mxu0 0
      %2398 = vmatprep.subr.bf16.mxu0 0
      %2399 = vmatpush1.bf16.msra.mxu0 0
      %2400 = vmatprep.subr.bf16.mxu0 0
      %2401 = vmatpush1.bf16.msra.mxu0 0
      %2402 = vmatprep.subr.bf16.mxu0 0
      %2403 = vmatpush1.bf16.msra.mxu0 0
      %2404 = vmatprep.subr.bf16.mxu0 0
      %2405 = vmatpush1.bf16.msra.mxu0 0
      %2406 = vmatprep.subr.bf16.mxu0 0
      %2407 = vmatpush1.bf16.msra.mxu0 0
      %2408 = vmatprep.subr.bf16.mxu0 0
      %2409 = vmatpush1.bf16.msra.mxu0 0
      %2410 = vmatprep.subr.bf16.mxu0 0
      %2411 = vmatpush1.bf16.msra.mxu0 0
      %2412 = vmatprep.subr.bf16.mxu0 0
      %2413 = vmatpush1.bf16.msra.mxu0 0
      %2414 = vmatprep.mubr.bf16.mxu0 0
      %2415 = vmatmul.mubr.bf16.gmra.mrb[0].mxu0 %v1831
      %v2416 = vpop.f32.mrb[0].mxu0
      %v2417 = vadd.f32 %v2360, %v2416
      %v2418 = vpop.f32.mrb[0].mxu0
      %v2419 = vpop.f32.mrb[0].mxu0
      %v2420 = vadd.f32 %v2363, %v2419
      %v2421 = vpop.f32.mrb[0].mxu0
      %2422 = vmatprep.mubr.bf16.mxu0 0
      %2423 = vmatmul.mubr.bf16.gmra.mrb[0].mxu0 %v1834
      %v2424 = vpop.f32.mrb[0].mxu0
      %v2425 = vadd.f32 %v2368, %v2424
      %v2426 = vpop.f32.mrb[0].mxu0
      %v2427 = vpop.f32.mrb[0].mxu0
      %v2428 = vadd.f32 %v2371, %v2427
      %v2429 = vpop.f32.mrb[0].mxu0
      %2430 = vmatprep.mubr.bf16.mxu0 0
      %2431 = vmatmul.mubr.bf16.gmra.mrb[0].mxu0 %v1837
      %v2432 = vpop.f32.mrb[0].mxu0
      %v2433 = vadd.f32 %v2376, %v2432
      %v2434 = vpop.f32.mrb[0].mxu0
      %v2435 = vpop.f32.mrb[0].mxu0
      %v2436 = vadd.f32 %v2379, %v2435
      %v2437 = vpop.f32.mrb[0].mxu0
      %2438 = vdwg.mxu0
      %v2439 = vpack.c.bf16 %v2130, %v2126
      %v2440 = vpack.c.bf16 %v2132, %v2128
      %v2441 = vpack.c.bf16 %v2420, %v2417
      %v2442 = vpack.c.bf16 %v2140, %v2136
      %v2443 = vpack.c.bf16 %v2142, %v2138
      %v2444 = vpack.c.bf16 %v2428, %v2425
      %v2445 = vpack.c.bf16 %v2150, %v2146
      %v2446 = vpack.c.bf16 %v2152, %v2148
      %v2447 = vpack.c.bf16 %v2436, %v2433
      %v2448 = vld [vmem:[%s3] sm:$0xff]
      %v2449 = vld [vmem:[%s3 + $0x8] sm:$0xff]
      %v2450 = vld [vmem:[%s3 + $0x10] sm:$0xff]
      %v2451 = vld [vmem:[%s3 + $0x18] sm:$0xff]
      %v2452 = vld [vmem:[%s3 + $0x20] sm:$0xff]
      %v2453 = vld [vmem:[%s3 + $0x28] sm:$0xff]
      %v2454 = vld [vmem:[%s3 + $0x30] sm:$0xff]
      %v2455 = vld [vmem:[%s3 + $0x38] sm:$0xff]
      %v2456 = vld [vmem:[%s3 + $0x40] sm:$0xff]
      %v2457 = vld [vmem:[%s3 + $0x48] sm:$0xff]
      %v2458 = vld [vmem:[%s3 + $0x50] sm:$0xff]
      %v2459 = vld [vmem:[%s3 + $0x58] sm:$0xff]
      %v2460 = vld [vmem:[%s3 + $0x60] sm:$0xff]
      %v2461 = vld [vmem:[%s3 + $0x68] sm:$0xff]
      %v2462 = vld [vmem:[%s3 + $0x70] sm:$0xff]
      %v2463 = vld [vmem:[%s3 + $0x78] sm:$0xff]
      %v2464 = vld [vmem:[%s3 + $0x80] sm:$0xff]
      %v2465 = vld [vmem:[%s3 + $0x88] sm:$0xff]
      %v2466 = vld [vmem:[%s2] sm:$0xf]
      %v2467 = vld [vmem:[%s2 + $0x4] sm:$0xf]
      %v2468 = vld [vmem:[%s2 + $0x8] sm:$0xf]
      %v2469 = vld [vmem:[%s2 + $0xc] sm:$0xf]
      %v2470 = vld [vmem:[%s2 + $0x10] sm:$0xf]
      %v2471 = vld [vmem:[%s2 + $0x14] sm:$0xf]
      %v2478 = vunpack.c.l.b16 %v2466
      %v2479 = vunpack.c.l.b16 %v2467
      %v2480 = vunpack.c.l.b16 %v2468
      %v2481 = vunpack.c.l.b16 %v2469
      %v2482 = vunpack.c.l.b16 %v2470
      %v2483 = vunpack.c.l.b16 %v2471
      %v2484 = vpack.c.b16 %v2479, %v2478
      %v2485 = vpack.c.b16 %v2481, %v2480
      %v2486 = vpack.c.b16 %v2483, %v2482
      %vm2487 = vcmask 392192
      %v2489 = vsel %vm2487, %v2484, 0
      %v2492 = vsel %vm2487, %v2485, 0
      %v2495 = vsel %vm2487, %v2486, 0
      %2497 = vmatprep.subr.bf16.mxu0 %v2440
      %2498 = vmatpush1.bf16.msra.mxu0 %v2439
      %2499 = vmatprep.subr.bf16.mxu0 %v2443
      %2500 = vmatpush1.bf16.msra.mxu0 %v2442
      %2501 = vmatprep.subr.bf16.mxu0 %v2446
      %2502 = vmatpush1.bf16.msra.mxu0 %v2445
      %2503 = vmatprep.subr.bf16.mxu0 0
      %2504 = vmatpush1.bf16.msra.mxu0 0
      %2505 = vmatprep.subr.bf16.mxu0 0
      %2506 = vmatpush1.bf16.msra.mxu0 0
      %2507 = vmatprep.subr.bf16.mxu0 0
      %2508 = vmatpush1.bf16.msra.mxu0 0
      %2509 = vmatprep.subr.bf16.mxu0 0
      %2510 = vmatpush1.bf16.msra.mxu0 0
      %2511 = vmatprep.subr.bf16.mxu0 0
      %2512 = vmatpush1.bf16.msra.mxu0 0
      %2513 = vmatprep.subr.bf16.mxu0 0
      %2514 = vmatpush1.bf16.msra.mxu0 0
      %2515 = vmatprep.subr.bf16.mxu0 0
      %2516 = vmatpush1.bf16.msra.mxu0 0
      %2517 = vmatprep.subr.bf16.mxu0 0
      %2518 = vmatpush1.bf16.msra.mxu0 0
      %2519 = vmatprep.subr.bf16.mxu0 0
      %2520 = vmatpush1.bf16.msra.mxu0 0
      %2521 = vmatprep.subr.bf16.mxu0 0
      %2522 = vmatpush1.bf16.msra.mxu0 0
      %2523 = vmatprep.subr.bf16.mxu0 0
      %2524 = vmatpush1.bf16.msra.mxu0 0
      %2525 = vmatprep.subr.bf16.mxu0 0
      %2526 = vmatpush1.bf16.msra.mxu0 0
      %2527 = vmatprep.subr.bf16.mxu0 0
      %2528 = vmatpush1.bf16.msra.mxu0 0
      %2529 = vmatprep.mubr.bf16.mxu0 0
      %2530 = vmatmul.mubr.bf16.gmra.mrb[0].mxu0 %v2489
      %v2531 = vpop.f32.mrb[0].mxu0
      %v2532 = vadd.f32 0.0, %v2531
      %v2533 = vpop.f32.mrb[0].mxu0
      %v2534 = vadd.f32 0.0, %v2533
      %v2535 = vpop.f32.mrb[0].mxu0
      %v2536 = vadd.f32 0.0, %v2535
      %v2537 = vpop.f32.mrb[0].mxu0
      %v2538 = vadd.f32 0.0, %v2537
      %2539 = vmatprep.mubr.bf16.mxu0 0
      %2540 = vmatmul.mubr.bf16.gmra.mrb[0].mxu0 %v2492
      %v2541 = vpop.f32.mrb[0].mxu0
      %v2542 = vadd.f32 0.0, %v2541
      %v2543 = vpop.f32.mrb[0].mxu0
      %v2544 = vadd.f32 0.0, %v2543
      %v2545 = vpop.f32.mrb[0].mxu0
      %v2546 = vadd.f32 0.0, %v2545
      %v2547 = vpop.f32.mrb[0].mxu0
      %v2548 = vadd.f32 0.0, %v2547
      %2549 = vmatprep.mubr.bf16.mxu0 0
      %2550 = vmatmul.mubr.bf16.gmra.mrb[0].mxu0 %v2495
      %v2551 = vpop.f32.mrb[0].mxu0
      %v2552 = vadd.f32 0.0, %v2551
      %v2553 = vpop.f32.mrb[0].mxu0
      %v2554 = vadd.f32 0.0, %v2553
      %v2555 = vpop.f32.mrb[0].mxu0
      %v2556 = vadd.f32 0.0, %v2555
      %v2557 = vpop.f32.mrb[0].mxu0
      %v2558 = vadd.f32 0.0, %v2557
      %2559 = vdwg.mxu0
      %2560 = vmatprep.subr.bf16.mxu0 0
      %2561 = vmatpush1.bf16.msra.mxu0 %v2441
      %2562 = vmatprep.subr.bf16.mxu0 0
      %2563 = vmatpush1.bf16.msra.mxu0 %v2444
      %2564 = vmatprep.subr.bf16.mxu0 0
      %2565 = vmatpush1.bf16.msra.mxu0 %v2447
      %2566 = vmatprep.subr.bf16.mxu0 0
      %2567 = vmatpush1.bf16.msra.mxu0 0
      %2568 = vmatprep.subr.bf16.mxu0 0
      %2569 = vmatpush1.bf16.msra.mxu0 0
      %2570 = vmatprep.subr.bf16.mxu0 0
      %2571 = vmatpush1.bf16.msra.mxu0 0
      %2572 = vmatprep.subr.bf16.mxu0 0
      %2573 = vmatpush1.bf16.msra.mxu0 0
      %2574 = vmatprep.subr.bf16.mxu0 0
      %2575 = vmatpush1.bf16.msra.mxu0 0
      %2576 = vmatprep.subr.bf16.mxu0 0
      %2577 = vmatpush1.bf16.msra.mxu0 0
      %2578 = vmatprep.subr.bf16.mxu0 0
      %2579 = vmatpush1.bf16.msra.mxu0 0
      %2580 = vmatprep.subr.bf16.mxu0 0
      %2581 = vmatpush1.bf16.msra.mxu0 0
      %2582 = vmatprep.subr.bf16.mxu0 0
      %2583 = vmatpush1.bf16.msra.mxu0 0
      %2584 = vmatprep.subr.bf16.mxu0 0
      %2585 = vmatpush1.bf16.msra.mxu0 0
      %2586 = vmatprep.subr.bf16.mxu0 0
      %2587 = vmatpush1.bf16.msra.mxu0 0
      %2588 = vmatprep.subr.bf16.mxu0 0
      %2589 = vmatpush1.bf16.msra.mxu0 0
      %2590 = vmatprep.subr.bf16.mxu0 0
      %2591 = vmatpush1.bf16.msra.mxu0 0
      %2592 = vmatprep.mubr.bf16.mxu0 0
      %2593 = vmatmul.mubr.bf16.gmra.mrb[0].mxu0 %v2489
      %v2594 = vpop.f32.mrb[0].mxu0
      %v2595 = vadd.f32 0.0, %v2594
      %v2596 = vpop.f32.mrb[0].mxu0
      %v2597 = vpop.f32.mrb[0].mxu0
      %v2598 = vadd.f32 0.0, %v2597
      %v2599 = vpop.f32.mrb[0].mxu0
      %2600 = vmatprep.mubr.bf16.mxu0 0
      %2601 = vmatmul.mubr.bf16.gmra.mrb[0].mxu0 %v2492
      %v2602 = vpop.f32.mrb[0].mxu0
      %v2603 = vadd.f32 0.0, %v2602
      %v2604 = vpop.f32.mrb[0].mxu0
      %v2605 = vpop.f32.mrb[0].mxu0
      %v2606 = vadd.f32 0.0, %v2605
      %v2607 = vpop.f32.mrb[0].mxu0
      %2608 = vmatprep.mubr.bf16.mxu0 0
      %2609 = vmatmul.mubr.bf16.gmra.mrb[0].mxu0 %v2495
      %v2610 = vpop.f32.mrb[0].mxu0
      %v2611 = vadd.f32 0.0, %v2610
      %v2612 = vpop.f32.mrb[0].mxu0
      %v2613 = vpop.f32.mrb[0].mxu0
      %v2614 = vadd.f32 0.0, %v2613
      %v2615 = vpop.f32.mrb[0].mxu0
      %2616 = vdwg.mxu0
      %v2617 = vadd.f32 %v2448, %v2532
      %v2618 = vadd.f32 %v2449, %v2534
      %v2619 = vadd.f32 %v2450, %v2595
      %v2620 = vadd.f32 %v2451, %v2536
      %v2621 = vadd.f32 %v2452, %v2538
      %v2622 = vadd.f32 %v2453, %v2598
      %v2623 = vadd.f32 %v2454, %v2542
      %v2624 = vadd.f32 %v2455, %v2544
      %v2625 = vadd.f32 %v2456, %v2603
      %v2626 = vadd.f32 %v2457, %v2546
      %v2627 = vadd.f32 %v2458, %v2548
      %v2628 = vadd.f32 %v2459, %v2606
      %v2629 = vadd.f32 %v2460, %v2552
      %v2630 = vadd.f32 %v2461, %v2554
      %v2631 = vadd.f32 %v2462, %v2611
      %v2632 = vadd.f32 %v2463, %v2556
      %v2633 = vadd.f32 %v2464, %v2558
      %v2634 = vadd.f32 %v2465, %v2614
      %v2635 = vtanh.pop %v2617
      %v2636 = vtanh.pop %v2618
      %v2637 = vtanh.pop %v2619
      %v2638 = vtanh.pop %v2620
      %v2639 = vtanh.pop %v2621
      %v2640 = vtanh.pop %v2622
      %v2641 = vtanh.pop %v2623
      %v2642 = vtanh.pop %v2624
      %v2643 = vtanh.pop %v2625
      %v2644 = vtanh.pop %v2626
      %v2645 = vtanh.pop %v2627
      %v2646 = vtanh.pop %v2628
      %v2647 = vtanh.pop %v2629
      %v2648 = vtanh.pop %v2630
      %v2649 = vtanh.pop %v2631
      %v2650 = vtanh.pop %v2632
      %v2651 = vtanh.pop %v2633
      %v2652 = vtanh.pop %v2634
      %v2653 = vpack.c.bf16 %v2638, %v2635
      %v2654 = vpack.c.bf16 %v2639, %v2636
      %v2655 = vpack.c.bf16 %v2640, %v2637
      %v2656 = vpack.c.bf16 %v2644, %v2641
      %v2657 = vpack.c.bf16 %v2645, %v2642
      %v2658 = vpack.c.bf16 %v2646, %v2643
      %v2659 = vpack.c.bf16 %v2650, %v2647
      %v2660 = vpack.c.bf16 %v2651, %v2648
      %v2661 = vpack.c.bf16 %v2652, %v2649
      %v2662 = vld [vmem:[%s4] sm:$0xff]
      %v2663 = vld [vmem:[%s4 + $0x8] sm:$0xff]
      %v2664 = vld [vmem:[%s4 + $0x10] sm:$0xff]
      %v2665 = vld [vmem:[%s4 + $0x18] sm:$0xff]
      %v2666 = vld [vmem:[%s4 + $0x20] sm:$0xf]
      %v2667 = vld [vmem:[%s4 + $0x24] sm:$0xff]
      %v2668 = vld [vmem:[%s4 + $0x2c] sm:$0xff]
      %v2669 = vld [vmem:[%s4 + $0x34] sm:$0xff]
      %v2670 = vld [vmem:[%s4 + $0x3c] sm:$0xff]
      %v2671 = vld [vmem:[%s4 + $0x44] sm:$0xf]
      %v2672 = vld [vmem:[%s4 + $0x48] sm:$0xff]
      %v2673 = vld [vmem:[%s4 + $0x50] sm:$0xff]
      %v2674 = vld [vmem:[%s4 + $0x58] sm:$0xff]
      %v2675 = vld [vmem:[%s4 + $0x60] sm:$0xff]
      %v2676 = vld [vmem:[%s4 + $0x68] sm:$0xf]
      %v2677 = vld [vmem:[%s4 + $0x6c] sm:$0xff]
      %v2678 = vld [vmem:[%s4 + $0x74] sm:$0xff]
      %v2679 = vld [vmem:[%s4 + $0x7c] sm:$0xff]
      %v2680 = vld [vmem:[%s4 + $0x84] sm:$0xff]
      %v2681 = vld [vmem:[%s4 + $0x8c] sm:$0xf]
      %v2682 = vld [vmem:[%s4 + $0x90] sm:$0xff]
      %v2683 = vld [vmem:[%s4 + $0x98] sm:$0xff]
      %v2684 = vld [vmem:[%s4 + $0xa0] sm:$0xff]
      %v2685 = vld [vmem:[%s4 + $0xa8] sm:$0xff]
      %v2686 = vld [vmem:[%s4 + $0xb0] sm:$0xf]
      %v2687 = vld [vmem:[%s4 + $0xb4] sm:$0xff]
      %v2688 = vld [vmem:[%s4 + $0xbc] sm:$0xff]
      %v2689 = vld [vmem:[%s4 + $0xc4] sm:$0xff]
      %v2690 = vld [vmem:[%s4 + $0xcc] sm:$0xff]
      %v2691 = vld [vmem:[%s4 + $0xd4] sm:$0xf]
      %v2692 = vld [vmem:[%s4 + $0xd8] sm:$0xff]
      %v2693 = vld [vmem:[%s4 + $0xe0] sm:$0xff]
      %v2694 = vld [vmem:[%s4 + $0xe8] sm:$0xff]
      %v2695 = vld [vmem:[%s4 + $0xf0] sm:$0xff]
      %v2696 = vld [vmem:[%s4 + $0xf8] sm:$0xf]
      %v2697 = vld [vmem:[%s4 + $0xfc] sm:$0xff]
      %v2698 = vld [vmem:[%s4 + $0x104] sm:$0xff]
      %v2699 = vld [vmem:[%s4 + $0x10c] sm:$0xff]
      %v2700 = vld [vmem:[%s4 + $0x114] sm:$0xff]
      %v2701 = vld [vmem:[%s4 + $0x11c] sm:$0xf]
      %v2702 = vld [vmem:[%s4 + $0x120] sm:$0xff]
      %v2703 = vld [vmem:[%s4 + $0x128] sm:$0xff]
      %v2704 = vld [vmem:[%s4 + $0x130] sm:$0xff]
      %v2705 = vld [vmem:[%s4 + $0x138] sm:$0xff]
      %v2706 = vld [vmem:[%s4 + $0x140] sm:$0xf]
      %v2707 = vld [vmem:[%s4 + $0x144] sm:$0xff]
      %v2708 = vld [vmem:[%s4 + $0x14c] sm:$0xff]
      %v2709 = vld [vmem:[%s4 + $0x154] sm:$0xff]
      %v2710 = vld [vmem:[%s4 + $0x15c] sm:$0xff]
      %v2711 = vld [vmem:[%s4 + $0x164] sm:$0xf]
      %v2712 = vld [vmem:[%s4 + $0x168] sm:$0xff]
      %v2713 = vld [vmem:[%s4 + $0x170] sm:$0xff]
      %v2714 = vld [vmem:[%s4 + $0x178] sm:$0xff]
      %v2715 = vld [vmem:[%s4 + $0x180] sm:$0xff]
      %v2716 = vld [vmem:[%s4 + $0x188] sm:$0xf]
      %v2717 = vld [vmem:[%s4 + $0x18c] sm:$0xff]
      %v2718 = vld [vmem:[%s4 + $0x194] sm:$0xff]
      %v2719 = vld [vmem:[%s4 + $0x19c] sm:$0xff]
      %v2720 = vld [vmem:[%s4 + $0x1a4] sm:$0xff]
      %v2721 = vld [vmem:[%s4 + $0x1ac] sm:$0xf]
      %v2722 = vld [vmem:[%s4 + $0x1b0] sm:$0xff]
      %v2723 = vld [vmem:[%s4 + $0x1b8] sm:$0xff]
      %v2724 = vld [vmem:[%s4 + $0x1c0] sm:$0xff]
      %v2725 = vld [vmem:[%s4 + $0x1c8] sm:$0xff]
      %v2726 = vld [vmem:[%s4 + $0x1d0] sm:$0xf]
      %v2727 = vld [vmem:[%s4 + $0x1d4] sm:$0xff]
      %v2728 = vld [vmem:[%s4 + $0x1dc] sm:$0xff]
      %v2729 = vld [vmem:[%s4 + $0x1e4] sm:$0xff]
      %v2730 = vld [vmem:[%s4 + $0x1ec] sm:$0xff]
      %v2731 = vld [vmem:[%s4 + $0x1f4] sm:$0xf]
      %v2732 = vld [vmem:[%s4 + $0x1f8] sm:$0xff]
      %v2733 = vld [vmem:[%s4 + $0x200] sm:$0xff]
      %v2734 = vld [vmem:[%s4 + $0x208] sm:$0xff]
      %v2735 = vld [vmem:[%s4 + $0x210] sm:$0xff]
      %v2736 = vld [vmem:[%s4 + $0x218] sm:$0xf]
      %v2737 = vld [vmem:[%s4 + $0x21c] sm:$0xff]
      %v2738 = vld [vmem:[%s4 + $0x224] sm:$0xff]
      %v2739 = vld [vmem:[%s4 + $0x22c] sm:$0xff]
      %v2740 = vld [vmem:[%s4 + $0x234] sm:$0xff]
      %v2741 = vld [vmem:[%s4 + $0x23c] sm:$0xf]
      %v2742 = vld [vmem:[%s4 + $0x240] sm:$0xff]
      %v2743 = vld [vmem:[%s4 + $0x248] sm:$0xff]
      %v2744 = vld [vmem:[%s4 + $0x250] sm:$0xff]
      %v2745 = vld [vmem:[%s4 + $0x258] sm:$0xff]
      %v2746 = vld [vmem:[%s4 + $0x260] sm:$0xf]
      %v2747 = vld [vmem:[%s4 + $0x264] sm:$0xff]
      %v2748 = vld [vmem:[%s4 + $0x26c] sm:$0xff]
      %v2749 = vld [vmem:[%s4 + $0x274] sm:$0xff]
      %v2750 = vld [vmem:[%s4 + $0x27c] sm:$0xff]
      %v2751 = vld [vmem:[%s4 + $0x284] sm:$0xf]
      %v2752 = vld [vmem:[%s4 + $0x288] sm:$0xff]
      %v2753 = vld [vmem:[%s4 + $0x290] sm:$0xff]
      %v2754 = vld [vmem:[%s4 + $0x298] sm:$0xff]
      %v2755 = vld [vmem:[%s4 + $0x2a0] sm:$0xff]
      %v2756 = vld [vmem:[%s4 + $0x2a8] sm:$0xf]
      %v2757 = vld [vmem:[%s4 + $0x2ac] sm:$0xff]
      %v2758 = vld [vmem:[%s4 + $0x2b4] sm:$0xff]
      %v2759 = vld [vmem:[%s4 + $0x2bc] sm:$0xff]
      %v2760 = vld [vmem:[%s4 + $0x2c4] sm:$0xff]
      %v2761 = vld [vmem:[%s4 + $0x2cc] sm:$0xf]
      %v2762 = vld [vmem:[%s4 + $0x2d0] sm:$0xff]
      %v2763 = vld [vmem:[%s4 + $0x2d8] sm:$0xff]
      %v2764 = vld [vmem:[%s4 + $0x2e0] sm:$0xff]
      %v2765 = vld [vmem:[%s4 + $0x2e8] sm:$0xff]
      %v2766 = vld [vmem:[%s4 + $0x2f0] sm:$0xf]
      %v2767 = vld [vmem:[%s4 + $0x2f4] sm:$0xff]
      %v2768 = vld [vmem:[%s4 + $0x2fc] sm:$0xff]
      %v2769 = vld [vmem:[%s4 + $0x304] sm:$0xff]
      %v2770 = vld [vmem:[%s4 + $0x30c] sm:$0xff]
      %v2771 = vld [vmem:[%s4 + $0x314] sm:$0xf]
      %v2772 = vld [vmem:[%s4 + $0x318] sm:$0xff]
      %v2773 = vld [vmem:[%s4 + $0x320] sm:$0xff]
      %v2774 = vld [vmem:[%s4 + $0x328] sm:$0xff]
      %v2775 = vld [vmem:[%s4 + $0x330] sm:$0xff]
      %v2776 = vld [vmem:[%s4 + $0x338] sm:$0xf]
      %v2777 = vld [vmem:[%s4 + $0x33c] sm:$0xff]
      %v2778 = vld [vmem:[%s4 + $0x344] sm:$0xff]
      %v2779 = vld [vmem:[%s4 + $0x34c] sm:$0xff]
      %v2780 = vld [vmem:[%s4 + $0x354] sm:$0xff]
      %v2781 = vld [vmem:[%s4 + $0x35c] sm:$0xf]
      %v2782 = vld [vmem:[%s4 + $0x360] sm:$0xff]
      %v2783 = vld [vmem:[%s4 + $0x368] sm:$0xff]
      %v2784 = vld [vmem:[%s4 + $0x370] sm:$0xff]
      %v2785 = vld [vmem:[%s4 + $0x378] sm:$0xff]
      %v2786 = vld [vmem:[%s4 + $0x380] sm:$0xf]
      %v2787 = vld [vmem:[%s4 + $0x384] sm:$0xff]
      %v2788 = vld [vmem:[%s4 + $0x38c] sm:$0xff]
      %v2789 = vld [vmem:[%s4 + $0x394] sm:$0xff]
      %v2790 = vld [vmem:[%s4 + $0x39c] sm:$0xff]
      %v2791 = vld [vmem:[%s4 + $0x3a4] sm:$0xf]
      %v2792 = vld [vmem:[%s4 + $0x3a8] sm:$0xff]
      %v2793 = vld [vmem:[%s4 + $0x3b0] sm:$0xff]
      %v2794 = vld [vmem:[%s4 + $0x3b8] sm:$0xff]
      %v2795 = vld [vmem:[%s4 + $0x3c0] sm:$0xff]
      %v2796 = vld [vmem:[%s4 + $0x3c8] sm:$0xf]
      %v2797 = vld [vmem:[%s4 + $0x3cc] sm:$0xff]
      %v2798 = vld [vmem:[%s4 + $0x3d4] sm:$0xff]
      %v2799 = vld [vmem:[%s4 + $0x3dc] sm:$0xff]
      %v2800 = vld [vmem:[%s4 + $0x3e4] sm:$0xff]
      %v2801 = vld [vmem:[%s4 + $0x3ec] sm:$0xf]
      %v2802 = vld [vmem:[%s4 + $0x3f0] sm:$0xff]
      %v2803 = vld [vmem:[%s4 + $0x3f8] sm:$0xff]
      %v2804 = vld [vmem:[%s4 + $0x400] sm:$0xff]
      %v2805 = vld [vmem:[%s4 + $0x408] sm:$0xff]
      %v2806 = vld [vmem:[%s4 + $0x410] sm:$0xf]
      %v2807 = vld [vmem:[%s4 + $0x414] sm:$0xff]
      %v2808 = vld [vmem:[%s4 + $0x41c] sm:$0xff]
      %v2809 = vld [vmem:[%s4 + $0x424] sm:$0xff]
      %v2810 = vld [vmem:[%s4 + $0x42c] sm:$0xff]
      %v2811 = vld [vmem:[%s4 + $0x434] sm:$0xf]
      %v2812 = vld [vmem:[%s4 + $0x438] sm:$0xff]
      %v2813 = vld [vmem:[%s4 + $0x440] sm:$0xff]
      %v2814 = vld [vmem:[%s4 + $0x448] sm:$0xff]
      %v2815 = vld [vmem:[%s4 + $0x450] sm:$0xff]
      %v2816 = vld [vmem:[%s4 + $0x458] sm:$0xf]
      %v2817 = vld [vmem:[%s4 + $0x45c] sm:$0xff]
      %v2818 = vld [vmem:[%s4 + $0x464] sm:$0xff]
      %v2819 = vld [vmem:[%s4 + $0x46c] sm:$0xff]
      %v2820 = vld [vmem:[%s4 + $0x474] sm:$0xff]
      %v2821 = vld [vmem:[%s4 + $0x47c] sm:$0xf]
      %v2822 = vld [vmem:[%s4 + $0x480] sm:$0xff]
      %v2823 = vld [vmem:[%s4 + $0x488] sm:$0xff]
      %v2824 = vld [vmem:[%s4 + $0x490] sm:$0xff]
      %v2825 = vld [vmem:[%s4 + $0x498] sm:$0xff]
      %v2826 = vld [vmem:[%s4 + $0x4a0] sm:$0xf]
      %v2827 = vld [vmem:[%s4 + $0x4a4] sm:$0xff]
      %v2828 = vld [vmem:[%s4 + $0x4ac] sm:$0xff]
      %v2829 = vld [vmem:[%s4 + $0x4b4] sm:$0xff]
      %v2830 = vld [vmem:[%s4 + $0x4bc] sm:$0xff]
      %v2831 = vld [vmem:[%s4 + $0x4c4] sm:$0xf]
      %v2832 = vld [vmem:[%s4 + $0x4c8] sm:$0xff]
      %v2833 = vld [vmem:[%s4 + $0x4d0] sm:$0xff]
      %v2834 = vld [vmem:[%s4 + $0x4d8] sm:$0xff]
      %v2835 = vld [vmem:[%s4 + $0x4e0] sm:$0xff]
      %v2836 = vld [vmem:[%s4 + $0x4e8] sm:$0xf]
      %v2837 = vld [vmem:[%s4 + $0x4ec] sm:$0xff]
      %v2838 = vld [vmem:[%s4 + $0x4f4] sm:$0xff]
      %v2839 = vld [vmem:[%s4 + $0x4fc] sm:$0xff]
      %v2840 = vld [vmem:[%s4 + $0x504] sm:$0xff]
      %v2841 = vld [vmem:[%s4 + $0x50c] sm:$0xf]
      %v2842 = vld [vmem:[%s4 + $0x510] sm:$0xff]
      %v2843 = vld [vmem:[%s4 + $0x518] sm:$0xff]
      %v2844 = vld [vmem:[%s4 + $0x520] sm:$0xff]
      %v2845 = vld [vmem:[%s4 + $0x528] sm:$0xff]
      %v2846 = vld [vmem:[%s4 + $0x530] sm:$0xf]
      %v2847 = vld [vmem:[%s4 + $0x534] sm:$0xff]
      %v2848 = vld [vmem:[%s4 + $0x53c] sm:$0xff]
      %v2849 = vld [vmem:[%s4 + $0x544] sm:$0xff]
      %v2850 = vld [vmem:[%s4 + $0x54c] sm:$0xff]
      %v2851 = vld [vmem:[%s4 + $0x554] sm:$0xf]
      %v2852 = vld [vmem:[%s4 + $0x558] sm:$0xff]
      %v2853 = vld [vmem:[%s4 + $0x560] sm:$0xff]
      %v2854 = vld [vmem:[%s4 + $0x568] sm:$0xff]
      %v2855 = vld [vmem:[%s4 + $0x570] sm:$0xff]
      %v2856 = vld [vmem:[%s4 + $0x578] sm:$0xf]
      %v2857 = vld [vmem:[%s4 + $0x57c] sm:$0xff]
      %v2858 = vld [vmem:[%s4 + $0x584] sm:$0xff]
      %v2859 = vld [vmem:[%s4 + $0x58c] sm:$0xff]
      %v2860 = vld [vmem:[%s4 + $0x594] sm:$0xff]
      %v2861 = vld [vmem:[%s4 + $0x59c] sm:$0xf]
      %v2862 = vld [vmem:[%s4 + $0x5a0] sm:$0xff]
      %v2863 = vld [vmem:[%s4 + $0x5a8] sm:$0xff]
      %v2864 = vld [vmem:[%s4 + $0x5b0] sm:$0xff]
      %v2865 = vld [vmem:[%s4 + $0x5b8] sm:$0xff]
      %v2866 = vld [vmem:[%s4 + $0x5c0] sm:$0xf]
      %v2867 = vld [vmem:[%s4 + $0x5c4] sm:$0xff]
      %v2868 = vld [vmem:[%s4 + $0x5cc] sm:$0xff]
      %v2869 = vld [vmem:[%s4 + $0x5d4] sm:$0xff]
      %v2870 = vld [vmem:[%s4 + $0x5dc] sm:$0xff]
      %v2871 = vld [vmem:[%s4 + $0x5e4] sm:$0xf]
      %v2872 = vld [vmem:[%s4 + $0x5e8] sm:$0xff]
      %v2873 = vld [vmem:[%s4 + $0x5f0] sm:$0xff]
      %v2874 = vld [vmem:[%s4 + $0x5f8] sm:$0xff]
      %v2875 = vld [vmem:[%s4 + $0x600] sm:$0xff]
      %v2876 = vld [vmem:[%s4 + $0x608] sm:$0xf]
      %v2877 = vld [vmem:[%s4 + $0x60c] sm:$0xff]
      %v2878 = vld [vmem:[%s4 + $0x614] sm:$0xff]
      %v2879 = vld [vmem:[%s4 + $0x61c] sm:$0xff]
      %v2880 = vld [vmem:[%s4 + $0x624] sm:$0xff]
      %v2881 = vld [vmem:[%s4 + $0x62c] sm:$0xf]
      %v2882 = vld [vmem:[%s4 + $0x630] sm:$0xff]
      %v2883 = vld [vmem:[%s4 + $0x638] sm:$0xff]
      %v2884 = vld [vmem:[%s4 + $0x640] sm:$0xff]
      %v2885 = vld [vmem:[%s4 + $0x648] sm:$0xff]
      %v2886 = vld [vmem:[%s4 + $0x650] sm:$0xf]
      %v2887 = vld [vmem:[%s4 + $0x654] sm:$0xff]
      %v2888 = vld [vmem:[%s4 + $0x65c] sm:$0xff]
      %v2889 = vld [vmem:[%s4 + $0x664] sm:$0xff]
      %v2890 = vld [vmem:[%s4 + $0x66c] sm:$0xff]
      %v2891 = vld [vmem:[%s4 + $0x674] sm:$0xf]
      %v3122 = vunpack.c.l.b16 %v2662
      %v3123 = vunpack.c.h.b16 %v2662
      %v3124 = vunpack.c.l.b16 %v2663
      %v3125 = vunpack.c.h.b16 %v2663
      %v3126 = vunpack.c.l.b16 %v2664
      %v3127 = vunpack.c.h.b16 %v2664
      %v3128 = vunpack.c.l.b16 %v2665
      %v3129 = vunpack.c.h.b16 %v2665
      %v3130 = vunpack.c.l.b16 %v2666
      %v3131 = vunpack.c.l.b16 %v2667
      %v3132 = vunpack.c.h.b16 %v2667
      %v3133 = vunpack.c.l.b16 %v2668
      %v3134 = vunpack.c.h.b16 %v2668
      %v3135 = vunpack.c.l.b16 %v2669
      %v3136 = vunpack.c.h.b16 %v2669
      %v3137 = vunpack.c.l.b16 %v2670
      %v3138 = vunpack.c.h.b16 %v2670
      %v3139 = vunpack.c.l.b16 %v2671
      %v3140 = vunpack.c.l.b16 %v2672
      %v3141 = vunpack.c.h.b16 %v2672
      %v3142 = vunpack.c.l.b16 %v2673
      %v3143 = vunpack.c.h.b16 %v2673
      %v3144 = vunpack.c.l.b16 %v2674
      %v3145 = vunpack.c.h.b16 %v2674
      %v3146 = vunpack.c.l.b16 %v2675
      %v3147 = vunpack.c.h.b16 %v2675
      %v3148 = vunpack.c.l.b16 %v2676
      %v3149 = vunpack.c.l.b16 %v2677
      %v3150 = vunpack.c.h.b16 %v2677
      %v3151 = vunpack.c.l.b16 %v2678
      %v3152 = vunpack.c.h.b16 %v2678
      %v3153 = vunpack.c.l.b16 %v2679
      %v3154 = vunpack.c.h.b16 %v2679
      %v3155 = vunpack.c.l.b16 %v2680
      %v3156 = vunpack.c.h.b16 %v2680
      %v3157 = vunpack.c.l.b16 %v2681
      %v3158 = vunpack.c.l.b16 %v2682
      %v3159 = vunpack.c.h.b16 %v2682
      %v3160 = vunpack.c.l.b16 %v2683
      %v3161 = vunpack.c.h.b16 %v2683
      %v3162 = vunpack.c.l.b16 %v2684
      %v3163 = vunpack.c.h.b16 %v2684
      %v3164 = vunpack.c.l.b16 %v2685
      %v3165 = vunpack.c.h.b16 %v2685
      %v3166 = vunpack.c.l.b16 %v2686
      %v3167 = vunpack.c.l.b16 %v2687
      %v3168 = vunpack.c.h.b16 %v2687
      %v3169 = vunpack.c.l.b16 %v2688
      %v3170 = vunpack.c.h.b16 %v2688
      %v3171 = vunpack.c.l.b16 %v2689
      %v3172 = vunpack.c.h.b16 %v2689
      %v3173 = vunpack.c.l.b16 %v2690
      %v3174 = vunpack.c.h.b16 %v2690
      %v3175 = vunpack.c.l.b16 %v2691
      %v3176 = vunpack.c.l.b16 %v2692
      %v3177 = vunpack.c.h.b16 %v2692
      %v3178 = vunpack.c.l.b16 %v2693
      %v3179 = vunpack.c.h.b16 %v2693
      %v3180 = vunpack.c.l.b16 %v2694
      %v3181 = vunpack.c.h.b16 %v2694
      %v3182 = vunpack.c.l.b16 %v2695
      %v3183 = vunpack.c.h.b16 %v2695
      %v3184 = vunpack.c.l.b16 %v2696
      %v3185 = vunpack.c.l.b16 %v2697
      %v3186 = vunpack.c.h.b16 %v2697
      %v3187 = vunpack.c.l.b16 %v2698
      %v3188 = vunpack.c.h.b16 %v2698
      %v3189 = vunpack.c.l.b16 %v2699
      %v3190 = vunpack.c.h.b16 %v2699
      %v3191 = vunpack.c.l.b16 %v2700
      %v3192 = vunpack.c.h.b16 %v2700
      %v3193 = vunpack.c.l.b16 %v2701
      %v3194 = vunpack.c.l.b16 %v2702
      %v3195 = vunpack.c.h.b16 %v2702
      %v3196 = vunpack.c.l.b16 %v2703
      %v3197 = vunpack.c.h.b16 %v2703
      %v3198 = vunpack.c.l.b16 %v2704
      %v3199 = vunpack.c.h.b16 %v2704
      %v3200 = vunpack.c.l.b16 %v2705
      %v3201 = vunpack.c.h.b16 %v2705
      %v3202 = vunpack.c.l.b16 %v2706
      %v3203 = vunpack.c.l.b16 %v2707
      %v3204 = vunpack.c.h.b16 %v2707
      %v3205 = vunpack.c.l.b16 %v2708
      %v3206 = vunpack.c.h.b16 %v2708
      %v3207 = vunpack.c.l.b16 %v2709
      %v3208 = vunpack.c.h.b16 %v2709
      %v3209 = vunpack.c.l.b16 %v2710
      %v3210 = vunpack.c.h.b16 %v2710
      %v3211 = vunpack.c.l.b16 %v2711
      %v3212 = vunpack.c.l.b16 %v2712
      %v3213 = vunpack.c.h.b16 %v2712
      %v3214 = vunpack.c.l.b16 %v2713
      %v3215 = vunpack.c.h.b16 %v2713
      %v3216 = vunpack.c.l.b16 %v2714
      %v3217 = vunpack.c.h.b16 %v2714
      %v3218 = vunpack.c.l.b16 %v2715
      %v3219 = vunpack.c.h.b16 %v2715
      %v3220 = vunpack.c.l.b16 %v2716
      %v3221 = vunpack.c.l.b16 %v2717
      %v3222 = vunpack.c.h.b16 %v2717
      %v3223 = vunpack.c.l.b16 %v2718
      %v3224 = vunpack.c.h.b16 %v2718
      %v3225 = vunpack.c.l.b16 %v2719
      %v3226 = vunpack.c.h.b16 %v2719
      %v3227 = vunpack.c.l.b16 %v2720
      %v3228 = vunpack.c.h.b16 %v2720
      %v3229 = vunpack.c.l.b16 %v2721
      %v3230 = vunpack.c.l.b16 %v2722
      %v3231 = vunpack.c.h.b16 %v2722
      %v3232 = vunpack.c.l.b16 %v2723
      %v3233 = vunpack.c.h.b16 %v2723
      %v3234 = vunpack.c.l.b16 %v2724
      %v3235 = vunpack.c.h.b16 %v2724
      %v3236 = vunpack.c.l.b16 %v2725
      %v3237 = vunpack.c.h.b16 %v2725
      %v3238 = vunpack.c.l.b16 %v2726
      %v3239 = vunpack.c.l.b16 %v2727
      %v3240 = vunpack.c.h.b16 %v2727
      %v3241 = vunpack.c.l.b16 %v2728
      %v3242 = vunpack.c.h.b16 %v2728
      %v3243 = vunpack.c.l.b16 %v2729
      %v3244 = vunpack.c.h.b16 %v2729
      %v3245 = vunpack.c.l.b16 %v2730
      %v3246 = vunpack.c.h.b16 %v2730
      %v3247 = vunpack.c.l.b16 %v2731
      %v3248 = vunpack.c.l.b16 %v2732
      %v3249 = vunpack.c.h.b16 %v2732
      %v3250 = vunpack.c.l.b16 %v2733
      %v3251 = vunpack.c.h.b16 %v2733
      %v3252 = vunpack.c.l.b16 %v2734
      %v3253 = vunpack.c.h.b16 %v2734
      %v3254 = vunpack.c.l.b16 %v2735
      %v3255 = vunpack.c.h.b16 %v2735
      %v3256 = vunpack.c.l.b16 %v2736
      %v3257 = vunpack.c.l.b16 %v2737
      %v3258 = vunpack.c.h.b16 %v2737
      %v3259 = vunpack.c.l.b16 %v2738
      %v3260 = vunpack.c.h.b16 %v2738
      %v3261 = vunpack.c.l.b16 %v2739
      %v3262 = vunpack.c.h.b16 %v2739
      %v3263 = vunpack.c.l.b16 %v2740
      %v3264 = vunpack.c.h.b16 %v2740
      %v3265 = vunpack.c.l.b16 %v2741
      %v3266 = vunpack.c.l.b16 %v2742
      %v3267 = vunpack.c.h.b16 %v2742
      %v3268 = vunpack.c.l.b16 %v2743
      %v3269 = vunpack.c.h.b16 %v2743
      %v3270 = vunpack.c.l.b16 %v2744
      %v3271 = vunpack.c.h.b16 %v2744
      %v3272 = vunpack.c.l.b16 %v2745
      %v3273 = vunpack.c.h.b16 %v2745
      %v3274 = vunpack.c.l.b16 %v2746
      %v3275 = vunpack.c.l.b16 %v2747
      %v3276 = vunpack.c.h.b16 %v2747
      %v3277 = vunpack.c.l.b16 %v2748
      %v3278 = vunpack.c.h.b16 %v2748
      %v3279 = vunpack.c.l.b16 %v2749
      %v3280 = vunpack.c.h.b16 %v2749
      %v3281 = vunpack.c.l.b16 %v2750
      %v3282 = vunpack.c.h.b16 %v2750
      %v3283 = vunpack.c.l.b16 %v2751
      %v3284 = vunpack.c.l.b16 %v2752
      %v3285 = vunpack.c.h.b16 %v2752
      %v3286 = vunpack.c.l.b16 %v2753
      %v3287 = vunpack.c.h.b16 %v2753
      %v3288 = vunpack.c.l.b16 %v2754
      %v3289 = vunpack.c.h.b16 %v2754
      %v3290 = vunpack.c.l.b16 %v2755
      %v3291 = vunpack.c.h.b16 %v2755
      %v3292 = vunpack.c.l.b16 %v2756
      %v3293 = vunpack.c.l.b16 %v2757
      %v3294 = vunpack.c.h.b16 %v2757
      %v3295 = vunpack.c.l.b16 %v2758
      %v3296 = vunpack.c.h.b16 %v2758
      %v3297 = vunpack.c.l.b16 %v2759
      %v3298 = vunpack.c.h.b16 %v2759
      %v3299 = vunpack.c.l.b16 %v2760
      %v3300 = vunpack.c.h.b16 %v2760
      %v3301 = vunpack.c.l.b16 %v2761
      %v3302 = vunpack.c.l.b16 %v2762
      %v3303 = vunpack.c.h.b16 %v2762
      %v3304 = vunpack.c.l.b16 %v2763
      %v3305 = vunpack.c.h.b16 %v2763
      %v3306 = vunpack.c.l.b16 %v2764
      %v3307 = vunpack.c.h.b16 %v2764
      %v3308 = vunpack.c.l.b16 %v2765
      %v3309 = vunpack.c.h.b16 %v2765
      %v3310 = vunpack.c.l.b16 %v2766
      %v3311 = vunpack.c.l.b16 %v2767
      %v3312 = vunpack.c.h.b16 %v2767
      %v3313 = vunpack.c.l.b16 %v2768
      %v3314 = vunpack.c.h.b16 %v2768
      %v3315 = vunpack.c.l.b16 %v2769
      %v3316 = vunpack.c.h.b16 %v2769
      %v3317 = vunpack.c.l.b16 %v2770
      %v3318 = vunpack.c.h.b16 %v2770
      %v3319 = vunpack.c.l.b16 %v2771
      %v3320 = vunpack.c.l.b16 %v2772
      %v3321 = vunpack.c.h.b16 %v2772
      %v3322 = vunpack.c.l.b16 %v2773
      %v3323 = vunpack.c.h.b16 %v2773
      %v3324 = vunpack.c.l.b16 %v2774
      %v3325 = vunpack.c.h.b16 %v2774
      %v3326 = vunpack.c.l.b16 %v2775
      %v3327 = vunpack.c.h.b16 %v2775
      %v3328 = vunpack.c.l.b16 %v2776
      %v3329 = vunpack.c.l.b16 %v2777
      %v3330 = vunpack.c.h.b16 %v2777
      %v3331 = vunpack.c.l.b16 %v2778
      %v3332 = vunpack.c.h.b16 %v2778
      %v3333 = vunpack.c.l.b16 %v2779
      %v3334 = vunpack.c.h.b16 %v2779
      %v3335 = vunpack.c.l.b16 %v2780
      %v3336 = vunpack.c.h.b16 %v2780
      %v3337 = vunpack.c.l.b16 %v2781
      %v3338 = vunpack.c.l.b16 %v2782
      %v3339 = vunpack.c.h.b16 %v2782
      %v3340 = vunpack.c.l.b16 %v2783
      %v3341 = vunpack.c.h.b16 %v2783
      %v3342 = vunpack.c.l.b16 %v2784
      %v3343 = vunpack.c.h.b16 %v2784
      %v3344 = vunpack.c.l.b16 %v2785
      %v3345 = vunpack.c.h.b16 %v2785
      %v3346 = vunpack.c.l.b16 %v2786
      %v3347 = vunpack.c.l.b16 %v2787
      %v3348 = vunpack.c.h.b16 %v2787
      %v3349 = vunpack.c.l.b16 %v2788
      %v3350 = vunpack.c.h.b16 %v2788
      %v3351 = vunpack.c.l.b16 %v2789
      %v3352 = vunpack.c.h.b16 %v2789
      %v3353 = vunpack.c.l.b16 %v2790
      %v3354 = vunpack.c.h.b16 %v2790
      %v3355 = vunpack.c.l.b16 %v2791
      %v3356 = vunpack.c.l.b16 %v2792
      %v3357 = vunpack.c.h.b16 %v2792
      %v3358 = vunpack.c.l.b16 %v2793
      %v3359 = vunpack.c.h.b16 %v2793
      %v3360 = vunpack.c.l.b16 %v2794
      %v3361 = vunpack.c.h.b16 %v2794
      %v3362 = vunpack.c.l.b16 %v2795
      %v3363 = vunpack.c.h.b16 %v2795
      %v3364 = vunpack.c.l.b16 %v2796
      %v3365 = vunpack.c.l.b16 %v2797
      %v3366 = vunpack.c.h.b16 %v2797
      %v3367 = vunpack.c.l.b16 %v2798
      %v3368 = vunpack.c.h.b16 %v2798
      %v3369 = vunpack.c.l.b16 %v2799
      %v3370 = vunpack.c.h.b16 %v2799
      %v3371 = vunpack.c.l.b16 %v2800
      %v3372 = vunpack.c.h.b16 %v2800
      %v3373 = vunpack.c.l.b16 %v2801
      %v3374 = vunpack.c.l.b16 %v2802
      %v3375 = vunpack.c.h.b16 %v2802
      %v3376 = vunpack.c.l.b16 %v2803
      %v3377 = vunpack.c.h.b16 %v2803
      %v3378 = vunpack.c.l.b16 %v2804
      %v3379 = vunpack.c.h.b16 %v2804
      %v3380 = vunpack.c.l.b16 %v2805
      %v3381 = vunpack.c.h.b16 %v2805
      %v3382 = vunpack.c.l.b16 %v2806
      %v3383 = vunpack.c.l.b16 %v2807
      %v3384 = vunpack.c.h.b16 %v2807
      %v3385 = vunpack.c.l.b16 %v2808
      %v3386 = vunpack.c.h.b16 %v2808
      %v3387 = vunpack.c.l.b16 %v2809
      %v3388 = vunpack.c.h.b16 %v2809
      %v3389 = vunpack.c.l.b16 %v2810
      %v3390 = vunpack.c.h.b16 %v2810
      %v3391 = vunpack.c.l.b16 %v2811
      %v3392 = vunpack.c.l.b16 %v2812
      %v3393 = vunpack.c.h.b16 %v2812
      %v3394 = vunpack.c.l.b16 %v2813
      %v3395 = vunpack.c.h.b16 %v2813
      %v3396 = vunpack.c.l.b16 %v2814
      %v3397 = vunpack.c.h.b16 %v2814
      %v3398 = vunpack.c.l.b16 %v2815
      %v3399 = vunpack.c.h.b16 %v2815
      %v3400 = vunpack.c.l.b16 %v2816
      %v3401 = vunpack.c.l.b16 %v2817
      %v3402 = vunpack.c.h.b16 %v2817
      %v3403 = vunpack.c.l.b16 %v2818
      %v3404 = vunpack.c.h.b16 %v2818
      %v3405 = vunpack.c.l.b16 %v2819
      %v3406 = vunpack.c.h.b16 %v2819
      %v3407 = vunpack.c.l.b16 %v2820
      %v3408 = vunpack.c.h.b16 %v2820
      %v3409 = vunpack.c.l.b16 %v2821
      %v3410 = vunpack.c.l.b16 %v2822
      %v3411 = vunpack.c.h.b16 %v2822
      %v3412 = vunpack.c.l.b16 %v2823
      %v3413 = vunpack.c.h.b16 %v2823
      %v3414 = vunpack.c.l.b16 %v2824
      %v3415 = vunpack.c.h.b16 %v2824
      %v3416 = vunpack.c.l.b16 %v2825
      %v3417 = vunpack.c.h.b16 %v2825
      %v3418 = vunpack.c.l.b16 %v2826
      %v3419 = vunpack.c.l.b16 %v2827
      %v3420 = vunpack.c.h.b16 %v2827
      %v3421 = vunpack.c.l.b16 %v2828
      %v3422 = vunpack.c.h.b16 %v2828
      %v3423 = vunpack.c.l.b16 %v2829
      %v3424 = vunpack.c.h.b16 %v2829
      %v3425 = vunpack.c.l.b16 %v2830
      %v3426 = vunpack.c.h.b16 %v2830
      %v3427 = vunpack.c.l.b16 %v2831
      %v3428 = vunpack.c.l.b16 %v2832
      %v3429 = vunpack.c.h.b16 %v2832
      %v3430 = vunpack.c.l.b16 %v2833
      %v3431 = vunpack.c.h.b16 %v2833
      %v3432 = vunpack.c.l.b16 %v2834
      %v3433 = vunpack.c.h.b16 %v2834
      %v3434 = vunpack.c.l.b16 %v2835
      %v3435 = vunpack.c.h.b16 %v2835
      %v3436 = vunpack.c.l.b16 %v2836
      %v3437 = vunpack.c.l.b16 %v2837
      %v3438 = vunpack.c.h.b16 %v2837
      %v3439 = vunpack.c.l.b16 %v2838
      %v3440 = vunpack.c.h.b16 %v2838
      %v3441 = vunpack.c.l.b16 %v2839
      %v3442 = vunpack.c.h.b16 %v2839
      %v3443 = vunpack.c.l.b16 %v2840
      %v3444 = vunpack.c.h.b16 %v2840
      %v3445 = vunpack.c.l.b16 %v2841
      %v3446 = vunpack.c.l.b16 %v2842
      %v3447 = vunpack.c.h.b16 %v2842
      %v3448 = vunpack.c.l.b16 %v2843
      %v3449 = vunpack.c.h.b16 %v2843
      %v3450 = vunpack.c.l.b16 %v2844
      %v3451 = vunpack.c.h.b16 %v2844
      %v3452 = vunpack.c.l.b16 %v2845
      %v3453 = vunpack.c.h.b16 %v2845
      %v3454 = vunpack.c.l.b16 %v2846
      %v3455 = vunpack.c.l.b16 %v2847
      %v3456 = vunpack.c.h.b16 %v2847
      %v3457 = vunpack.c.l.b16 %v2848
      %v3458 = vunpack.c.h.b16 %v2848
      %v3459 = vunpack.c.l.b16 %v2849
      %v3460 = vunpack.c.h.b16 %v2849
      %v3461 = vunpack.c.l.b16 %v2850
      %v3462 = vunpack.c.h.b16 %v2850
      %v3463 = vunpack.c.l.b16 %v2851
      %v3464 = vunpack.c.l.b16 %v2852
      %v3465 = vunpack.c.h.b16 %v2852
      %v3466 = vunpack.c.l.b16 %v2853
      %v3467 = vunpack.c.h.b16 %v2853
      %v3468 = vunpack.c.l.b16 %v2854
      %v3469 = vunpack.c.h.b16 %v2854
      %v3470 = vunpack.c.l.b16 %v2855
      %v3471 = vunpack.c.h.b16 %v2855
      %v3472 = vunpack.c.l.b16 %v2856
      %v3473 = vunpack.c.l.b16 %v2857
      %v3474 = vunpack.c.h.b16 %v2857
      %v3475 = vunpack.c.l.b16 %v2858
      %v3476 = vunpack.c.h.b16 %v2858
      %v3477 = vunpack.c.l.b16 %v2859
      %v3478 = vunpack.c.h.b16 %v2859
      %v3479 = vunpack.c.l.b16 %v2860
      %v3480 = vunpack.c.h.b16 %v2860
      %v3481 = vunpack.c.l.b16 %v2861
      %v3482 = vunpack.c.l.b16 %v2862
      %v3483 = vunpack.c.h.b16 %v2862
      %v3484 = vunpack.c.l.b16 %v2863
      %v3485 = vunpack.c.h.b16 %v2863
      %v3486 = vunpack.c.l.b16 %v2864
      %v3487 = vunpack.c.h.b16 %v2864
      %v3488 = vunpack.c.l.b16 %v2865
      %v3489 = vunpack.c.h.b16 %v2865
      %v3490 = vunpack.c.l.b16 %v2866
      %v3491 = vunpack.c.l.b16 %v2867
      %v3492 = vunpack.c.h.b16 %v2867
      %v3493 = vunpack.c.l.b16 %v2868
      %v3494 = vunpack.c.h.b16 %v2868
      %v3495 = vunpack.c.l.b16 %v2869
      %v3496 = vunpack.c.h.b16 %v2869
      %v3497 = vunpack.c.l.b16 %v2870
      %v3498 = vunpack.c.h.b16 %v2870
      %v3499 = vunpack.c.l.b16 %v2871
      %v3500 = vunpack.c.l.b16 %v2872
      %v3501 = vunpack.c.h.b16 %v2872
      %v3502 = vunpack.c.l.b16 %v2873
      %v3503 = vunpack.c.h.b16 %v2873
      %v3504 = vunpack.c.l.b16 %v2874
      %v3505 = vunpack.c.h.b16 %v2874
      %v3506 = vunpack.c.l.b16 %v2875
      %v3507 = vunpack.c.h.b16 %v2875
      %v3508 = vunpack.c.l.b16 %v2876
      %v3509 = vunpack.c.l.b16 %v2877
      %v3510 = vunpack.c.h.b16 %v2877
      %v3511 = vunpack.c.l.b16 %v2878
      %v3512 = vunpack.c.h.b16 %v2878
      %v3513 = vunpack.c.l.b16 %v2879
      %v3514 = vunpack.c.h.b16 %v2879
      %v3515 = vunpack.c.l.b16 %v2880
      %v3516 = vunpack.c.h.b16 %v2880
      %v3517 = vunpack.c.l.b16 %v2881
      %v3518 = vunpack.c.l.b16 %v2882
      %v3519 = vunpack.c.h.b16 %v2882
      %v3520 = vunpack.c.l.b16 %v2883
      %v3521 = vunpack.c.h.b16 %v2883
      %v3522 = vunpack.c.l.b16 %v2884
      %v3523 = vunpack.c.h.b16 %v2884
      %v3524 = vunpack.c.l.b16 %v2885
      %v3525 = vunpack.c.h.b16 %v2885
      %v3526 = vunpack.c.l.b16 %v2886
      %v3527 = vunpack.c.l.b16 %v2887
      %v3528 = vunpack.c.h.b16 %v2887
      %v3529 = vunpack.c.l.b16 %v2888
      %v3530 = vunpack.c.h.b16 %v2888
      %v3531 = vunpack.c.l.b16 %v2889
      %v3532 = vunpack.c.h.b16 %v2889
      %v3533 = vunpack.c.l.b16 %v2890
      %v3534 = vunpack.c.h.b16 %v2890
      %v3535 = vunpack.c.l.b16 %v2891
      %v3536 = vpack.c.b16 %v3131, %v3122
      %v3537 = vpack.c.b16 %v3132, %v3123
      %v3538 = vpack.c.b16 %v3133, %v3124
      %v3539 = vpack.c.b16 %v3134, %v3125
      %v3540 = vpack.c.b16 %v3135, %v3126
      %v3541 = vpack.c.b16 %v3136, %v3127
      %v3542 = vpack.c.b16 %v3137, %v3128
      %v3543 = vpack.c.b16 %v3138, %v3129
      %v3544 = vpack.c.b16 %v3139, %v3130
      %v3545 = vpack.c.b16 %v3149, %v3140
      %v3546 = vpack.c.b16 %v3150, %v3141
      %v3547 = vpack.c.b16 %v3151, %v3142
      %v3548 = vpack.c.b16 %v3152, %v3143
      %v3549 = vpack.c.b16 %v3153, %v3144
      %v3550 = vpack.c.b16 %v3154, %v3145
      %v3551 = vpack.c.b16 %v3155, %v3146
      %v3552 = vpack.c.b16 %v3156, %v3147
      %v3553 = vpack.c.b16 %v3157, %v3148
      %v3554 = vpack.c.b16 %v3167, %v3158
      %v3555 = vpack.c.b16 %v3168, %v3159
      %v3556 = vpack.c.b16 %v3169, %v3160
      %v3557 = vpack.c.b16 %v3170, %v3161
      %v3558 = vpack.c.b16 %v3171, %v3162
      %v3559 = vpack.c.b16 %v3172, %v3163
      %v3560 = vpack.c.b16 %v3173, %v3164
      %v3561 = vpack.c.b16 %v3174, %v3165
      %v3562 = vpack.c.b16 %v3175, %v3166
      %v3563 = vpack.c.b16 %v3185, %v3176
      %v3564 = vpack.c.b16 %v3186, %v3177
      %v3565 = vpack.c.b16 %v3187, %v3178
      %v3566 = vpack.c.b16 %v3188, %v3179
      %v3567 = vpack.c.b16 %v3189, %v3180
      %v3568 = vpack.c.b16 %v3190, %v3181
      %v3569 = vpack.c.b16 %v3191, %v3182
      %v3570 = vpack.c.b16 %v3192, %v3183
      %v3571 = vpack.c.b16 %v3193, %v3184
      %v3572 = vpack.c.b16 %v3203, %v3194
      %v3573 = vpack.c.b16 %v3204, %v3195
      %v3574 = vpack.c.b16 %v3205, %v3196
      %v3575 = vpack.c.b16 %v3206, %v3197
      %v3576 = vpack.c.b16 %v3207, %v3198
      %v3577 = vpack.c.b16 %v3208, %v3199
      %v3578 = vpack.c.b16 %v3209, %v3200
      %v3579 = vpack.c.b16 %v3210, %v3201
      %v3580 = vpack.c.b16 %v3211, %v3202
      %v3581 = vpack.c.b16 %v3221, %v3212
      %v3582 = vpack.c.b16 %v3222, %v3213
      %v3583 = vpack.c.b16 %v3223, %v3214
      %v3584 = vpack.c.b16 %v3224, %v3215
      %v3585 = vpack.c.b16 %v3225, %v3216
      %v3586 = vpack.c.b16 %v3226, %v3217
      %v3587 = vpack.c.b16 %v3227, %v3218
      %v3588 = vpack.c.b16 %v3228, %v3219
      %v3589 = vpack.c.b16 %v3229, %v3220
      %v3590 = vpack.c.b16 %v3239, %v3230
      %v3591 = vpack.c.b16 %v3240, %v3231
      %v3592 = vpack.c.b16 %v3241, %v3232
      %v3593 = vpack.c.b16 %v3242, %v3233
      %v3594 = vpack.c.b16 %v3243, %v3234
      %v3595 = vpack.c.b16 %v3244, %v3235
      %v3596 = vpack.c.b16 %v3245, %v3236
      %v3597 = vpack.c.b16 %v3246, %v3237
      %v3598 = vpack.c.b16 %v3247, %v3238
      %v3599 = vpack.c.b16 %v3257, %v3248
      %v3600 = vpack.c.b16 %v3258, %v3249
      %v3601 = vpack.c.b16 %v3259, %v3250
      %v3602 = vpack.c.b16 %v3260, %v3251
      %v3603 = vpack.c.b16 %v3261, %v3252
      %v3604 = vpack.c.b16 %v3262, %v3253
      %v3605 = vpack.c.b16 %v3263, %v3254
      %v3606 = vpack.c.b16 %v3264, %v3255
      %v3607 = vpack.c.b16 %v3265, %v3256
      %v3608 = vpack.c.b16 %v3275, %v3266
      %v3609 = vpack.c.b16 %v3276, %v3267
      %v3610 = vpack.c.b16 %v3277, %v3268
      %v3611 = vpack.c.b16 %v3278, %v3269
      %v3612 = vpack.c.b16 %v3279, %v3270
      %v3613 = vpack.c.b16 %v3280, %v3271
      %v3614 = vpack.c.b16 %v3281, %v3272
      %v3615 = vpack.c.b16 %v3282, %v3273
      %v3616 = vpack.c.b16 %v3283, %v3274
      %v3617 = vpack.c.b16 %v3293, %v3284
      %v3618 = vpack.c.b16 %v3294, %v3285
      %v3619 = vpack.c.b16 %v3295, %v3286
      %v3620 = vpack.c.b16 %v3296, %v3287
      %v3621 = vpack.c.b16 %v3297, %v3288
      %v3622 = vpack.c.b16 %v3298, %v3289
      %v3623 = vpack.c.b16 %v3299, %v3290
      %v3624 = vpack.c.b16 %v3300, %v3291
      %v3625 = vpack.c.b16 %v3301, %v3292
      %v3626 = vpack.c.b16 %v3311, %v3302
      %v3627 = vpack.c.b16 %v3312, %v3303
      %v3628 = vpack.c.b16 %v3313, %v3304
      %v3629 = vpack.c.b16 %v3314, %v3305
      %v3630 = vpack.c.b16 %v3315, %v3306
      %v3631 = vpack.c.b16 %v3316, %v3307
      %v3632 = vpack.c.b16 %v3317, %v3308
      %v3633 = vpack.c.b16 %v3318, %v3309
      %v3634 = vpack.c.b16 %v3319, %v3310
      %v3635 = vpack.c.b16 %v3329, %v3320
      %v3636 = vpack.c.b16 %v3330, %v3321
      %v3637 = vpack.c.b16 %v3331, %v3322
      %v3638 = vpack.c.b16 %v3332, %v3323
      %v3639 = vpack.c.b16 %v3333, %v3324
      %v3640 = vpack.c.b16 %v3334, %v3325
      %v3641 = vpack.c.b16 %v3335, %v3326
      %v3642 = vpack.c.b16 %v3336, %v3327
      %v3643 = vpack.c.b16 %v3337, %v3328
      %v3644 = vpack.c.b16 %v3347, %v3338
      %v3645 = vpack.c.b16 %v3348, %v3339
      %v3646 = vpack.c.b16 %v3349, %v3340
      %v3647 = vpack.c.b16 %v3350, %v3341
      %v3648 = vpack.c.b16 %v3351, %v3342
      %v3649 = vpack.c.b16 %v3352, %v3343
      %v3650 = vpack.c.b16 %v3353, %v3344
      %v3651 = vpack.c.b16 %v3354, %v3345
      %v3652 = vpack.c.b16 %v3355, %v3346
      %v3653 = vpack.c.b16 %v3365, %v3356
      %v3654 = vpack.c.b16 %v3366, %v3357
      %v3655 = vpack.c.b16 %v3367, %v3358
      %v3656 = vpack.c.b16 %v3368, %v3359
      %v3657 = vpack.c.b16 %v3369, %v3360
      %v3658 = vpack.c.b16 %v3370, %v3361
      %v3659 = vpack.c.b16 %v3371, %v3362
      %v3660 = vpack.c.b16 %v3372, %v3363
      %v3661 = vpack.c.b16 %v3373, %v3364
      %v3662 = vpack.c.b16 %v3383, %v3374
      %v3663 = vpack.c.b16 %v3384, %v3375
      %v3664 = vpack.c.b16 %v3385, %v3376
      %v3665 = vpack.c.b16 %v3386, %v3377
      %v3666 = vpack.c.b16 %v3387, %v3378
      %v3667 = vpack.c.b16 %v3388, %v3379
      %v3668 = vpack.c.b16 %v3389, %v3380
      %v3669 = vpack.c.b16 %v3390, %v3381
      %v3670 = vpack.c.b16 %v3391, %v3382
      %v3671 = vpack.c.b16 %v3401, %v3392
      %v3672 = vpack.c.b16 %v3402, %v3393
      %v3673 = vpack.c.b16 %v3403, %v3394
      %v3674 = vpack.c.b16 %v3404, %v3395
      %v3675 = vpack.c.b16 %v3405, %v3396
      %v3676 = vpack.c.b16 %v3406, %v3397
      %v3677 = vpack.c.b16 %v3407, %v3398
      %v3678 = vpack.c.b16 %v3408, %v3399
      %v3679 = vpack.c.b16 %v3409, %v3400
      %v3680 = vpack.c.b16 %v3419, %v3410
      %v3681 = vpack.c.b16 %v3420, %v3411
      %v3682 = vpack.c.b16 %v3421, %v3412
      %v3683 = vpack.c.b16 %v3422, %v3413
      %v3684 = vpack.c.b16 %v3423, %v3414
      %v3685 = vpack.c.b16 %v3424, %v3415
      %v3686 = vpack.c.b16 %v3425, %v3416
      %v3687 = vpack.c.b16 %v3426, %v3417
      %v3688 = vpack.c.b16 %v3427, %v3418
      %v3689 = vpack.c.b16 %v3437, %v3428
      %v3690 = vpack.c.b16 %v3438, %v3429
      %v3691 = vpack.c.b16 %v3439, %v3430
      %v3692 = vpack.c.b16 %v3440, %v3431
      %v3693 = vpack.c.b16 %v3441, %v3432
      %v3694 = vpack.c.b16 %v3442, %v3433
      %v3695 = vpack.c.b16 %v3443, %v3434
      %v3696 = vpack.c.b16 %v3444, %v3435
      %v3697 = vpack.c.b16 %v3445, %v3436
      %v3698 = vpack.c.b16 %v3455, %v3446
      %v3699 = vpack.c.b16 %v3456, %v3447
      %v3700 = vpack.c.b16 %v3457, %v3448
      %v3701 = vpack.c.b16 %v3458, %v3449
      %v3702 = vpack.c.b16 %v3459, %v3450
      %v3703 = vpack.c.b16 %v3460, %v3451
      %v3704 = vpack.c.b16 %v3461, %v3452
      %v3705 = vpack.c.b16 %v3462, %v3453
      %v3706 = vpack.c.b16 %v3463, %v3454
      %v3707 = vpack.c.b16 %v3473, %v3464
      %v3708 = vpack.c.b16 %v3474, %v3465
      %v3709 = vpack.c.b16 %v3475, %v3466
      %v3710 = vpack.c.b16 %v3476, %v3467
      %v3711 = vpack.c.b16 %v3477, %v3468
      %v3712 = vpack.c.b16 %v3478, %v3469
      %v3713 = vpack.c.b16 %v3479, %v3470
      %v3714 = vpack.c.b16 %v3480, %v3471
      %v3715 = vpack.c.b16 %v3481, %v3472
      %v3716 = vpack.c.b16 %v3491, %v3482
      %v3717 = vpack.c.b16 %v3492, %v3483
      %v3718 = vpack.c.b16 %v3493, %v3484
      %v3719 = vpack.c.b16 %v3494, %v3485
      %v3720 = vpack.c.b16 %v3495, %v3486
      %v3721 = vpack.c.b16 %v3496, %v3487
      %v3722 = vpack.c.b16 %v3497, %v3488
      %v3723 = vpack.c.b16 %v3498, %v3489
      %v3724 = vpack.c.b16 %v3499, %v3490
      %v3725 = vpack.c.b16 %v3509, %v3500
      %v3726 = vpack.c.b16 %v3510, %v3501
      %v3727 = vpack.c.b16 %v3511, %v3502
      %v3728 = vpack.c.b16 %v3512, %v3503
      %v3729 = vpack.c.b16 %v3513, %v3504
      %v3730 = vpack.c.b16 %v3514, %v3505
      %v3731 = vpack.c.b16 %v3515, %v3506
      %v3732 = vpack.c.b16 %v3516, %v3507
      %v3733 = vpack.c.b16 %v3517, %v3508
      %v3734 = vpack.c.b16 %v3527, %v3518
      %v3735 = vpack.c.b16 %v3528, %v3519
      %v3736 = vpack.c.b16 %v3529, %v3520
      %v3737 = vpack.c.b16 %v3530, %v3521
      %v3738 = vpack.c.b16 %v3531, %v3522
      %v3739 = vpack.c.b16 %v3532, %v3523
      %v3740 = vpack.c.b16 %v3533, %v3524
      %v3741 = vpack.c.b16 %v3534, %v3525
      %v3742 = vpack.c.b16 %v3535, %v3526
      %vm3950 = vcmask 916480
      %v3952 = vsel %vm3950, %v2655, 0
      %v3955 = vsel %vm3950, %v2658, 0
      %v3958 = vsel %vm3950, %v2661, 0
      %3960 = vmatprep.subr.bf16.mxu0 %v3537
      %3961 = vmatpush1.bf16.msra.mxu0 %v3536
      %3962 = vmatprep.subr.bf16.mxu0 %v3546
      %3963 = vmatpush1.bf16.msra.mxu0 %v3545
      %3964 = vmatprep.subr.bf16.mxu0 %v3555
      %3965 = vmatpush1.bf16.msra.mxu0 %v3554
      %3966 = vmatprep.subr.bf16.mxu0 %v3564
      %3967 = vmatpush1.bf16.msra.mxu0 %v3563
      %3968 = vmatprep.subr.bf16.mxu0 %v3573
      %3969 = vmatpush1.bf16.msra.mxu0 %v3572
      %3970 = vmatprep.subr.bf16.mxu0 %v3582
      %3971 = vmatpush1.bf16.msra.mxu0 %v3581
      %3972 = vmatprep.subr.bf16.mxu0 %v3591
      %3973 = vmatpush1.bf16.msra.mxu0 %v3590
      %3974 = vmatprep.subr.bf16.mxu0 %v3600
      %3975 = vmatpush1.bf16.msra.mxu0 %v3599
      %3976 = vmatprep.subr.bf16.mxu0 %v3609
      %3977 = vmatpush1.bf16.msra.mxu0 %v3608
      %3978 = vmatprep.subr.bf16.mxu0 %v3618
      %3979 = vmatpush1.bf16.msra.mxu0 %v3617
      %3980 = vmatprep.subr.bf16.mxu0 %v3627
      %3981 = vmatpush1.bf16.msra.mxu0 %v3626
      %3982 = vmatprep.subr.bf16.mxu0 %v3636
      %3983 = vmatpush1.bf16.msra.mxu0 %v3635
      %3984 = vmatprep.subr.bf16.mxu0 %v3645
      %3985 = vmatpush1.bf16.msra.mxu0 %v3644
      %3986 = vmatprep.subr.bf16.mxu0 %v3654
      %3987 = vmatpush1.bf16.msra.mxu0 %v3653
      %3988 = vmatprep.subr.bf16.mxu0 %v3663
      %3989 = vmatpush1.bf16.msra.mxu0 %v3662
      %3990 = vmatprep.subr.bf16.mxu0 %v3672
      %3991 = vmatpush1.bf16.msra.mxu0 %v3671
      %3992 = vmatprep.mubr.bf16.mxu0 %v2654
      %3993 = vmatmul.mubr.bf16.gmra.mrb[0].mxu0 %v2653
      %v3994 = vpop.f32.mrb[0].mxu0
      %v3995 = vadd.f32 0.0, %v3994
      %v3996 = vpop.f32.mrb[0].mxu0
      %v3997 = vadd.f32 0.0, %v3996
      %v3998 = vpop.f32.mrb[0].mxu0
      %v3999 = vadd.f32 0.0, %v3998
      %v4000 = vpop.f32.mrb[0].mxu0
      %v4001 = vadd.f32 0.0, %v4000
      %4002 = vmatprep.mubr.bf16.mxu0 %v2657
      %4003 = vmatmul.mubr.bf16.gmra.mrb[0].mxu0 %v2656
      %v4004 = vpop.f32.mrb[0].mxu0
      %v4005 = vadd.f32 0.0, %v4004
      %v4006 = vpop.f32.mrb[0].mxu0
      %v4007 = vadd.f32 0.0, %v4006
      %v4008 = vpop.f32.mrb[0].mxu0
      %v4009 = vadd.f32 0.0, %v4008
      %v4010 = vpop.f32.mrb[0].mxu0
      %v4011 = vadd.f32 0.0, %v4010
      %4012 = vmatprep.mubr.bf16.mxu0 %v2660
      %4013 = vmatmul.mubr.bf16.gmra.mrb[0].mxu0 %v2659
      %v4014 = vpop.f32.mrb[0].mxu0
      %v4015 = vadd.f32 0.0, %v4014
      %v4016 = vpop.f32.mrb[0].mxu0
      %v4017 = vadd.f32 0.0, %v4016
      %v4018 = vpop.f32.mrb[0].mxu0
      %v4019 = vadd.f32 0.0, %v4018
      %v4020 = vpop.f32.mrb[0].mxu0
      %v4021 = vadd.f32 0.0, %v4020
      %4022 = vdwg.mxu0
      %4023 = vmatprep.subr.bf16.mxu0 %v3681
      %4024 = vmatpush1.bf16.msra.mxu0 %v3680
      %4025 = vmatprep.subr.bf16.mxu0 %v3690
      %4026 = vmatpush1.bf16.msra.mxu0 %v3689
      %4027 = vmatprep.subr.bf16.mxu0 %v3699
      %4028 = vmatpush1.bf16.msra.mxu0 %v3698
      %4029 = vmatprep.subr.bf16.mxu0 %v3708
      %4030 = vmatpush1.bf16.msra.mxu0 %v3707
      %4031 = vmatprep.subr.bf16.mxu0 %v3717
      %4032 = vmatpush1.bf16.msra.mxu0 %v3716
      %4033 = vmatprep.subr.bf16.mxu0 %v3726
      %4034 = vmatpush1.bf16.msra.mxu0 %v3725
      %4035 = vmatprep.subr.bf16.mxu0 %v3735
      %4036 = vmatpush1.bf16.msra.mxu0 %v3734
      %4037 = vmatprep.subr.bf16.mxu0 0
      %4038 = vmatpush1.bf16.msra.mxu0 0
      %4039 = vmatprep.subr.bf16.mxu0 0
      %4040 = vmatpush1.bf16.msra.mxu0 0
      %4041 = vmatprep.subr.bf16.mxu0 0
      %4042 = vmatpush1.bf16.msra.mxu0 0
      %4043 = vmatprep.subr.bf16.mxu0 0
      %4044 = vmatpush1.bf16.msra.mxu0 0
      %4045 = vmatprep.subr.bf16.mxu0 0
      %4046 = vmatpush1.bf16.msra.mxu0 0
      %4047 = vmatprep.subr.bf16.mxu0 0
      %4048 = vmatpush1.bf16.msra.mxu0 0
      %4049 = vmatprep.subr.bf16.mxu0 0
      %4050 = vmatpush1.bf16.msra.mxu0 0
      %4051 = vmatprep.subr.bf16.mxu0 0
      %4052 = vmatpush1.bf16.msra.mxu0 0
      %4053 = vmatprep.subr.bf16.mxu0 0
      %4054 = vmatpush1.bf16.msra.mxu0 0
      %4055 = vmatprep.mubr.bf16.mxu0 0
      %4056 = vmatmul.mubr.bf16.gmra.mrb[0].mxu0 %v3952
      %v4057 = vpop.f32.mrb[0].mxu0
      %v4058 = vadd.f32 %v3995, %v4057
      %v4059 = vpop.f32.mrb[0].mxu0
      %v4060 = vadd.f32 %v3997, %v4059
      %v4061 = vpop.f32.mrb[0].mxu0
      %v4062 = vadd.f32 %v3999, %v4061
      %v4063 = vpop.f32.mrb[0].mxu0
      %v4064 = vadd.f32 %v4001, %v4063
      %4065 = vmatprep.mubr.bf16.mxu0 0
      %4066 = vmatmul.mubr.bf16.gmra.mrb[0].mxu0 %v3955
      %v4067 = vpop.f32.mrb[0].mxu0
      %v4068 = vadd.f32 %v4005, %v4067
      %v4069 = vpop.f32.mrb[0].mxu0
      %v4070 = vadd.f32 %v4007, %v4069
      %v4071 = vpop.f32.mrb[0].mxu0
      %v4072 = vadd.f32 %v4009, %v4071
      %v4073 = vpop.f32.mrb[0].mxu0
      %v4074 = vadd.f32 %v4011, %v4073
      %4075 = vmatprep.mubr.bf16.mxu0 0
      %4076 = vmatmul.mubr.bf16.gmra.mrb[0].mxu0 %v3958
      %v4077 = vpop.f32.mrb[0].mxu0
      %v4078 = vadd.f32 %v4015, %v4077
      %v4079 = vpop.f32.mrb[0].mxu0
      %v4080 = vadd.f32 %v4017, %v4079
      %v4081 = vpop.f32.mrb[0].mxu0
      %v4082 = vadd.f32 %v4019, %v4081
      %v4083 = vpop.f32.mrb[0].mxu0
      %v4084 = vadd.f32 %v4021, %v4083
      %4085 = vdwg.mxu0
      %4086 = vmatprep.subr.bf16.mxu0 %v3539
      %4087 = vmatpush1.bf16.msra.mxu0 %v3538
      %4088 = vmatprep.subr.bf16.mxu0 %v3548
      %4089 = vmatpush1.bf16.msra.mxu0 %v3547
      %4090 = vmatprep.subr.bf16.mxu0 %v3557
      %4091 = vmatpush1.bf16.msra.mxu0 %v3556
      %4092 = vmatprep.subr.bf16.mxu0 %v3566
      %4093 = vmatpush1.bf16.msra.mxu0 %v3565
      %4094 = vmatprep.subr.bf16.mxu0 %v3575
      %4095 = vmatpush1.bf16.msra.mxu0 %v3574
      %4096 = vmatprep.subr.bf16.mxu0 %v3584
      %4097 = vmatpush1.bf16.msra.mxu0 %v3583
      %4098 = vmatprep.subr.bf16.mxu0 %v3593
      %4099 = vmatpush1.bf16.msra.mxu0 %v3592
      %4100 = vmatprep.subr.bf16.mxu0 %v3602
      %4101 = vmatpush1.bf16.msra.mxu0 %v3601
      %4102 = vmatprep.subr.bf16.mxu0 %v3611
      %4103 = vmatpush1.bf16.msra.mxu0 %v3610
      %4104 = vmatprep.subr.bf16.mxu0 %v3620
      %4105 = vmatpush1.bf16.msra.mxu0 %v3619
      %4106 = vmatprep.subr.bf16.mxu0 %v3629
      %4107 = vmatpush1.bf16.msra.mxu0 %v3628
      %4108 = vmatprep.subr.bf16.mxu0 %v3638
      %4109 = vmatpush1.bf16.msra.mxu0 %v3637
      %4110 = vmatprep.subr.bf16.mxu0 %v3647
      %4111 = vmatpush1.bf16.msra.mxu0 %v3646
      %4112 = vmatprep.subr.bf16.mxu0 %v3656
      %4113 = vmatpush1.bf16.msra.mxu0 %v3655
      %4114 = vmatprep.subr.bf16.mxu0 %v3665
      %4115 = vmatpush1.bf16.msra.mxu0 %v3664
      %4116 = vmatprep.subr.bf16.mxu0 %v3674
      %4117 = vmatpush1.bf16.msra.mxu0 %v3673
      %4118 = vmatprep.mubr.bf16.mxu0 %v2654
      %4119 = vmatmul.mubr.bf16.gmra.mrb[0].mxu0 %v2653
      %v4120 = vpop.f32.mrb[0].mxu0
      %v4121 = vadd.f32 0.0, %v4120
      %v4122 = vpop.f32.mrb[0].mxu0
      %v4123 = vadd.f32 0.0, %v4122
      %v4124 = vpop.f32.mrb[0].mxu0
      %v4125 = vadd.f32 0.0, %v4124
      %v4126 = vpop.f32.mrb[0].mxu0
      %v4127 = vadd.f32 0.0, %v4126
      %4128 = vmatprep.mubr.bf16.mxu0 %v2657
      %4129 = vmatmul.mubr.bf16.gmra.mrb[0].mxu0 %v2656
      %v4130 = vpop.f32.mrb[0].mxu0
      %v4131 = vadd.f32 0.0, %v4130
      %v4132 = vpop.f32.mrb[0].mxu0
      %v4133 = vadd.f32 0.0, %v4132
      %v4134 = vpop.f32.mrb[0].mxu0
      %v4135 = vadd.f32 0.0, %v4134
      %v4136 = vpop.f32.mrb[0].mxu0
      %v4137 = vadd.f32 0.0, %v4136
      %4138 = vmatprep.mubr.bf16.mxu0 %v2660
      %4139 = vmatmul.mubr.bf16.gmra.mrb[0].mxu0 %v2659
      %v4140 = vpop.f32.mrb[0].mxu0
      %v4141 = vadd.f32 0.0, %v4140
      %v4142 = vpop.f32.mrb[0].mxu0
      %v4143 = vadd.f32 0.0, %v4142
      %v4144 = vpop.f32.mrb[0].mxu0
      %v4145 = vadd.f32 0.0, %v4144
      %v4146 = vpop.f32.mrb[0].mxu0
      %v4147 = vadd.f32 0.0, %v4146
      %4148 = vdwg.mxu0
      %4149 = vmatprep.subr.bf16.mxu0 %v3683
      %4150 = vmatpush1.bf16.msra.mxu0 %v3682
      %4151 = vmatprep.subr.bf16.mxu0 %v3692
      %4152 = vmatpush1.bf16.msra.mxu0 %v3691
      %4153 = vmatprep.subr.bf16.mxu0 %v3701
      %4154 = vmatpush1.bf16.msra.mxu0 %v3700
      %4155 = vmatprep.subr.bf16.mxu0 %v3710
      %4156 = vmatpush1.bf16.msra.mxu0 %v3709
      %4157 = vmatprep.subr.bf16.mxu0 %v3719
      %4158 = vmatpush1.bf16.msra.mxu0 %v3718
      %4159 = vmatprep.subr.bf16.mxu0 %v3728
      %4160 = vmatpush1.bf16.msra.mxu0 %v3727
      %4161 = vmatprep.subr.bf16.mxu0 %v3737
      %4162 = vmatpush1.bf16.msra.mxu0 %v3736
      %4163 = vmatprep.subr.bf16.mxu0 0
      %4164 = vmatpush1.bf16.msra.mxu0 0
      %4165 = vmatprep.subr.bf16.mxu0 0
      %4166 = vmatpush1.bf16.msra.mxu0 0
      %4167 = vmatprep.subr.bf16.mxu0 0
      %4168 = vmatpush1.bf16.msra.mxu0 0
      %4169 = vmatprep.subr.bf16.mxu0 0
      %4170 = vmatpush1.bf16.msra.mxu0 0
      %4171 = vmatprep.subr.bf16.mxu0 0
      %4172 = vmatpush1.bf16.msra.mxu0 0
      %4173 = vmatprep.subr.bf16.mxu0 0
      %4174 = vmatpush1.bf16.msra.mxu0 0
      %4175 = vmatprep.subr.bf16.mxu0 0
      %4176 = vmatpush1.bf16.msra.mxu0 0
      %4177 = vmatprep.subr.bf16.mxu0 0
      %4178 = vmatpush1.bf16.msra.mxu0 0
      %4179 = vmatprep.subr.bf16.mxu0 0
      %4180 = vmatpush1.bf16.msra.mxu0 0
      %4181 = vmatprep.mubr.bf16.mxu0 0
      %4182 = vmatmul.mubr.bf16.gmra.mrb[0].mxu0 %v3952
      %v4183 = vpop.f32.mrb[0].mxu0
      %v4184 = vadd.f32 %v4121, %v4183
      %v4185 = vpop.f32.mrb[0].mxu0
      %v4186 = vadd.f32 %v4123, %v4185
      %v4187 = vpop.f32.mrb[0].mxu0
      %v4188 = vadd.f32 %v4125, %v4187
      %v4189 = vpop.f32.mrb[0].mxu0
      %v4190 = vadd.f32 %v4127, %v4189
      %4191 = vmatprep.mubr.bf16.mxu0 0
      %4192 = vmatmul.mubr.bf16.gmra.mrb[0].mxu0 %v3955
      %v4193 = vpop.f32.mrb[0].mxu0
      %v4194 = vadd.f32 %v4131, %v4193
      %v4195 = vpop.f32.mrb[0].mxu0
      %v4196 = vadd.f32 %v4133, %v4195
      %v4197 = vpop.f32.mrb[0].mxu0
      %v4198 = vadd.f32 %v4135, %v4197
      %v4199 = vpop.f32.mrb[0].mxu0
      %v4200 = vadd.f32 %v4137, %v4199
      %4201 = vmatprep.mubr.bf16.mxu0 0
      %4202 = vmatmul.mubr.bf16.gmra.mrb[0].mxu0 %v3958
      %v4203 = vpop.f32.mrb[0].mxu0
      %v4204 = vadd.f32 %v4141, %v4203
      %v4205 = vpop.f32.mrb[0].mxu0
      %v4206 = vadd.f32 %v4143, %v4205
      %v4207 = vpop.f32.mrb[0].mxu0
      %v4208 = vadd.f32 %v4145, %v4207
      %v4209 = vpop.f32.mrb[0].mxu0
      %v4210 = vadd.f32 %v4147, %v4209
      %4211 = vdwg.mxu0
      %4212 = vmatprep.subr.bf16.mxu0 %v3541
      %4213 = vmatpush1.bf16.msra.mxu0 %v3540
      %4214 = vmatprep.subr.bf16.mxu0 %v3550
      %4215 = vmatpush1.bf16.msra.mxu0 %v3549
      %4216 = vmatprep.subr.bf16.mxu0 %v3559
      %4217 = vmatpush1.bf16.msra.mxu0 %v3558
      %4218 = vmatprep.subr.bf16.mxu0 %v3568
      %4219 = vmatpush1.bf16.msra.mxu0 %v3567
      %4220 = vmatprep.subr.bf16.mxu0 %v3577
      %4221 = vmatpush1.bf16.msra.mxu0 %v3576
      %4222 = vmatprep.subr.bf16.mxu0 %v3586
      %4223 = vmatpush1.bf16.msra.mxu0 %v3585
      %4224 = vmatprep.subr.bf16.mxu0 %v3595
      %4225 = vmatpush1.bf16.msra.mxu0 %v3594
      %4226 = vmatprep.subr.bf16.mxu0 %v3604
      %4227 = vmatpush1.bf16.msra.mxu0 %v3603
      %4228 = vmatprep.subr.bf16.mxu0 %v3613
      %4229 = vmatpush1.bf16.msra.mxu0 %v3612
      %4230 = vmatprep.subr.bf16.mxu0 %v3622
      %4231 = vmatpush1.bf16.msra.mxu0 %v3621
      %4232 = vmatprep.subr.bf16.mxu0 %v3631
      %4233 = vmatpush1.bf16.msra.mxu0 %v3630
      %4234 = vmatprep.subr.bf16.mxu0 %v3640
      %4235 = vmatpush1.bf16.msra.mxu0 %v3639
      %4236 = vmatprep.subr.bf16.mxu0 %v3649
      %4237 = vmatpush1.bf16.msra.mxu0 %v3648
      %4238 = vmatprep.subr.bf16.mxu0 %v3658
      %4239 = vmatpush1.bf16.msra.mxu0 %v3657
      %4240 = vmatprep.subr.bf16.mxu0 %v3667
      %4241 = vmatpush1.bf16.msra.mxu0 %v3666
      %4242 = vmatprep.subr.bf16.mxu0 %v3676
      %4243 = vmatpush1.bf16.msra.mxu0 %v3675
      %4244 = vmatprep.mubr.bf16.mxu0 %v2654
      %4245 = vmatmul.mubr.bf16.gmra.mrb[0].mxu0 %v2653
      %v4246 = vpop.f32.mrb[0].mxu0
      %v4247 = vadd.f32 0.0, %v4246
      %v4248 = vpop.f32.mrb[0].mxu0
      %v4249 = vadd.f32 0.0, %v4248
      %v4250 = vpop.f32.mrb[0].mxu0
      %v4251 = vadd.f32 0.0, %v4250
      %v4252 = vpop.f32.mrb[0].mxu0
      %v4253 = vadd.f32 0.0, %v4252
      %4254 = vmatprep.mubr.bf16.mxu0 %v2657
      %4255 = vmatmul.mubr.bf16.gmra.mrb[0].mxu0 %v2656
      %v4256 = vpop.f32.mrb[0].mxu0
      %v4257 = vadd.f32 0.0, %v4256
      %v4258 = vpop.f32.mrb[0].mxu0
      %v4259 = vadd.f32 0.0, %v4258
      %v4260 = vpop.f32.mrb[0].mxu0
      %v4261 = vadd.f32 0.0, %v4260
      %v4262 = vpop.f32.mrb[0].mxu0
      %v4263 = vadd.f32 0.0, %v4262
      %4264 = vmatprep.mubr.bf16.mxu0 %v2660
      %4265 = vmatmul.mubr.bf16.gmra.mrb[0].mxu0 %v2659
      %v4266 = vpop.f32.mrb[0].mxu0
      %v4267 = vadd.f32 0.0, %v4266
      %v4268 = vpop.f32.mrb[0].mxu0
      %v4269 = vadd.f32 0.0, %v4268
      %v4270 = vpop.f32.mrb[0].mxu0
      %v4271 = vadd.f32 0.0, %v4270
      %v4272 = vpop.f32.mrb[0].mxu0
      %v4273 = vadd.f32 0.0, %v4272
      %4274 = vdwg.mxu0
      %4275 = vmatprep.subr.bf16.mxu0 %v3685
      %4276 = vmatpush1.bf16.msra.mxu0 %v3684
      %4277 = vmatprep.subr.bf16.mxu0 %v3694
      %4278 = vmatpush1.bf16.msra.mxu0 %v3693
      %4279 = vmatprep.subr.bf16.mxu0 %v3703
      %4280 = vmatpush1.bf16.msra.mxu0 %v3702
      %4281 = vmatprep.subr.bf16.mxu0 %v3712
      %4282 = vmatpush1.bf16.msra.mxu0 %v3711
      %4283 = vmatprep.subr.bf16.mxu0 %v3721
      %4284 = vmatpush1.bf16.msra.mxu0 %v3720
      %4285 = vmatprep.subr.bf16.mxu0 %v3730
      %4286 = vmatpush1.bf16.msra.mxu0 %v3729
      %4287 = vmatprep.subr.bf16.mxu0 %v3739
      %4288 = vmatpush1.bf16.msra.mxu0 %v3738
      %4289 = vmatprep.subr.bf16.mxu0 0
      %4290 = vmatpush1.bf16.msra.mxu0 0
      %4291 = vmatprep.subr.bf16.mxu0 0
      %4292 = vmatpush1.bf16.msra.mxu0 0
      %4293 = vmatprep.subr.bf16.mxu0 0
      %4294 = vmatpush1.bf16.msra.mxu0 0
      %4295 = vmatprep.subr.bf16.mxu0 0
      %4296 = vmatpush1.bf16.msra.mxu0 0
      %4297 = vmatprep.subr.bf16.mxu0 0
      %4298 = vmatpush1.bf16.msra.mxu0 0
      %4299 = vmatprep.subr.bf16.mxu0 0
      %4300 = vmatpush1.bf16.msra.mxu0 0
      %4301 = vmatprep.subr.bf16.mxu0 0
      %4302 = vmatpush1.bf16.msra.mxu0 0
      %4303 = vmatprep.subr.bf16.mxu0 0
      %4304 = vmatpush1.bf16.msra.mxu0 0
      %4305 = vmatprep.subr.bf16.mxu0 0
      %4306 = vmatpush1.bf16.msra.mxu0 0
      %4307 = vmatprep.mubr.bf16.mxu0 0
      %4308 = vmatmul.mubr.bf16.gmra.mrb[0].mxu0 %v3952
      %v4309 = vpop.f32.mrb[0].mxu0
      %v4310 = vadd.f32 %v4247, %v4309
      %v4311 = vpop.f32.mrb[0].mxu0
      %v4312 = vadd.f32 %v4249, %v4311
      %v4313 = vpop.f32.mrb[0].mxu0
      %v4314 = vadd.f32 %v4251, %v4313
      %v4315 = vpop.f32.mrb[0].mxu0
      %v4316 = vadd.f32 %v4253, %v4315
      %4317 = vmatprep.mubr.bf16.mxu0 0
      %4318 = vmatmul.mubr.bf16.gmra.mrb[0].mxu0 %v3955
      %v4319 = vpop.f32.mrb[0].mxu0
      %v4320 = vadd.f32 %v4257, %v4319
      %v4321 = vpop.f32.mrb[0].mxu0
      %v4322 = vadd.f32 %v4259, %v4321
      %v4323 = vpop.f32.mrb[0].mxu0
      %v4324 = vadd.f32 %v4261, %v4323
      %v4325 = vpop.f32.mrb[0].mxu0
      %v4326 = vadd.f32 %v4263, %v4325
      %4327 = vmatprep.mubr.bf16.mxu0 0
      %4328 = vmatmul.mubr.bf16.gmra.mrb[0].mxu0 %v3958
      %v4329 = vpop.f32.mrb[0].mxu0
      %v4330 = vadd.f32 %v4267, %v4329
      %v4331 = vpop.f32.mrb[0].mxu0
      %v4332 = vadd.f32 %v4269, %v4331
      %v4333 = vpop.f32.mrb[0].mxu0
      %v4334 = vadd.f32 %v4271, %v4333
      %v4335 = vpop.f32.mrb[0].mxu0
      %v4336 = vadd.f32 %v4273, %v4335
      %4337 = vdwg.mxu0
      %4338 = vmatprep.subr.bf16.mxu0 %v3543
      %4339 = vmatpush1.bf16.msra.mxu0 %v3542
      %4340 = vmatprep.subr.bf16.mxu0 %v3552
      %4341 = vmatpush1.bf16.msra.mxu0 %v3551
      %4342 = vmatprep.subr.bf16.mxu0 %v3561
      %4343 = vmatpush1.bf16.msra.mxu0 %v3560
      %4344 = vmatprep.subr.bf16.mxu0 %v3570
      %4345 = vmatpush1.bf16.msra.mxu0 %v3569
      %4346 = vmatprep.subr.bf16.mxu0 %v3579
      %4347 = vmatpush1.bf16.msra.mxu0 %v3578
      %4348 = vmatprep.subr.bf16.mxu0 %v3588
      %4349 = vmatpush1.bf16.msra.mxu0 %v3587
      %4350 = vmatprep.subr.bf16.mxu0 %v3597
      %4351 = vmatpush1.bf16.msra.mxu0 %v3596
      %4352 = vmatprep.subr.bf16.mxu0 %v3606
      %4353 = vmatpush1.bf16.msra.mxu0 %v3605
      %4354 = vmatprep.subr.bf16.mxu0 %v3615
      %4355 = vmatpush1.bf16.msra.mxu0 %v3614
      %4356 = vmatprep.subr.bf16.mxu0 %v3624
      %4357 = vmatpush1.bf16.msra.mxu0 %v3623
      %4358 = vmatprep.subr.bf16.mxu0 %v3633
      %4359 = vmatpush1.bf16.msra.mxu0 %v3632
      %4360 = vmatprep.subr.bf16.mxu0 %v3642
      %4361 = vmatpush1.bf16.msra.mxu0 %v3641
      %4362 = vmatprep.subr.bf16.mxu0 %v3651
      %4363 = vmatpush1.bf16.msra.mxu0 %v3650
      %4364 = vmatprep.subr.bf16.mxu0 %v3660
      %4365 = vmatpush1.bf16.msra.mxu0 %v3659
      %4366 = vmatprep.subr.bf16.mxu0 %v3669
      %4367 = vmatpush1.bf16.msra.mxu0 %v3668
      %4368 = vmatprep.subr.bf16.mxu0 %v3678
      %4369 = vmatpush1.bf16.msra.mxu0 %v3677
      %4370 = vmatprep.mubr.bf16.mxu0 %v2654
      %4371 = vmatmul.mubr.bf16.gmra.mrb[0].mxu0 %v2653
      %v4372 = vpop.f32.mrb[0].mxu0
      %v4373 = vadd.f32 0.0, %v4372
      %v4374 = vpop.f32.mrb[0].mxu0
      %v4375 = vadd.f32 0.0, %v4374
      %v4376 = vpop.f32.mrb[0].mxu0
      %v4377 = vadd.f32 0.0, %v4376
      %v4378 = vpop.f32.mrb[0].mxu0
      %v4379 = vadd.f32 0.0, %v4378
      %4380 = vmatprep.mubr.bf16.mxu0 %v2657
      %4381 = vmatmul.mubr.bf16.gmra.mrb[0].mxu0 %v2656
      %v4382 = vpop.f32.mrb[0].mxu0
      %v4383 = vadd.f32 0.0, %v4382
      %v4384 = vpop.f32.mrb[0].mxu0
      %v4385 = vadd.f32 0.0, %v4384
      %v4386 = vpop.f32.mrb[0].mxu0
      %v4387 = vadd.f32 0.0, %v4386
      %v4388 = vpop.f32.mrb[0].mxu0
      %v4389 = vadd.f32 0.0, %v4388
      %4390 = vmatprep.mubr.bf16.mxu0 %v2660
      %4391 = vmatmul.mubr.bf16.gmra.mrb[0].mxu0 %v2659
      %v4392 = vpop.f32.mrb[0].mxu0
      %v4393 = vadd.f32 0.0, %v4392
      %v4394 = vpop.f32.mrb[0].mxu0
      %v4395 = vadd.f32 0.0, %v4394
      %v4396 = vpop.f32.mrb[0].mxu0
      %v4397 = vadd.f32 0.0, %v4396
      %v4398 = vpop.f32.mrb[0].mxu0
      %v4399 = vadd.f32 0.0, %v4398
      %4400 = vdwg.mxu0
      %4401 = vmatprep.subr.bf16.mxu0 %v3687
      %4402 = vmatpush1.bf16.msra.mxu0 %v3686
      %4403 = vmatprep.subr.bf16.mxu0 %v3696
      %4404 = vmatpush1.bf16.msra.mxu0 %v3695
      %4405 = vmatprep.subr.bf16.mxu0 %v3705
      %4406 = vmatpush1.bf16.msra.mxu0 %v3704
      %4407 = vmatprep.subr.bf16.mxu0 %v3714
      %4408 = vmatpush1.bf16.msra.mxu0 %v3713
      %4409 = vmatprep.subr.bf16.mxu0 %v3723
      %4410 = vmatpush1.bf16.msra.mxu0 %v3722
      %4411 = vmatprep.subr.bf16.mxu0 %v3732
      %4412 = vmatpush1.bf16.msra.mxu0 %v3731
      %4413 = vmatprep.subr.bf16.mxu0 %v3741
      %4414 = vmatpush1.bf16.msra.mxu0 %v3740
      %4415 = vmatprep.subr.bf16.mxu0 0
      %4416 = vmatpush1.bf16.msra.mxu0 0
      %4417 = vmatprep.subr.bf16.mxu0 0
      %4418 = vmatpush1.bf16.msra.mxu0 0
      %4419 = vmatprep.subr.bf16.mxu0 0
      %4420 = vmatpush1.bf16.msra.mxu0 0
      %4421 = vmatprep.subr.bf16.mxu0 0
      %4422 = vmatpush1.bf16.msra.mxu0 0
      %4423 = vmatprep.subr.bf16.mxu0 0
      %4424 = vmatpush1.bf16.msra.mxu0 0
      %4425 = vmatprep.subr.bf16.mxu0 0
      %4426 = vmatpush1.bf16.msra.mxu0 0
      %4427 = vmatprep.subr.bf16.mxu0 0
      %4428 = vmatpush1.bf16.msra.mxu0 0
      %4429 = vmatprep.subr.bf16.mxu0 0
      %4430 = vmatpush1.bf16.msra.mxu0 0
      %4431 = vmatprep.subr.bf16.mxu0 0
      %4432 = vmatpush1.bf16.msra.mxu0 0
      %4433 = vmatprep.mubr.bf16.mxu0 0
      %4434 = vmatmul.mubr.bf16.gmra.mrb[0].mxu0 %v3952
      %v4435 = vpop.f32.mrb[0].mxu0
      %v4436 = vadd.f32 %v4373, %v4435
      %v4437 = vpop.f32.mrb[0].mxu0
      %v4438 = vadd.f32 %v4375, %v4437
      %v4439 = vpop.f32.mrb[0].mxu0
      %v4440 = vadd.f32 %v4377, %v4439
      %v4441 = vpop.f32.mrb[0].mxu0
      %v4442 = vadd.f32 %v4379, %v4441
      %4443 = vmatprep.mubr.bf16.mxu0 0
      %4444 = vmatmul.mubr.bf16.gmra.mrb[0].mxu0 %v3955
      %v4445 = vpop.f32.mrb[0].mxu0
      %v4446 = vadd.f32 %v4383, %v4445
      %v4447 = vpop.f32.mrb[0].mxu0
      %v4448 = vadd.f32 %v4385, %v4447
      %v4449 = vpop.f32.mrb[0].mxu0
      %v4450 = vadd.f32 %v4387, %v4449
      %v4451 = vpop.f32.mrb[0].mxu0
      %v4452 = vadd.f32 %v4389, %v4451
      %4453 = vmatprep.mubr.bf16.mxu0 0
      %4454 = vmatmul.mubr.bf16.gmra.mrb[0].mxu0 %v3958
      %v4455 = vpop.f32.mrb[0].mxu0
      %v4456 = vadd.f32 %v4393, %v4455
      %v4457 = vpop.f32.mrb[0].mxu0
      %v4458 = vadd.f32 %v4395, %v4457
      %v4459 = vpop.f32.mrb[0].mxu0
      %v4460 = vadd.f32 %v4397, %v4459
      %v4461 = vpop.f32.mrb[0].mxu0
      %v4462 = vadd.f32 %v4399, %v4461
      %4463 = vdwg.mxu0
      %4464 = vmatprep.subr.bf16.mxu0 0
      %4465 = vmatpush1.bf16.msra.mxu0 %v3544
      %4466 = vmatprep.subr.bf16.mxu0 0
      %4467 = vmatpush1.bf16.msra.mxu0 %v3553
      %4468 = vmatprep.subr.bf16.mxu0 0
      %4469 = vmatpush1.bf16.msra.mxu0 %v3562
      %4470 = vmatprep.subr.bf16.mxu0 0
      %4471 = vmatpush1.bf16.msra.mxu0 %v3571
      %4472 = vmatprep.subr.bf16.mxu0 0
      %4473 = vmatpush1.bf16.msra.mxu0 %v3580
      %4474 = vmatprep.subr.bf16.mxu0 0
      %4475 = vmatpush1.bf16.msra.mxu0 %v3589
      %4476 = vmatprep.subr.bf16.mxu0 0
      %4477 = vmatpush1.bf16.msra.mxu0 %v3598
      %4478 = vmatprep.subr.bf16.mxu0 0
      %4479 = vmatpush1.bf16.msra.mxu0 %v3607
      %4480 = vmatprep.subr.bf16.mxu0 0
      %4481 = vmatpush1.bf16.msra.mxu0 %v3616
      %4482 = vmatprep.subr.bf16.mxu0 0
      %4483 = vmatpush1.bf16.msra.mxu0 %v3625
      %4484 = vmatprep.subr.bf16.mxu0 0
      %4485 = vmatpush1.bf16.msra.mxu0 %v3634
      %4486 = vmatprep.subr.bf16.mxu0 0
      %4487 = vmatpush1.bf16.msra.mxu0 %v3643
      %4488 = vmatprep.subr.bf16.mxu0 0
      %4489 = vmatpush1.bf16.msra.mxu0 %v3652
      %4490 = vmatprep.subr.bf16.mxu0 0
      %4491 = vmatpush1.bf16.msra.mxu0 %v3661
      %4492 = vmatprep.subr.bf16.mxu0 0
      %4493 = vmatpush1.bf16.msra.mxu0 %v3670
      %4494 = vmatprep.subr.bf16.mxu0 0
      %4495 = vmatpush1.bf16.msra.mxu0 %v3679
      %4496 = vmatprep.mubr.bf16.mxu0 %v2654
      %4497 = vmatmul.mubr.bf16.gmra.mrb[0].mxu0 %v2653
      %v4498 = vpop.f32.mrb[0].mxu0
      %v4499 = vadd.f32 0.0, %v4498
      %v4500 = vpop.f32.mrb[0].mxu0
      %v4501 = vpop.f32.mrb[0].mxu0
      %v4502 = vadd.f32 0.0, %v4501
      %v4503 = vpop.f32.mrb[0].mxu0
      %4504 = vmatprep.mubr.bf16.mxu0 %v2657
      %4505 = vmatmul.mubr.bf16.gmra.mrb[0].mxu0 %v2656
      %v4506 = vpop.f32.mrb[0].mxu0
      %v4507 = vadd.f32 0.0, %v4506
      %v4508 = vpop.f32.mrb[0].mxu0
      %v4509 = vpop.f32.mrb[0].mxu0
      %v4510 = vadd.f32 0.0, %v4509
      %v4511 = vpop.f32.mrb[0].mxu0
      %4512 = vmatprep.mubr.bf16.mxu0 %v2660
      %4513 = vmatmul.mubr.bf16.gmra.mrb[0].mxu0 %v2659
      %v4514 = vpop.f32.mrb[0].mxu0
      %v4515 = vadd.f32 0.0, %v4514
      %v4516 = vpop.f32.mrb[0].mxu0
      %v4517 = vpop.f32.mrb[0].mxu0
      %v4518 = vadd.f32 0.0, %v4517
      %v4519 = vpop.f32.mrb[0].mxu0
      %4520 = vdwg.mxu0
      %4521 = vmatprep.subr.bf16.mxu0 0
      %4522 = vmatpush1.bf16.msra.mxu0 %v3688
      %4523 = vmatprep.subr.bf16.mxu0 0
      %4524 = vmatpush1.bf16.msra.mxu0 %v3697
      %4525 = vmatprep.subr.bf16.mxu0 0
      %4526 = vmatpush1.bf16.msra.mxu0 %v3706
      %4527 = vmatprep.subr.bf16.mxu0 0
      %4528 = vmatpush1.bf16.msra.mxu0 %v3715
      %4529 = vmatprep.subr.bf16.mxu0 0
      %4530 = vmatpush1.bf16.msra.mxu0 %v3724
      %4531 = vmatprep.subr.bf16.mxu0 0
      %4532 = vmatpush1.bf16.msra.mxu0 %v3733
      %4533 = vmatprep.subr.bf16.mxu0 0
      %4534 = vmatpush1.bf16.msra.mxu0 %v3742
      %4535 = vmatprep.subr.bf16.mxu0 0
      %4536 = vmatpush1.bf16.msra.mxu0 0
      %4537 = vmatprep.subr.bf16.mxu0 0
      %4538 = vmatpush1.bf16.msra.mxu0 0
      %4539 = vmatprep.subr.bf16.mxu0 0
      %4540 = vmatpush1.bf16.msra.mxu0 0
      %4541 = vmatprep.subr.bf16.mxu0 0
      %4542 = vmatpush1.bf16.msra.mxu0 0
      %4543 = vmatprep.subr.bf16.mxu0 0
      %4544 = vmatpush1.bf16.msra.mxu0 0
      %4545 = vmatprep.subr.bf16.mxu0 0
      %4546 = vmatpush1.bf16.msra.mxu0 0
      %4547 = vmatprep.subr.bf16.mxu0 0
      %4548 = vmatpush1.bf16.msra.mxu0 0
      %4549 = vmatprep.subr.bf16.mxu0 0
      %4550 = vmatpush1.bf16.msra.mxu0 0
      %4551 = vmatprep.subr.bf16.mxu0 0
      %4552 = vmatpush1.bf16.msra.mxu0 0
      %4553 = vmatprep.mubr.bf16.mxu0 0
      %4554 = vmatmul.mubr.bf16.gmra.mrb[0].mxu0 %v3952
      %v4555 = vpop.f32.mrb[0].mxu0
      %v4556 = vadd.f32 %v4499, %v4555
      %v4557 = vpop.f32.mrb[0].mxu0
      %v4558 = vpop.f32.mrb[0].mxu0
      %v4559 = vadd.f32 %v4502, %v4558
      %v4560 = vpop.f32.mrb[0].mxu0
      %4561 = vmatprep.mubr.bf16.mxu0 0
      %4562 = vmatmul.mubr.bf16.gmra.mrb[0].mxu0 %v3955
      %v4563 = vpop.f32.mrb[0].mxu0
      %v4564 = vadd.f32 %v4507, %v4563
      %v4565 = vpop.f32.mrb[0].mxu0
      %v4566 = vpop.f32.mrb[0].mxu0
      %v4567 = vadd.f32 %v4510, %v4566
      %v4568 = vpop.f32.mrb[0].mxu0
      %4569 = vmatprep.mubr.bf16.mxu0 0
      %4570 = vmatmul.mubr.bf16.gmra.mrb[0].mxu0 %v3958
      %v4571 = vpop.f32.mrb[0].mxu0
      %v4572 = vadd.f32 %v4515, %v4571
      %v4573 = vpop.f32.mrb[0].mxu0
      %v4574 = vpop.f32.mrb[0].mxu0
      %v4575 = vadd.f32 %v4518, %v4574
      %v4576 = vpop.f32.mrb[0].mxu0
      %4577 = vdwg.mxu0
      %v4578 = vpack.c.bf16 %v4062, %v4058
      %v4579 = vpack.c.bf16 %v4064, %v4060
      %v4580 = vpack.c.bf16 %v4188, %v4184
      %v4581 = vpack.c.bf16 %v4190, %v4186
      %v4582 = vpack.c.bf16 %v4314, %v4310
      %v4583 = vpack.c.bf16 %v4316, %v4312
      %v4584 = vpack.c.bf16 %v4440, %v4436
      %v4585 = vpack.c.bf16 %v4442, %v4438
      %v4586 = vpack.c.bf16 %v4559, %v4556
      %v4587 = vpack.c.bf16 %v4072, %v4068
      %v4588 = vpack.c.bf16 %v4074, %v4070
      %v4589 = vpack.c.bf16 %v4198, %v4194
      %v4590 = vpack.c.bf16 %v4200, %v4196
      %v4591 = vpack.c.bf16 %v4324, %v4320
      %v4592 = vpack.c.bf16 %v4326, %v4322
      %v4593 = vpack.c.bf16 %v4450, %v4446
      %v4594 = vpack.c.bf16 %v4452, %v4448
      %v4595 = vpack.c.bf16 %v4567, %v4564
      %v4596 = vpack.c.bf16 %v4082, %v4078
      %v4597 = vpack.c.bf16 %v4084, %v4080
      %v4598 = vpack.c.bf16 %v4208, %v4204
      %v4599 = vpack.c.bf16 %v4210, %v4206
      %v4600 = vpack.c.bf16 %v4334, %v4330
      %v4601 = vpack.c.bf16 %v4336, %v4332
      %v4602 = vpack.c.bf16 %v4460, %v4456
      %v4603 = vpack.c.bf16 %v4462, %v4458
      %v4604 = vpack.c.bf16 %v4575, %v4572
      %v4605 = vld [vmem:[%s6] sm:$0xff]
      %v4606 = vld [vmem:[%s6 + $0x8] sm:$0xff]
      %v4607 = vld [vmem:[%s6 + $0x10] sm:$0xff]
      %v4608 = vld [vmem:[%s6 + $0x18] sm:$0xff]
      %v4609 = vld [vmem:[%s6 + $0x20] sm:$0xff]
      %v4610 = vld [vmem:[%s6 + $0x28] sm:$0xff]
      %v4611 = vld [vmem:[%s5] sm:$0xf]
      %v4612 = vld [vmem:[%s5 + $0x4] sm:$0xf]
      %v4613 = vld [vmem:[%s5 + $0x8] sm:$0xf]
      %v4614 = vld [vmem:[%s5 + $0xc] sm:$0xf]
      %v4615 = vld [vmem:[%s5 + $0x10] sm:$0xf]
      %v4616 = vld [vmem:[%s5 + $0x14] sm:$0xf]
      %v4623 = vunpack.c.l.b16 %v4611
      %v4624 = vunpack.c.l.b16 %v4612
      %v4625 = vunpack.c.l.b16 %v4613
      %v4626 = vunpack.c.l.b16 %v4614
      %v4627 = vunpack.c.l.b16 %v4615
      %v4628 = vunpack.c.l.b16 %v4616
      %v4629 = vpack.c.b16 %v4624, %v4623
      %v4630 = vpack.c.b16 %v4626, %v4625
      %v4631 = vpack.c.b16 %v4628, %v4627
      %v4633 = vsel %vm2487, %v4629, 0
      %v4636 = vsel %vm2487, %v4630, 0
      %v4639 = vsel %vm2487, %v4631, 0
      %4641 = vmatprep.subr.bf16.mxu0 0
      %4642 = vmatpush1.bf16.msra.mxu0 %v4578
      %4643 = vmatprep.subr.bf16.mxu0 0
      %4644 = vmatpush1.bf16.msra.mxu0 %v4587
      %4645 = vmatprep.subr.bf16.mxu0 0
      %4646 = vmatpush1.bf16.msra.mxu0 %v4596
      %4647 = vmatprep.subr.bf16.mxu0 0
      %4648 = vmatpush1.bf16.msra.mxu0 0
      %4649 = vmatprep.subr.bf16.mxu0 0
      %4650 = vmatpush1.bf16.msra.mxu0 0
      %4651 = vmatprep.subr.bf16.mxu0 0
      %4652 = vmatpush1.bf16.msra.mxu0 0
      %4653 = vmatprep.subr.bf16.mxu0 0
      %4654 = vmatpush1.bf16.msra.mxu0 0
      %4655 = vmatprep.subr.bf16.mxu0 0
      %4656 = vmatpush1.bf16.msra.mxu0 0
      %4657 = vmatprep.subr.bf16.mxu0 0
      %4658 = vmatpush1.bf16.msra.mxu0 0
      %4659 = vmatprep.subr.bf16.mxu0 0
      %4660 = vmatpush1.bf16.msra.mxu0 0
      %4661 = vmatprep.subr.bf16.mxu0 0
      %4662 = vmatpush1.bf16.msra.mxu0 0
      %4663 = vmatprep.subr.bf16.mxu0 0
      %4664 = vmatpush1.bf16.msra.mxu0 0
      %4665 = vmatprep.subr.bf16.mxu0 0
      %4666 = vmatpush1.bf16.msra.mxu0 0
      %4667 = vmatprep.subr.bf16.mxu0 0
      %4668 = vmatpush1.bf16.msra.mxu0 0
      %4669 = vmatprep.subr.bf16.mxu0 0
      %4670 = vmatpush1.bf16.msra.mxu0 0
      %4671 = vmatprep.subr.bf16.mxu0 0
      %4672 = vmatpush1.bf16.msra.mxu0 0
      %4673 = vmatprep.mubr.bf16.mxu0 0
      %4674 = vmatmul.mubr.bf16.gmra.mrb[0].mxu0 %v4633
      %v4675 = vpop.f32.mrb[0].mxu0
      %v4676 = vadd.f32 0.0, %v4675
      %v4677 = vpop.f32.mrb[0].mxu0
      %v4678 = vpop.f32.mrb[0].mxu0
      %v4679 = vadd.f32 0.0, %v4678
      %v4680 = vpop.f32.mrb[0].mxu0
      %4681 = vmatprep.mubr.bf16.mxu0 0
      %4682 = vmatmul.mubr.bf16.gmra.mrb[0].mxu0 %v4636
      %v4683 = vpop.f32.mrb[0].mxu0
      %v4684 = vadd.f32 0.0, %v4683
      %v4685 = vpop.f32.mrb[0].mxu0
      %v4686 = vpop.f32.mrb[0].mxu0
      %v4687 = vadd.f32 0.0, %v4686
      %v4688 = vpop.f32.mrb[0].mxu0
      %4689 = vmatprep.mubr.bf16.mxu0 0
      %4690 = vmatmul.mubr.bf16.gmra.mrb[0].mxu0 %v4639
      %v4691 = vpop.f32.mrb[0].mxu0
      %v4692 = vadd.f32 0.0, %v4691
      %v4693 = vpop.f32.mrb[0].mxu0
      %v4694 = vpop.f32.mrb[0].mxu0
      %v4695 = vadd.f32 0.0, %v4694
      %v4696 = vpop.f32.mrb[0].mxu0
      %4697 = vdwg.mxu0
      %v4698 = vadd.f32 %v4605, %v4676
      %v4699 = vadd.f32 %v4606, %v4679
      %v4700 = vadd.f32 %v4607, %v4684
      %v4701 = vadd.f32 %v4608, %v4687
      %v4702 = vadd.f32 %v4609, %v4692
      %v4703 = vadd.f32 %v4610, %v4695
      %s4704 = scalar_lea.vmem %s5, 24
      %v4705 = vld [vmem:[%s4704] sm:$0xf]
      %v4706 = vld [vmem:[%s4704 + $0x4] sm:$0xf]
      %v4707 = vld [vmem:[%s4704 + $0x8] sm:$0xf]
      %v4708 = vld [vmem:[%s4704 + $0xc] sm:$0xf]
      %v4709 = vld [vmem:[%s4704 + $0x10] sm:$0xf]
      %v4710 = vld [vmem:[%s4704 + $0x14] sm:$0xf]
      %v4717 = vunpack.c.l.b16 %v4705
      %v4718 = vunpack.c.l.b16 %v4706
      %v4719 = vunpack.c.l.b16 %v4707
      %v4720 = vunpack.c.l.b16 %v4708
      %v4721 = vunpack.c.l.b16 %v4709
      %v4722 = vunpack.c.l.b16 %v4710
      %v4723 = vpack.c.b16 %v4718, %v4717
      %v4724 = vpack.c.b16 %v4720, %v4719
      %v4725 = vpack.c.b16 %v4722, %v4721
      %v4727 = vsel %vm2487, %v4723, 0
      %v4730 = vsel %vm2487, %v4724, 0
      %v4733 = vsel %vm2487, %v4725, 0
      %4735 = vmatprep.subr.bf16.mxu0 0
      %4736 = vmatpush1.bf16.msra.mxu0 %v4579
      %4737 = vmatprep.subr.bf16.mxu0 0
      %4738 = vmatpush1.bf16.msra.mxu0 %v4588
      %4739 = vmatprep.subr.bf16.mxu0 0
      %4740 = vmatpush1.bf16.msra.mxu0 %v4597
      %4741 = vmatprep.subr.bf16.mxu0 0
      %4742 = vmatpush1.bf16.msra.mxu0 0
      %4743 = vmatprep.subr.bf16.mxu0 0
      %4744 = vmatpush1.bf16.msra.mxu0 0
      %4745 = vmatprep.subr.bf16.mxu0 0
      %4746 = vmatpush1.bf16.msra.mxu0 0
      %4747 = vmatprep.subr.bf16.mxu0 0
      %4748 = vmatpush1.bf16.msra.mxu0 0
      %4749 = vmatprep.subr.bf16.mxu0 0
      %4750 = vmatpush1.bf16.msra.mxu0 0
      %4751 = vmatprep.subr.bf16.mxu0 0
      %4752 = vmatpush1.bf16.msra.mxu0 0
      %4753 = vmatprep.subr.bf16.mxu0 0
      %4754 = vmatpush1.bf16.msra.mxu0 0
      %4755 = vmatprep.subr.bf16.mxu0 0
      %4756 = vmatpush1.bf16.msra.mxu0 0
      %4757 = vmatprep.subr.bf16.mxu0 0
      %4758 = vmatpush1.bf16.msra.mxu0 0
      %4759 = vmatprep.subr.bf16.mxu0 0
      %4760 = vmatpush1.bf16.msra.mxu0 0
      %4761 = vmatprep.subr.bf16.mxu0 0
      %4762 = vmatpush1.bf16.msra.mxu0 0
      %4763 = vmatprep.subr.bf16.mxu0 0
      %4764 = vmatpush1.bf16.msra.mxu0 0
      %4765 = vmatprep.subr.bf16.mxu0 0
      %4766 = vmatpush1.bf16.msra.mxu0 0
      %4767 = vmatprep.mubr.bf16.mxu0 0
      %4768 = vmatmul.mubr.bf16.gmra.mrb[0].mxu0 %v4727
      %v4769 = vpop.f32.mrb[0].mxu0
      %v4770 = vadd.f32 0.0, %v4769
      %v4771 = vpop.f32.mrb[0].mxu0
      %v4772 = vpop.f32.mrb[0].mxu0
      %v4773 = vadd.f32 0.0, %v4772
      %v4774 = vpop.f32.mrb[0].mxu0
      %4775 = vmatprep.mubr.bf16.mxu0 0
      %4776 = vmatmul.mubr.bf16.gmra.mrb[0].mxu0 %v4730
      %v4777 = vpop.f32.mrb[0].mxu0
      %v4778 = vadd.f32 0.0, %v4777
      %v4779 = vpop.f32.mrb[0].mxu0
      %v4780 = vpop.f32.mrb[0].mxu0
      %v4781 = vadd.f32 0.0, %v4780
      %v4782 = vpop.f32.mrb[0].mxu0
      %4783 = vmatprep.mubr.bf16.mxu0 0
      %4784 = vmatmul.mubr.bf16.gmra.mrb[0].mxu0 %v4733
      %v4785 = vpop.f32.mrb[0].mxu0
      %v4786 = vadd.f32 0.0, %v4785
      %v4787 = vpop.f32.mrb[0].mxu0
      %v4788 = vpop.f32.mrb[0].mxu0
      %v4789 = vadd.f32 0.0, %v4788
      %v4790 = vpop.f32.mrb[0].mxu0
      %4791 = vdwg.mxu0
      %v4792 = vadd.f32 %v4698, %v4770
      %v4793 = vadd.f32 %v4699, %v4773
      %v4794 = vadd.f32 %v4700, %v4778
      %v4795 = vadd.f32 %v4701, %v4781
      %v4796 = vadd.f32 %v4702, %v4786
      %v4797 = vadd.f32 %v4703, %v4789
      %s4798 = scalar_lea.vmem %s5, 48
      %v4799 = vld [vmem:[%s4798] sm:$0xf]
      %v4800 = vld [vmem:[%s4798 + $0x4] sm:$0xf]
      %v4801 = vld [vmem:[%s4798 + $0x8] sm:$0xf]
      %v4802 = vld [vmem:[%s4798 + $0xc] sm:$0xf]
      %v4803 = vld [vmem:[%s4798 + $0x10] sm:$0xf]
      %v4804 = vld [vmem:[%s4798 + $0x14] sm:$0xf]
      %v4811 = vunpack.c.l.b16 %v4799
      %v4812 = vunpack.c.l.b16 %v4800
      %v4813 = vunpack.c.l.b16 %v4801
      %v4814 = vunpack.c.l.b16 %v4802
      %v4815 = vunpack.c.l.b16 %v4803
      %v4816 = vunpack.c.l.b16 %v4804
      %v4817 = vpack.c.b16 %v4812, %v4811
      %v4818 = vpack.c.b16 %v4814, %v4813
      %v4819 = vpack.c.b16 %v4816, %v4815
      %v4821 = vsel %vm2487, %v4817, 0
      %v4824 = vsel %vm2487, %v4818, 0
      %v4827 = vsel %vm2487, %v4819, 0
      %4829 = vmatprep.subr.bf16.mxu0 0
      %4830 = vmatpush1.bf16.msra.mxu0 %v4580
      %4831 = vmatprep.subr.bf16.mxu0 0
      %4832 = vmatpush1.bf16.msra.mxu0 %v4589
      %4833 = vmatprep.subr.bf16.mxu0 0
      %4834 = vmatpush1.bf16.msra.mxu0 %v4598
      %4835 = vmatprep.subr.bf16.mxu0 0
      %4836 = vmatpush1.bf16.msra.mxu0 0
      %4837 = vmatprep.subr.bf16.mxu0 0
      %4838 = vmatpush1.bf16.msra.mxu0 0
      %4839 = vmatprep.subr.bf16.mxu0 0
      %4840 = vmatpush1.bf16.msra.mxu0 0
      %4841 = vmatprep.subr.bf16.mxu0 0
      %4842 = vmatpush1.bf16.msra.mxu0 0
      %4843 = vmatprep.subr.bf16.mxu0 0
      %4844 = vmatpush1.bf16.msra.mxu0 0
      %4845 = vmatprep.subr.bf16.mxu0 0
      %4846 = vmatpush1.bf16.msra.mxu0 0
      %4847 = vmatprep.subr.bf16.mxu0 0
      %4848 = vmatpush1.bf16.msra.mxu0 0
      %4849 = vmatprep.subr.bf16.mxu0 0
      %4850 = vmatpush1.bf16.msra.mxu0 0
      %4851 = vmatprep.subr.bf16.mxu0 0
      %4852 = vmatpush1.bf16.msra.mxu0 0
      %4853 = vmatprep.subr.bf16.mxu0 0
      %4854 = vmatpush1.bf16.msra.mxu0 0
      %4855 = vmatprep.subr.bf16.mxu0 0
      %4856 = vmatpush1.bf16.msra.mxu0 0
      %4857 = vmatprep.subr.bf16.mxu0 0
      %4858 = vmatpush1.bf16.msra.mxu0 0
      %4859 = vmatprep.subr.bf16.mxu0 0
      %4860 = vmatpush1.bf16.msra.mxu0 0
      %4861 = vmatprep.mubr.bf16.mxu0 0
      %4862 = vmatmul.mubr.bf16.gmra.mrb[0].mxu0 %v4821
      %v4863 = vpop.f32.mrb[0].mxu0
      %v4864 = vadd.f32 0.0, %v4863
      %v4865 = vpop.f32.mrb[0].mxu0
      %v4866 = vpop.f32.mrb[0].mxu0
      %v4867 = vadd.f32 0.0, %v4866
      %v4868 = vpop.f32.mrb[0].mxu0
      %4869 = vmatprep.mubr.bf16.mxu0 0
      %4870 = vmatmul.mubr.bf16.gmra.mrb[0].mxu0 %v4824
      %v4871 = vpop.f32.mrb[0].mxu0
      %v4872 = vadd.f32 0.0, %v4871
      %v4873 = vpop.f32.mrb[0].mxu0
      %v4874 = vpop.f32.mrb[0].mxu0
      %v4875 = vadd.f32 0.0, %v4874
      %v4876 = vpop.f32.mrb[0].mxu0
      %4877 = vmatprep.mubr.bf16.mxu0 0
      %4878 = vmatmul.mubr.bf16.gmra.mrb[0].mxu0 %v4827
      %v4879 = vpop.f32.mrb[0].mxu0
      %v4880 = vadd.f32 0.0, %v4879
      %v4881 = vpop.f32.mrb[0].mxu0
      %v4882 = vpop.f32.mrb[0].mxu0
      %v4883 = vadd.f32 0.0, %v4882
      %v4884 = vpop.f32.mrb[0].mxu0
      %4885 = vdwg.mxu0
      %v4886 = vadd.f32 %v4792, %v4864
      %v4887 = vadd.f32 %v4793, %v4867
      %v4888 = vadd.f32 %v4794, %v4872
      %v4889 = vadd.f32 %v4795, %v4875
      %v4890 = vadd.f32 %v4796, %v4880
      %v4891 = vadd.f32 %v4797, %v4883
      %s4892 = scalar_lea.vmem %s5, 72
      %v4893 = vld [vmem:[%s4892] sm:$0xf]
      %v4894 = vld [vmem:[%s4892 + $0x4] sm:$0xf]
      %v4895 = vld [vmem:[%s4892 + $0x8] sm:$0xf]
      %v4896 = vld [vmem:[%s4892 + $0xc] sm:$0xf]
      %v4897 = vld [vmem:[%s4892 + $0x10] sm:$0xf]
      %v4898 = vld [vmem:[%s4892 + $0x14] sm:$0xf]
      %v4905 = vunpack.c.l.b16 %v4893
      %v4906 = vunpack.c.l.b16 %v4894
      %v4907 = vunpack.c.l.b16 %v4895
      %v4908 = vunpack.c.l.b16 %v4896
      %v4909 = vunpack.c.l.b16 %v4897
      %v4910 = vunpack.c.l.b16 %v4898
      %v4911 = vpack.c.b16 %v4906, %v4905
      %v4912 = vpack.c.b16 %v4908, %v4907
      %v4913 = vpack.c.b16 %v4910, %v4909
      %v4915 = vsel %vm2487, %v4911, 0
      %v4918 = vsel %vm2487, %v4912, 0
      %v4921 = vsel %vm2487, %v4913, 0
      %4923 = vmatprep.subr.bf16.mxu0 0
      %4924 = vmatpush1.bf16.msra.mxu0 %v4581
      %4925 = vmatprep.subr.bf16.mxu0 0
      %4926 = vmatpush1.bf16.msra.mxu0 %v4590
      %4927 = vmatprep.subr.bf16.mxu0 0
      %4928 = vmatpush1.bf16.msra.mxu0 %v4599
      %4929 = vmatprep.subr.bf16.mxu0 0
      %4930 = vmatpush1.bf16.msra.mxu0 0
      %4931 = vmatprep.subr.bf16.mxu0 0
      %4932 = vmatpush1.bf16.msra.mxu0 0
      %4933 = vmatprep.subr.bf16.mxu0 0
      %4934 = vmatpush1.bf16.msra.mxu0 0
      %4935 = vmatprep.subr.bf16.mxu0 0
      %4936 = vmatpush1.bf16.msra.mxu0 0
      %4937 = vmatprep.subr.bf16.mxu0 0
      %4938 = vmatpush1.bf16.msra.mxu0 0
      %4939 = vmatprep.subr.bf16.mxu0 0
      %4940 = vmatpush1.bf16.msra.mxu0 0
      %4941 = vmatprep.subr.bf16.mxu0 0
      %4942 = vmatpush1.bf16.msra.mxu0 0
      %4943 = vmatprep.subr.bf16.mxu0 0
      %4944 = vmatpush1.bf16.msra.mxu0 0
      %4945 = vmatprep.subr.bf16.mxu0 0
      %4946 = vmatpush1.bf16.msra.mxu0 0
      %4947 = vmatprep.subr.bf16.mxu0 0
      %4948 = vmatpush1.bf16.msra.mxu0 0
      %4949 = vmatprep.subr.bf16.mxu0 0
      %4950 = vmatpush1.bf16.msra.mxu0 0
      %4951 = vmatprep.subr.bf16.mxu0 0
      %4952 = vmatpush1.bf16.msra.mxu0 0
      %4953 = vmatprep.subr.bf16.mxu0 0
      %4954 = vmatpush1.bf16.msra.mxu0 0
      %4955 = vmatprep.mubr.bf16.mxu0 0
      %4956 = vmatmul.mubr.bf16.gmra.mrb[0].mxu0 %v4915
      %v4957 = vpop.f32.mrb[0].mxu0
      %v4958 = vadd.f32 0.0, %v4957
      %v4959 = vpop.f32.mrb[0].mxu0
      %v4960 = vpop.f32.mrb[0].mxu0
      %v4961 = vadd.f32 0.0, %v4960
      %v4962 = vpop.f32.mrb[0].mxu0
      %4963 = vmatprep.mubr.bf16.mxu0 0
      %4964 = vmatmul.mubr.bf16.gmra.mrb[0].mxu0 %v4918
      %v4965 = vpop.f32.mrb[0].mxu0
      %v4966 = vadd.f32 0.0, %v4965
      %v4967 = vpop.f32.mrb[0].mxu0
      %v4968 = vpop.f32.mrb[0].mxu0
      %v4969 = vadd.f32 0.0, %v4968
      %v4970 = vpop.f32.mrb[0].mxu0
      %4971 = vmatprep.mubr.bf16.mxu0 0
      %4972 = vmatmul.mubr.bf16.gmra.mrb[0].mxu0 %v4921
      %v4973 = vpop.f32.mrb[0].mxu0
      %v4974 = vadd.f32 0.0, %v4973
      %v4975 = vpop.f32.mrb[0].mxu0
      %v4976 = vpop.f32.mrb[0].mxu0
      %v4977 = vadd.f32 0.0, %v4976
      %v4978 = vpop.f32.mrb[0].mxu0
      %4979 = vdwg.mxu0
      %v4980 = vadd.f32 %v4886, %v4958
      %v4981 = vadd.f32 %v4887, %v4961
      %v4982 = vadd.f32 %v4888, %v4966
      %v4983 = vadd.f32 %v4889, %v4969
      %v4984 = vadd.f32 %v4890, %v4974
      %v4985 = vadd.f32 %v4891, %v4977
      %s4986 = scalar_lea.vmem %s5, 96
      %v4987 = vld [vmem:[%s4986] sm:$0xf]
      %v4988 = vld [vmem:[%s4986 + $0x4] sm:$0xf]
      %v4989 = vld [vmem:[%s4986 + $0x8] sm:$0xf]
      %v4990 = vld [vmem:[%s4986 + $0xc] sm:$0xf]
      %v4991 = vld [vmem:[%s4986 + $0x10] sm:$0xf]
      %v4992 = vld [vmem:[%s4986 + $0x14] sm:$0xf]
      %v4999 = vunpack.c.l.b16 %v4987
      %v5000 = vunpack.c.l.b16 %v4988
      %v5001 = vunpack.c.l.b16 %v4989
      %v5002 = vunpack.c.l.b16 %v4990
      %v5003 = vunpack.c.l.b16 %v4991
      %v5004 = vunpack.c.l.b16 %v4992
      %v5005 = vpack.c.b16 %v5000, %v4999
      %v5006 = vpack.c.b16 %v5002, %v5001
      %v5007 = vpack.c.b16 %v5004, %v5003
      %v5009 = vsel %vm2487, %v5005, 0
      %v5012 = vsel %vm2487, %v5006, 0
      %v5015 = vsel %vm2487, %v5007, 0
      %5017 = vmatprep.subr.bf16.mxu0 0
      %5018 = vmatpush1.bf16.msra.mxu0 %v4582
      %5019 = vmatprep.subr.bf16.mxu0 0
      %5020 = vmatpush1.bf16.msra.mxu0 %v4591
      %5021 = vmatprep.subr.bf16.mxu0 0
      %5022 = vmatpush1.bf16.msra.mxu0 %v4600
      %5023 = vmatprep.subr.bf16.mxu0 0
      %5024 = vmatpush1.bf16.msra.mxu0 0
      %5025 = vmatprep.subr.bf16.mxu0 0
      %5026 = vmatpush1.bf16.msra.mxu0 0
      %5027 = vmatprep.subr.bf16.mxu0 0
      %5028 = vmatpush1.bf16.msra.mxu0 0
      %5029 = vmatprep.subr.bf16.mxu0 0
      %5030 = vmatpush1.bf16.msra.mxu0 0
      %5031 = vmatprep.subr.bf16.mxu0 0
      %5032 = vmatpush1.bf16.msra.mxu0 0
      %5033 = vmatprep.subr.bf16.mxu0 0
      %5034 = vmatpush1.bf16.msra.mxu0 0
      %5035 = vmatprep.subr.bf16.mxu0 0
      %5036 = vmatpush1.bf16.msra.mxu0 0
      %5037 = vmatprep.subr.bf16.mxu0 0
      %5038 = vmatpush1.bf16.msra.mxu0 0
      %5039 = vmatprep.subr.bf16.mxu0 0
      %5040 = vmatpush1.bf16.msra.mxu0 0
      %5041 = vmatprep.subr.bf16.mxu0 0
      %5042 = vmatpush1.bf16.msra.mxu0 0
      %5043 = vmatprep.subr.bf16.mxu0 0
      %5044 = vmatpush1.bf16.msra.mxu0 0
      %5045 = vmatprep.subr.bf16.mxu0 0
      %5046 = vmatpush1.bf16.msra.mxu0 0
      %5047 = vmatprep.subr.bf16.mxu0 0
      %5048 = vmatpush1.bf16.msra.mxu0 0
      %5049 = vmatprep.mubr.bf16.mxu0 0
      %5050 = vmatmul.mubr.bf16.gmra.mrb[0].mxu0 %v5009
      %v5051 = vpop.f32.mrb[0].mxu0
      %v5052 = vadd.f32 0.0, %v5051
      %v5053 = vpop.f32.mrb[0].mxu0
      %v5054 = vpop.f32.mrb[0].mxu0
      %v5055 = vadd.f32 0.0, %v5054
      %v5056 = vpop.f32.mrb[0].mxu0
      %5057 = vmatprep.mubr.bf16.mxu0 0
      %5058 = vmatmul.mubr.bf16.gmra.mrb[0].mxu0 %v5012
      %v5059 = vpop.f32.mrb[0].mxu0
      %v5060 = vadd.f32 0.0, %v5059
      %v5061 = vpop.f32.mrb[0].mxu0
      %v5062 = vpop.f32.mrb[0].mxu0
      %v5063 = vadd.f32 0.0, %v5062
      %v5064 = vpop.f32.mrb[0].mxu0
      %5065 = vmatprep.mubr.bf16.mxu0 0
      %5066 = vmatmul.mubr.bf16.gmra.mrb[0].mxu0 %v5015
      %v5067 = vpop.f32.mrb[0].mxu0
      %v5068 = vadd.f32 0.0, %v5067
      %v5069 = vpop.f32.mrb[0].mxu0
      %v5070 = vpop.f32.mrb[0].mxu0
      %v5071 = vadd.f32 0.0, %v5070
      %v5072 = vpop.f32.mrb[0].mxu0
      %5073 = vdwg.mxu0
      %v5074 = vadd.f32 %v4980, %v5052
      %v5075 = vadd.f32 %v4981, %v5055
      %v5076 = vadd.f32 %v4982, %v5060
      %v5077 = vadd.f32 %v4983, %v5063
      %v5078 = vadd.f32 %v4984, %v5068
      %v5079 = vadd.f32 %v4985, %v5071
      %s5080 = scalar_lea.vmem %s5, 120
      %v5081 = vld [vmem:[%s5080] sm:$0xf]
      %v5082 = vld [vmem:[%s5080 + $0x4] sm:$0xf]
      %v5083 = vld [vmem:[%s5080 + $0x8] sm:$0xf]
      %v5084 = vld [vmem:[%s5080 + $0xc] sm:$0xf]
      %v5085 = vld [vmem:[%s5080 + $0x10] sm:$0xf]
      %v5086 = vld [vmem:[%s5080 + $0x14] sm:$0xf]
      %v5093 = vunpack.c.l.b16 %v5081
      %v5094 = vunpack.c.l.b16 %v5082
      %v5095 = vunpack.c.l.b16 %v5083
      %v5096 = vunpack.c.l.b16 %v5084
      %v5097 = vunpack.c.l.b16 %v5085
      %v5098 = vunpack.c.l.b16 %v5086
      %v5099 = vpack.c.b16 %v5094, %v5093
      %v5100 = vpack.c.b16 %v5096, %v5095
      %v5101 = vpack.c.b16 %v5098, %v5097
      %v5103 = vsel %vm2487, %v5099, 0
      %v5106 = vsel %vm2487, %v5100, 0
      %v5109 = vsel %vm2487, %v5101, 0
      %5111 = vmatprep.subr.bf16.mxu0 0
      %5112 = vmatpush1.bf16.msra.mxu0 %v4583
      %5113 = vmatprep.subr.bf16.mxu0 0
      %5114 = vmatpush1.bf16.msra.mxu0 %v4592
      %5115 = vmatprep.subr.bf16.mxu0 0
      %5116 = vmatpush1.bf16.msra.mxu0 %v4601
      %5117 = vmatprep.subr.bf16.mxu0 0
      %5118 = vmatpush1.bf16.msra.mxu0 0
      %5119 = vmatprep.subr.bf16.mxu0 0
      %5120 = vmatpush1.bf16.msra.mxu0 0
      %5121 = vmatprep.subr.bf16.mxu0 0
      %5122 = vmatpush1.bf16.msra.mxu0 0
      %5123 = vmatprep.subr.bf16.mxu0 0
      %5124 = vmatpush1.bf16.msra.mxu0 0
      %5125 = vmatprep.subr.bf16.mxu0 0
      %5126 = vmatpush1.bf16.msra.mxu0 0
      %5127 = vmatprep.subr.bf16.mxu0 0
      %5128 = vmatpush1.bf16.msra.mxu0 0
      %5129 = vmatprep.subr.bf16.mxu0 0
      %5130 = vmatpush1.bf16.msra.mxu0 0
      %5131 = vmatprep.subr.bf16.mxu0 0
      %5132 = vmatpush1.bf16.msra.mxu0 0
      %5133 = vmatprep.subr.bf16.mxu0 0
      %5134 = vmatpush1.bf16.msra.mxu0 0
      %5135 = vmatprep.subr.bf16.mxu0 0
      %5136 = vmatpush1.bf16.msra.mxu0 0
      %5137 = vmatprep.subr.bf16.mxu0 0
      %5138 = vmatpush1.bf16.msra.mxu0 0
      %5139 = vmatprep.subr.bf16.mxu0 0
      %5140 = vmatpush1.bf16.msra.mxu0 0
      %5141 = vmatprep.subr.bf16.mxu0 0
      %5142 = vmatpush1.bf16.msra.mxu0 0
      %5143 = vmatprep.mubr.bf16.mxu0 0
      %5144 = vmatmul.mubr.bf16.gmra.mrb[0].mxu0 %v5103
      %v5145 = vpop.f32.mrb[0].mxu0
      %v5146 = vadd.f32 0.0, %v5145
      %v5147 = vpop.f32.mrb[0].mxu0
      %v5148 = vpop.f32.mrb[0].mxu0
      %v5149 = vadd.f32 0.0, %v5148
      %v5150 = vpop.f32.mrb[0].mxu0
      %5151 = vmatprep.mubr.bf16.mxu0 0
      %5152 = vmatmul.mubr.bf16.gmra.mrb[0].mxu0 %v5106
      %v5153 = vpop.f32.mrb[0].mxu0
      %v5154 = vadd.f32 0.0, %v5153
      %v5155 = vpop.f32.mrb[0].mxu0
      %v5156 = vpop.f32.mrb[0].mxu0
      %v5157 = vadd.f32 0.0, %v5156
      %v5158 = vpop.f32.mrb[0].mxu0
      %5159 = vmatprep.mubr.bf16.mxu0 0
      %5160 = vmatmul.mubr.bf16.gmra.mrb[0].mxu0 %v5109
      %v5161 = vpop.f32.mrb[0].mxu0
      %v5162 = vadd.f32 0.0, %v5161
      %v5163 = vpop.f32.mrb[0].mxu0
      %v5164 = vpop.f32.mrb[0].mxu0
      %v5165 = vadd.f32 0.0, %v5164
      %v5166 = vpop.f32.mrb[0].mxu0
      %5167 = vdwg.mxu0
      %v5168 = vadd.f32 %v5074, %v5146
      %v5169 = vadd.f32 %v5075, %v5149
      %v5170 = vadd.f32 %v5076, %v5154
      %v5171 = vadd.f32 %v5077, %v5157
      %v5172 = vadd.f32 %v5078, %v5162
      %v5173 = vadd.f32 %v5079, %v5165
      %s5174 = scalar_lea.vmem %s5, 144
      %v5175 = vld [vmem:[%s5174] sm:$0xf]
      %v5176 = vld [vmem:[%s5174 + $0x4] sm:$0xf]
      %v5177 = vld [vmem:[%s5174 + $0x8] sm:$0xf]
      %v5178 = vld [vmem:[%s5174 + $0xc] sm:$0xf]
      %v5179 = vld [vmem:[%s5174 + $0x10] sm:$0xf]
      %v5180 = vld [vmem:[%s5174 + $0x14] sm:$0xf]
      %v5187 = vunpack.c.l.b16 %v5175
      %v5188 = vunpack.c.l.b16 %v5176
      %v5189 = vunpack.c.l.b16 %v5177
      %v5190 = vunpack.c.l.b16 %v5178
      %v5191 = vunpack.c.l.b16 %v5179
      %v5192 = vunpack.c.l.b16 %v5180
      %v5193 = vpack.c.b16 %v5188, %v5187
      %v5194 = vpack.c.b16 %v5190, %v5189
      %v5195 = vpack.c.b16 %v5192, %v5191
      %v5197 = vsel %vm2487, %v5193, 0
      %v5200 = vsel %vm2487, %v5194, 0
      %v5203 = vsel %vm2487, %v5195, 0
      %5205 = vmatprep.subr.bf16.mxu0 0
      %5206 = vmatpush1.bf16.msra.mxu0 %v4584
      %5207 = vmatprep.subr.bf16.mxu0 0
      %5208 = vmatpush1.bf16.msra.mxu0 %v4593
      %5209 = vmatprep.subr.bf16.mxu0 0
      %5210 = vmatpush1.bf16.msra.mxu0 %v4602
      %5211 = vmatprep.subr.bf16.mxu0 0
      %5212 = vmatpush1.bf16.msra.mxu0 0
      %5213 = vmatprep.subr.bf16.mxu0 0
      %5214 = vmatpush1.bf16.msra.mxu0 0
      %5215 = vmatprep.subr.bf16.mxu0 0
      %5216 = vmatpush1.bf16.msra.mxu0 0
      %5217 = vmatprep.subr.bf16.mxu0 0
      %5218 = vmatpush1.bf16.msra.mxu0 0
      %5219 = vmatprep.subr.bf16.mxu0 0
      %5220 = vmatpush1.bf16.msra.mxu0 0
      %5221 = vmatprep.subr.bf16.mxu0 0
      %5222 = vmatpush1.bf16.msra.mxu0 0
      %5223 = vmatprep.subr.bf16.mxu0 0
      %5224 = vmatpush1.bf16.msra.mxu0 0
      %5225 = vmatprep.subr.bf16.mxu0 0
      %5226 = vmatpush1.bf16.msra.mxu0 0
      %5227 = vmatprep.subr.bf16.mxu0 0
      %5228 = vmatpush1.bf16.msra.mxu0 0
      %5229 = vmatprep.subr.bf16.mxu0 0
      %5230 = vmatpush1.bf16.msra.mxu0 0
      %5231 = vmatprep.subr.bf16.mxu0 0
      %5232 = vmatpush1.bf16.msra.mxu0 0
      %5233 = vmatprep.subr.bf16.mxu0 0
      %5234 = vmatpush1.bf16.msra.mxu0 0
      %5235 = vmatprep.subr.bf16.mxu0 0
      %5236 = vmatpush1.bf16.msra.mxu0 0
      %5237 = vmatprep.mubr.bf16.mxu0 0
      %5238 = vmatmul.mubr.bf16.gmra.mrb[0].mxu0 %v5197
      %v5239 = vpop.f32.mrb[0].mxu0
      %v5240 = vadd.f32 0.0, %v5239
      %v5241 = vpop.f32.mrb[0].mxu0
      %v5242 = vpop.f32.mrb[0].mxu0
      %v5243 = vadd.f32 0.0, %v5242
      %v5244 = vpop.f32.mrb[0].mxu0
      %5245 = vmatprep.mubr.bf16.mxu0 0
      %5246 = vmatmul.mubr.bf16.gmra.mrb[0].mxu0 %v5200
      %v5247 = vpop.f32.mrb[0].mxu0
      %v5248 = vadd.f32 0.0, %v5247
      %v5249 = vpop.f32.mrb[0].mxu0
      %v5250 = vpop.f32.mrb[0].mxu0
      %v5251 = vadd.f32 0.0, %v5250
      %v5252 = vpop.f32.mrb[0].mxu0
      %5253 = vmatprep.mubr.bf16.mxu0 0
      %5254 = vmatmul.mubr.bf16.gmra.mrb[0].mxu0 %v5203
      %v5255 = vpop.f32.mrb[0].mxu0
      %v5256 = vadd.f32 0.0, %v5255
      %v5257 = vpop.f32.mrb[0].mxu0
      %v5258 = vpop.f32.mrb[0].mxu0
      %v5259 = vadd.f32 0.0, %v5258
      %v5260 = vpop.f32.mrb[0].mxu0
      %5261 = vdwg.mxu0
      %v5262 = vadd.f32 %v5168, %v5240
      %v5263 = vadd.f32 %v5169, %v5243
      %v5264 = vadd.f32 %v5170, %v5248
      %v5265 = vadd.f32 %v5171, %v5251
      %v5266 = vadd.f32 %v5172, %v5256
      %v5267 = vadd.f32 %v5173, %v5259
      %s5268 = scalar_lea.vmem %s5, 168
      %v5269 = vld [vmem:[%s5268] sm:$0xf]
      %v5270 = vld [vmem:[%s5268 + $0x4] sm:$0xf]
      %v5271 = vld [vmem:[%s5268 + $0x8] sm:$0xf]
      %v5272 = vld [vmem:[%s5268 + $0xc] sm:$0xf]
      %v5273 = vld [vmem:[%s5268 + $0x10] sm:$0xf]
      %v5274 = vld [vmem:[%s5268 + $0x14] sm:$0xf]
      %v5281 = vunpack.c.l.b16 %v5269
      %v5282 = vunpack.c.l.b16 %v5270
      %v5283 = vunpack.c.l.b16 %v5271
      %v5284 = vunpack.c.l.b16 %v5272
      %v5285 = vunpack.c.l.b16 %v5273
      %v5286 = vunpack.c.l.b16 %v5274
      %v5287 = vpack.c.b16 %v5282, %v5281
      %v5288 = vpack.c.b16 %v5284, %v5283
      %v5289 = vpack.c.b16 %v5286, %v5285
      %v5291 = vsel %vm2487, %v5287, 0
      %v5294 = vsel %vm2487, %v5288, 0
      %v5297 = vsel %vm2487, %v5289, 0
      %5299 = vmatprep.subr.bf16.mxu0 0
      %5300 = vmatpush1.bf16.msra.mxu0 %v4585
      %5301 = vmatprep.subr.bf16.mxu0 0
      %5302 = vmatpush1.bf16.msra.mxu0 %v4594
      %5303 = vmatprep.subr.bf16.mxu0 0
      %5304 = vmatpush1.bf16.msra.mxu0 %v4603
      %5305 = vmatprep.subr.bf16.mxu0 0
      %5306 = vmatpush1.bf16.msra.mxu0 0
      %5307 = vmatprep.subr.bf16.mxu0 0
      %5308 = vmatpush1.bf16.msra.mxu0 0
      %5309 = vmatprep.subr.bf16.mxu0 0
      %5310 = vmatpush1.bf16.msra.mxu0 0
      %5311 = vmatprep.subr.bf16.mxu0 0
      %5312 = vmatpush1.bf16.msra.mxu0 0
      %5313 = vmatprep.subr.bf16.mxu0 0
      %5314 = vmatpush1.bf16.msra.mxu0 0
      %5315 = vmatprep.subr.bf16.mxu0 0
      %5316 = vmatpush1.bf16.msra.mxu0 0
      %5317 = vmatprep.subr.bf16.mxu0 0
      %5318 = vmatpush1.bf16.msra.mxu0 0
      %5319 = vmatprep.subr.bf16.mxu0 0
      %5320 = vmatpush1.bf16.msra.mxu0 0
      %5321 = vmatprep.subr.bf16.mxu0 0
      %5322 = vmatpush1.bf16.msra.mxu0 0
      %5323 = vmatprep.subr.bf16.mxu0 0
      %5324 = vmatpush1.bf16.msra.mxu0 0
      %5325 = vmatprep.subr.bf16.mxu0 0
      %5326 = vmatpush1.bf16.msra.mxu0 0
      %5327 = vmatprep.subr.bf16.mxu0 0
      %5328 = vmatpush1.bf16.msra.mxu0 0
      %5329 = vmatprep.subr.bf16.mxu0 0
      %5330 = vmatpush1.bf16.msra.mxu0 0
      %5331 = vmatprep.mubr.bf16.mxu0 0
      %5332 = vmatmul.mubr.bf16.gmra.mrb[0].mxu0 %v5291
      %v5333 = vpop.f32.mrb[0].mxu0
      %v5334 = vadd.f32 0.0, %v5333
      %v5335 = vpop.f32.mrb[0].mxu0
      %v5336 = vpop.f32.mrb[0].mxu0
      %v5337 = vadd.f32 0.0, %v5336
      %v5338 = vpop.f32.mrb[0].mxu0
      %5339 = vmatprep.mubr.bf16.mxu0 0
      %5340 = vmatmul.mubr.bf16.gmra.mrb[0].mxu0 %v5294
      %v5341 = vpop.f32.mrb[0].mxu0
      %v5342 = vadd.f32 0.0, %v5341
      %v5343 = vpop.f32.mrb[0].mxu0
      %v5344 = vpop.f32.mrb[0].mxu0
      %v5345 = vadd.f32 0.0, %v5344
      %v5346 = vpop.f32.mrb[0].mxu0
      %5347 = vmatprep.mubr.bf16.mxu0 0
      %5348 = vmatmul.mubr.bf16.gmra.mrb[0].mxu0 %v5297
      %v5349 = vpop.f32.mrb[0].mxu0
      %v5350 = vadd.f32 0.0, %v5349
      %v5351 = vpop.f32.mrb[0].mxu0
      %v5352 = vpop.f32.mrb[0].mxu0
      %v5353 = vadd.f32 0.0, %v5352
      %v5354 = vpop.f32.mrb[0].mxu0
      %5355 = vdwg.mxu0
      %v5356 = vadd.f32 %v5262, %v5334
      %v5357 = vadd.f32 %v5263, %v5337
      %v5358 = vadd.f32 %v5264, %v5342
      %v5359 = vadd.f32 %v5265, %v5345
      %v5360 = vadd.f32 %v5266, %v5350
      %v5361 = vadd.f32 %v5267, %v5353
      %s5362 = scalar_lea.vmem %s5, 192
      %v5363 = vld [vmem:[%s5362] sm:$0xf]
      %v5364 = vld [vmem:[%s5362 + $0x4] sm:$0xf]
      %v5365 = vld [vmem:[%s5362 + $0x8] sm:$0xf]
      %v5366 = vld [vmem:[%s5362 + $0xc] sm:$0xf]
      %v5367 = vld [vmem:[%s5362 + $0x10] sm:$0xf]
      %v5368 = vld [vmem:[%s5362 + $0x14] sm:$0xf]
      %v5375 = vunpack.c.l.b16 %v5363
      %v5376 = vunpack.c.l.b16 %v5364
      %v5377 = vunpack.c.l.b16 %v5365
      %v5378 = vunpack.c.l.b16 %v5366
      %v5379 = vunpack.c.l.b16 %v5367
      %v5380 = vunpack.c.l.b16 %v5368
      %v5381 = vpack.c.b16 %v5376, %v5375
      %v5382 = vpack.c.b16 %v5378, %v5377
      %v5383 = vpack.c.b16 %v5380, %v5379
      %v5385 = vsel %vm2487, %v5381, 0
      %v5388 = vsel %vm2487, %v5382, 0
      %v5391 = vsel %vm2487, %v5383, 0
      %5393 = vmatprep.subr.bf16.mxu0 0
      %5394 = vmatpush1.bf16.msra.mxu0 %v4586
      %5395 = vmatprep.subr.bf16.mxu0 0
      %5396 = vmatpush1.bf16.msra.mxu0 %v4595
      %5397 = vmatprep.subr.bf16.mxu0 0
      %5398 = vmatpush1.bf16.msra.mxu0 %v4604
      %5399 = vmatprep.subr.bf16.mxu0 0
      %5400 = vmatpush1.bf16.msra.mxu0 0
      %5401 = vmatprep.subr.bf16.mxu0 0
      %5402 = vmatpush1.bf16.msra.mxu0 0
      %5403 = vmatprep.subr.bf16.mxu0 0
      %5404 = vmatpush1.bf16.msra.mxu0 0
      %5405 = vmatprep.subr.bf16.mxu0 0
      %5406 = vmatpush1.bf16.msra.mxu0 0
      %5407 = vmatprep.subr.bf16.mxu0 0
      %5408 = vmatpush1.bf16.msra.mxu0 0
      %5409 = vmatprep.subr.bf16.mxu0 0
      %5410 = vmatpush1.bf16.msra.mxu0 0
      %5411 = vmatprep.subr.bf16.mxu0 0
      %5412 = vmatpush1.bf16.msra.mxu0 0
      %5413 = vmatprep.subr.bf16.mxu0 0
      %5414 = vmatpush1.bf16.msra.mxu0 0
      %5415 = vmatprep.subr.bf16.mxu0 0
      %5416 = vmatpush1.bf16.msra.mxu0 0
      %5417 = vmatprep.subr.bf16.mxu0 0
      %5418 = vmatpush1.bf16.msra.mxu0 0
      %5419 = vmatprep.subr.bf16.mxu0 0
      %5420 = vmatpush1.bf16.msra.mxu0 0
      %5421 = vmatprep.subr.bf16.mxu0 0
      %5422 = vmatpush1.bf16.msra.mxu0 0
      %5423 = vmatprep.subr.bf16.mxu0 0
      %5424 = vmatpush1.bf16.msra.mxu0 0
      %5425 = vmatprep.mubr.bf16.mxu0 0
      %5426 = vmatmul.mubr.bf16.gmra.mrb[0].mxu0 %v5385
      %v5427 = vpop.f32.mrb[0].mxu0
      %v5428 = vadd.f32 0.0, %v5427
      %v5429 = vpop.f32.mrb[0].mxu0
      %v5430 = vpop.f32.mrb[0].mxu0
      %v5431 = vadd.f32 0.0, %v5430
      %v5432 = vpop.f32.mrb[0].mxu0
      %5433 = vmatprep.mubr.bf16.mxu0 0
      %5434 = vmatmul.mubr.bf16.gmra.mrb[0].mxu0 %v5388
      %v5435 = vpop.f32.mrb[0].mxu0
      %v5436 = vadd.f32 0.0, %v5435
      %v5437 = vpop.f32.mrb[0].mxu0
      %v5438 = vpop.f32.mrb[0].mxu0
      %v5439 = vadd.f32 0.0, %v5438
      %v5440 = vpop.f32.mrb[0].mxu0
      %5441 = vmatprep.mubr.bf16.mxu0 0
      %5442 = vmatmul.mubr.bf16.gmra.mrb[0].mxu0 %v5391
      %v5443 = vpop.f32.mrb[0].mxu0
      %v5444 = vadd.f32 0.0, %v5443
      %v5445 = vpop.f32.mrb[0].mxu0
      %v5446 = vpop.f32.mrb[0].mxu0
      %v5447 = vadd.f32 0.0, %v5446
      %v5448 = vpop.f32.mrb[0].mxu0
      %5449 = vdwg.mxu0
      %v5450 = vadd.f32 %v5356, %v5428
      %v5451 = vadd.f32 %v5357, %v5431
      %v5452 = vadd.f32 %v5358, %v5436
      %v5453 = vadd.f32 %v5359, %v5439
      %v5454 = vadd.f32 %v5360, %v5444
      %v5455 = vadd.f32 %v5361, %v5447
      %v5456 = vtanh.pop %v5450
      %v5457 = vtanh.pop %v5451
      %v5458 = vtanh.pop %v5452
      %v5459 = vtanh.pop %v5453
      %v5460 = vtanh.pop %v5454
      %v5461 = vtanh.pop %v5455
      %v5462 = vpack.c.bf16 %v5457, %v5456
      %v5463 = vpack.c.bf16 %v5459, %v5458
      %v5464 = vpack.c.bf16 %v5461, %v5460
      %v5465 = vld [vmem:[%s7] sm:$0xff]
      %v5466 = vld [vmem:[%s7 + $0x8] sm:$0xff]
      %v5467 = vld [vmem:[%s7 + $0x10] sm:$0xff]
      %v5468 = vld [vmem:[%s7 + $0x18] sm:$0xff]
      %v5469 = vld [vmem:[%s7 + $0x20] sm:$0xff]
      %v5470 = vld [vmem:[%s7 + $0x28] sm:$0xff]
      %v5471 = vld [vmem:[%s7 + $0x30] sm:$0xff]
      %v5472 = vld [vmem:[%s7 + $0x38] sm:$0xff]
      %v5473 = vld [vmem:[%s7 + $0x40] sm:$0x33]
      %v5474 = vld [vmem:[%s7 + $0x48] sm:$0x33]
      %v5485 = vunpack.c.l.b16 %v5465
      %v5486 = vunpack.c.h.b16 %v5465
      %v5487 = vunpack.c.l.b16 %v5466
      %v5488 = vunpack.c.h.b16 %v5466
      %v5489 = vunpack.c.l.b16 %v5467
      %v5490 = vunpack.c.h.b16 %v5467
      %v5491 = vunpack.c.l.b16 %v5468
      %v5492 = vunpack.c.h.b16 %v5468
      %v5493 = vunpack.c.l.b16 %v5469
      %v5494 = vunpack.c.h.b16 %v5469
      %v5495 = vunpack.c.l.b16 %v5470
      %v5496 = vunpack.c.h.b16 %v5470
      %v5497 = vunpack.c.l.b16 %v5471
      %v5498 = vunpack.c.h.b16 %v5471
      %v5499 = vunpack.c.l.b16 %v5472
      %v5500 = vunpack.c.h.b16 %v5472
      %v5501 = vunpack.c.l.b16 %v5473
      %v5502 = vunpack.c.h.b16 %v5473
      %v5503 = vunpack.c.l.b16 %v5474
      %v5504 = vunpack.c.h.b16 %v5474
      %v5505 = vpack.c.b16 %v5489, %v5485
      %v5506 = vpack.c.b16 %v5490, %v5486
      %v5507 = vpack.c.b16 %v5491, %v5487
      %v5508 = vpack.c.b16 %v5492, %v5488
      %v5509 = vpack.c.b16 %v5497, %v5493
      %v5510 = vpack.c.b16 %v5498, %v5494
      %v5511 = vpack.c.b16 %v5499, %v5495
      %v5512 = vpack.c.b16 %v5500, %v5496
      %v5513 = vpack.c.b16 %v5501, %v5501
      %v5514 = vpack.c.b16 %v5502, %v5502
      %v5515 = vpack.c.b16 %v5503, %v5503
      %v5516 = vpack.c.b16 %v5504, %v5504
      %vm5525 = vcmask 285696
      %v5527 = vsel %vm5525, %v5462, 0
      %v5530 = vsel %vm5525, %v5463, 0
      %v5533 = vsel %vm5525, %v5464, 0
      %vm5535 = vcmask 1040384
      %vm5536 = vcmask 1041408
      %v5537 = vsel %vm5535, 4294967295, 65535
      %v5538 = vsel %vm5536, %v5537, 0
      %v5540 = vand.u32 %v5513, %v5538
      %v5543 = vand.u32 %v5514, %v5538
      %v5546 = vand.u32 %v5515, %v5538
      %v5549 = vand.u32 %v5516, %v5538
      %5551 = vmatprep.subr.bf16.mxu0 %v5506
      %5552 = vmatpush1.bf16.msra.mxu0 %v5505
      %5553 = vmatprep.subr.bf16.mxu0 %v5510
      %5554 = vmatpush1.bf16.msra.mxu0 %v5509
      %5555 = vmatprep.subr.bf16.mxu0 %v5543
      %5556 = vmatpush1.bf16.msra.mxu0 %v5540
      %5557 = vmatprep.subr.bf16.mxu0 0
      %5558 = vmatpush1.bf16.msra.mxu0 0
      %5559 = vmatprep.subr.bf16.mxu0 0
      %5560 = vmatpush1.bf16.msra.mxu0 0
      %5561 = vmatprep.subr.bf16.mxu0 0
      %5562 = vmatpush1.bf16.msra.mxu0 0
      %5563 = vmatprep.subr.bf16.mxu0 0
      %5564 = vmatpush1.bf16.msra.mxu0 0
      %5565 = vmatprep.subr.bf16.mxu0 0
      %5566 = vmatpush1.bf16.msra.mxu0 0
      %5567 = vmatprep.subr.bf16.mxu0 0
      %5568 = vmatpush1.bf16.msra.mxu0 0
      %5569 = vmatprep.subr.bf16.mxu0 0
      %5570 = vmatpush1.bf16.msra.mxu0 0
      %5571 = vmatprep.subr.bf16.mxu0 0
      %5572 = vmatpush1.bf16.msra.mxu0 0
      %5573 = vmatprep.subr.bf16.mxu0 0
      %5574 = vmatpush1.bf16.msra.mxu0 0
      %5575 = vmatprep.subr.bf16.mxu0 0
      %5576 = vmatpush1.bf16.msra.mxu0 0
      %5577 = vmatprep.subr.bf16.mxu0 0
      %5578 = vmatpush1.bf16.msra.mxu0 0
      %5579 = vmatprep.subr.bf16.mxu0 0
      %5580 = vmatpush1.bf16.msra.mxu0 0
      %5581 = vmatprep.subr.bf16.mxu0 0
      %5582 = vmatpush1.bf16.msra.mxu0 0
      %5583 = vmatprep.mubr.bf16.mxu0 0
      %5584 = vmatmul.mubr.bf16.gmra.mrb[0].mxu0 %v5527
      %v5585 = vpop.f32.mrb[0].mxu0
      %v5586 = vadd.f32 0.0, %v5585
      %v5587 = vpop.f32.mrb[0].mxu0
      %v5588 = vadd.f32 0.0, %v5587
      %v5589 = vpop.f32.mrb[0].mxu0
      %v5590 = vadd.f32 0.0, %v5589
      %v5591 = vpop.f32.mrb[0].mxu0
      %v5592 = vadd.f32 0.0, %v5591
      %5593 = vmatprep.mubr.bf16.mxu0 0
      %5594 = vmatmul.mubr.bf16.gmra.mrb[0].mxu0 %v5530
      %v5595 = vpop.f32.mrb[0].mxu0
      %v5596 = vadd.f32 0.0, %v5595
      %v5597 = vpop.f32.mrb[0].mxu0
      %v5598 = vadd.f32 0.0, %v5597
      %v5599 = vpop.f32.mrb[0].mxu0
      %v5600 = vadd.f32 0.0, %v5599
      %v5601 = vpop.f32.mrb[0].mxu0
      %v5602 = vadd.f32 0.0, %v5601
      %5603 = vmatprep.mubr.bf16.mxu0 0
      %5604 = vmatmul.mubr.bf16.gmra.mrb[0].mxu0 %v5533
      %v5605 = vpop.f32.mrb[0].mxu0
      %v5606 = vadd.f32 0.0, %v5605
      %v5607 = vpop.f32.mrb[0].mxu0
      %v5608 = vadd.f32 0.0, %v5607
      %v5609 = vpop.f32.mrb[0].mxu0
      %v5610 = vadd.f32 0.0, %v5609
      %v5611 = vpop.f32.mrb[0].mxu0
      %v5612 = vadd.f32 0.0, %v5611
      %5613 = vdwg.mxu0
      %5614 = vmatprep.subr.bf16.mxu0 %v5508
      %5615 = vmatpush1.bf16.msra.mxu0 %v5507
      %5616 = vmatprep.subr.bf16.mxu0 %v5512
      %5617 = vmatpush1.bf16.msra.mxu0 %v5511
      %5618 = vmatprep.subr.bf16.mxu0 %v5549
      %5619 = vmatpush1.bf16.msra.mxu0 %v5546
      %5620 = vmatprep.subr.bf16.mxu0 0
      %5621 = vmatpush1.bf16.msra.mxu0 0
      %5622 = vmatprep.subr.bf16.mxu0 0
      %5623 = vmatpush1.bf16.msra.mxu0 0
      %5624 = vmatprep.subr.bf16.mxu0 0
      %5625 = vmatpush1.bf16.msra.mxu0 0
      %5626 = vmatprep.subr.bf16.mxu0 0
      %5627 = vmatpush1.bf16.msra.mxu0 0
      %5628 = vmatprep.subr.bf16.mxu0 0
      %5629 = vmatpush1.bf16.msra.mxu0 0
      %5630 = vmatprep.subr.bf16.mxu0 0
      %5631 = vmatpush1.bf16.msra.mxu0 0
      %5632 = vmatprep.subr.bf16.mxu0 0
      %5633 = vmatpush1.bf16.msra.mxu0 0
      %5634 = vmatprep.subr.bf16.mxu0 0
      %5635 = vmatpush1.bf16.msra.mxu0 0
      %5636 = vmatprep.subr.bf16.mxu0 0
      %5637 = vmatpush1.bf16.msra.mxu0 0
      %5638 = vmatprep.subr.bf16.mxu0 0
      %5639 = vmatpush1.bf16.msra.mxu0 0
      %5640 = vmatprep.subr.bf16.mxu0 0
      %5641 = vmatpush1.bf16.msra.mxu0 0
      %5642 = vmatprep.subr.bf16.mxu0 0
      %5643 = vmatpush1.bf16.msra.mxu0 0
      %5644 = vmatprep.subr.bf16.mxu0 0
      %5645 = vmatpush1.bf16.msra.mxu0 0
      %5646 = vmatprep.mubr.bf16.mxu0 0
      %5647 = vmatmul.mubr.bf16.gmra.mrb[0].mxu0 %v5527
      %v5648 = vpop.f32.mrb[0].mxu0
      %v5649 = vadd.f32 0.0, %v5648
      %v5650 = vpop.f32.mrb[0].mxu0
      %v5651 = vadd.f32 0.0, %v5650
      %v5652 = vpop.f32.mrb[0].mxu0
      %v5653 = vadd.f32 0.0, %v5652
      %v5654 = vpop.f32.mrb[0].mxu0
      %v5655 = vadd.f32 0.0, %v5654
      %5656 = vmatprep.mubr.bf16.mxu0 0
      %5657 = vmatmul.mubr.bf16.gmra.mrb[0].mxu0 %v5530
      %v5658 = vpop.f32.mrb[0].mxu0
      %v5659 = vadd.f32 0.0, %v5658
      %v5660 = vpop.f32.mrb[0].mxu0
      %v5661 = vadd.f32 0.0, %v5660
      %v5662 = vpop.f32.mrb[0].mxu0
      %v5663 = vadd.f32 0.0, %v5662
      %v5664 = vpop.f32.mrb[0].mxu0
      %v5665 = vadd.f32 0.0, %v5664
      %5666 = vmatprep.mubr.bf16.mxu0 0
      %5667 = vmatmul.mubr.bf16.gmra.mrb[0].mxu0 %v5533
      %v5668 = vpop.f32.mrb[0].mxu0
      %v5669 = vadd.f32 0.0, %v5668
      %v5670 = vpop.f32.mrb[0].mxu0
      %v5671 = vadd.f32 0.0, %v5670
      %v5672 = vpop.f32.mrb[0].mxu0
      %v5673 = vadd.f32 0.0, %v5672
      %v5674 = vpop.f32.mrb[0].mxu0
      %v5675 = vadd.f32 0.0, %v5674
      %5676 = vdwg.mxu0
      %v5677 = vpack.c.bf16 %v5590, %v5586
      %v5678 = vpack.c.bf16 %v5592, %v5588
      %v5679 = vpack.c.bf16 %v5653, %v5649
      %v5680 = vpack.c.bf16 %v5655, %v5651
      %v5681 = vpack.c.bf16 %v5600, %v5596
      %v5682 = vpack.c.bf16 %v5602, %v5598
      %v5683 = vpack.c.bf16 %v5663, %v5659
      %v5684 = vpack.c.bf16 %v5665, %v5661
      %v5685 = vpack.c.bf16 %v5610, %v5606
      %v5686 = vpack.c.bf16 %v5612, %v5608
      %v5687 = vpack.c.bf16 %v5673, %v5669
      %v5688 = vpack.c.bf16 %v5675, %v5671
      %v5689 = vld [vmem:[%s9] sm:$0xff]
      %v5690 = vld [vmem:[%s9 + $0x8] sm:$0xff]
      %v5691 = vld [vmem:[%s9 + $0x10] sm:$0xff]
      %v5692 = vld [vmem:[%s9 + $0x18] sm:$0xff]
      %v5693 = vld [vmem:[%s9 + $0x20] sm:$0xff]
      %v5694 = vld [vmem:[%s9 + $0x28] sm:$0xff]
      %v5695 = vld [vmem:[%s8] sm:$0xf]
      %v5696 = vld [vmem:[%s8 + $0x4] sm:$0xf]
      %v5697 = vld [vmem:[%s8 + $0x8] sm:$0xf]
      %v5698 = vld [vmem:[%s8 + $0xc] sm:$0xf]
      %v5699 = vld [vmem:[%s8 + $0x10] sm:$0xf]
      %v5700 = vld [vmem:[%s8 + $0x14] sm:$0xf]
      %v5707 = vunpack.c.l.b16 %v5695
      %v5708 = vunpack.c.l.b16 %v5696
      %v5709 = vunpack.c.l.b16 %v5697
      %v5710 = vunpack.c.l.b16 %v5698
      %v5711 = vunpack.c.l.b16 %v5699
      %v5712 = vunpack.c.l.b16 %v5700
      %v5713 = vpack.c.b16 %v5708, %v5707
      %v5714 = vpack.c.b16 %v5710, %v5709
      %v5715 = vpack.c.b16 %v5712, %v5711
      %v5717 = vsel %vm2487, %v5713, 0
      %v5720 = vsel %vm2487, %v5714, 0
      %v5723 = vsel %vm2487, %v5715, 0
      %5725 = vmatprep.subr.bf16.mxu0 0
      %5726 = vmatpush1.bf16.msra.mxu0 %v5677
      %5727 = vmatprep.subr.bf16.mxu0 0
      %5728 = vmatpush1.bf16.msra.mxu0 %v5681
      %5729 = vmatprep.subr.bf16.mxu0 0
      %5730 = vmatpush1.bf16.msra.mxu0 %v5685
      %5731 = vmatprep.subr.bf16.mxu0 0
      %5732 = vmatpush1.bf16.msra.mxu0 0
      %5733 = vmatprep.subr.bf16.mxu0 0
      %5734 = vmatpush1.bf16.msra.mxu0 0
      %5735 = vmatprep.subr.bf16.mxu0 0
      %5736 = vmatpush1.bf16.msra.mxu0 0
      %5737 = vmatprep.subr.bf16.mxu0 0
      %5738 = vmatpush1.bf16.msra.mxu0 0
      %5739 = vmatprep.subr.bf16.mxu0 0
      %5740 = vmatpush1.bf16.msra.mxu0 0
      %5741 = vmatprep.subr.bf16.mxu0 0
      %5742 = vmatpush1.bf16.msra.mxu0 0
      %5743 = vmatprep.subr.bf16.mxu0 0
      %5744 = vmatpush1.bf16.msra.mxu0 0
      %5745 = vmatprep.subr.bf16.mxu0 0
      %5746 = vmatpush1.bf16.msra.mxu0 0
      %5747 = vmatprep.subr.bf16.mxu0 0
      %5748 = vmatpush1.bf16.msra.mxu0 0
      %5749 = vmatprep.subr.bf16.mxu0 0
      %5750 = vmatpush1.bf16.msra.mxu0 0
      %5751 = vmatprep.subr.bf16.mxu0 0
      %5752 = vmatpush1.bf16.msra.mxu0 0
      %5753 = vmatprep.subr.bf16.mxu0 0
      %5754 = vmatpush1.bf16.msra.mxu0 0
      %5755 = vmatprep.subr.bf16.mxu0 0
      %5756 = vmatpush1.bf16.msra.mxu0 0
      %5757 = vmatprep.mubr.bf16.mxu0 0
      %5758 = vmatmul.mubr.bf16.gmra.mrb[0].mxu0 %v5717
      %v5759 = vpop.f32.mrb[0].mxu0
      %v5760 = vadd.f32 0.0, %v5759
      %v5761 = vpop.f32.mrb[0].mxu0
      %v5762 = vpop.f32.mrb[0].mxu0
      %v5763 = vadd.f32 0.0, %v5762
      %v5764 = vpop.f32.mrb[0].mxu0
      %5765 = vmatprep.mubr.bf16.mxu0 0
      %5766 = vmatmul.mubr.bf16.gmra.mrb[0].mxu0 %v5720
      %v5767 = vpop.f32.mrb[0].mxu0
      %v5768 = vadd.f32 0.0, %v5767
      %v5769 = vpop.f32.mrb[0].mxu0
      %v5770 = vpop.f32.mrb[0].mxu0
      %v5771 = vadd.f32 0.0, %v5770
      %v5772 = vpop.f32.mrb[0].mxu0
      %5773 = vmatprep.mubr.bf16.mxu0 0
      %5774 = vmatmul.mubr.bf16.gmra.mrb[0].mxu0 %v5723
      %v5775 = vpop.f32.mrb[0].mxu0
      %v5776 = vadd.f32 0.0, %v5775
      %v5777 = vpop.f32.mrb[0].mxu0
      %v5778 = vpop.f32.mrb[0].mxu0
      %v5779 = vadd.f32 0.0, %v5778
      %v5780 = vpop.f32.mrb[0].mxu0
      %5781 = vdwg.mxu0
      %v5782 = vadd.f32 %v5689, %v5760
      %v5783 = vadd.f32 %v5690, %v5763
      %v5784 = vadd.f32 %v5691, %v5768
      %v5785 = vadd.f32 %v5692, %v5771
      %v5786 = vadd.f32 %v5693, %v5776
      %v5787 = vadd.f32 %v5694, %v5779
      %s5788 = scalar_lea.vmem %s8, 24
      %v5789 = vld [vmem:[%s5788] sm:$0xf]
      %v5790 = vld [vmem:[%s5788 + $0x4] sm:$0xf]
      %v5791 = vld [vmem:[%s5788 + $0x8] sm:$0xf]
      %v5792 = vld [vmem:[%s5788 + $0xc] sm:$0xf]
      %v5793 = vld [vmem:[%s5788 + $0x10] sm:$0xf]
      %v5794 = vld [vmem:[%s5788 + $0x14] sm:$0xf]
      %v5801 = vunpack.c.l.b16 %v5789
      %v5802 = vunpack.c.l.b16 %v5790
      %v5803 = vunpack.c.l.b16 %v5791
      %v5804 = vunpack.c.l.b16 %v5792
      %v5805 = vunpack.c.l.b16 %v5793
      %v5806 = vunpack.c.l.b16 %v5794
      %v5807 = vpack.c.b16 %v5802, %v5801
      %v5808 = vpack.c.b16 %v5804, %v5803
      %v5809 = vpack.c.b16 %v5806, %v5805
      %v5811 = vsel %vm2487, %v5807, 0
      %v5814 = vsel %vm2487, %v5808, 0
      %v5817 = vsel %vm2487, %v5809, 0
      %5819 = vmatprep.subr.bf16.mxu0 0
      %5820 = vmatpush1.bf16.msra.mxu0 %v5678
      %5821 = vmatprep.subr.bf16.mxu0 0
      %5822 = vmatpush1.bf16.msra.mxu0 %v5682
      %5823 = vmatprep.subr.bf16.mxu0 0
      %5824 = vmatpush1.bf16.msra.mxu0 %v5686
      %5825 = vmatprep.subr.bf16.mxu0 0
      %5826 = vmatpush1.bf16.msra.mxu0 0
      %5827 = vmatprep.subr.bf16.mxu0 0
      %5828 = vmatpush1.bf16.msra.mxu0 0
      %5829 = vmatprep.subr.bf16.mxu0 0
      %5830 = vmatpush1.bf16.msra.mxu0 0
      %5831 = vmatprep.subr.bf16.mxu0 0
      %5832 = vmatpush1.bf16.msra.mxu0 0
      %5833 = vmatprep.subr.bf16.mxu0 0
      %5834 = vmatpush1.bf16.msra.mxu0 0
      %5835 = vmatprep.subr.bf16.mxu0 0
      %5836 = vmatpush1.bf16.msra.mxu0 0
      %5837 = vmatprep.subr.bf16.mxu0 0
      %5838 = vmatpush1.bf16.msra.mxu0 0
      %5839 = vmatprep.subr.bf16.mxu0 0
      %5840 = vmatpush1.bf16.msra.mxu0 0
      %5841 = vmatprep.subr.bf16.mxu0 0
      %5842 = vmatpush1.bf16.msra.mxu0 0
      %5843 = vmatprep.subr.bf16.mxu0 0
      %5844 = vmatpush1.bf16.msra.mxu0 0
      %5845 = vmatprep.subr.bf16.mxu0 0
      %5846 = vmatpush1.bf16.msra.mxu0 0
      %5847 = vmatprep.subr.bf16.mxu0 0
      %5848 = vmatpush1.bf16.msra.mxu0 0
      %5849 = vmatprep.subr.bf16.mxu0 0
      %5850 = vmatpush1.bf16.msra.mxu0 0
      %5851 = vmatprep.mubr.bf16.mxu0 0
      %5852 = vmatmul.mubr.bf16.gmra.mrb[0].mxu0 %v5811
      %v5853 = vpop.f32.mrb[0].mxu0
      %v5854 = vadd.f32 0.0, %v5853
      %v5855 = vpop.f32.mrb[0].mxu0
      %v5856 = vpop.f32.mrb[0].mxu0
      %v5857 = vadd.f32 0.0, %v5856
      %v5858 = vpop.f32.mrb[0].mxu0
      %5859 = vmatprep.mubr.bf16.mxu0 0
      %5860 = vmatmul.mubr.bf16.gmra.mrb[0].mxu0 %v5814
      %v5861 = vpop.f32.mrb[0].mxu0
      %v5862 = vadd.f32 0.0, %v5861
      %v5863 = vpop.f32.mrb[0].mxu0
      %v5864 = vpop.f32.mrb[0].mxu0
      %v5865 = vadd.f32 0.0, %v5864
      %v5866 = vpop.f32.mrb[0].mxu0
      %5867 = vmatprep.mubr.bf16.mxu0 0
      %5868 = vmatmul.mubr.bf16.gmra.mrb[0].mxu0 %v5817
      %v5869 = vpop.f32.mrb[0].mxu0
      %v5870 = vadd.f32 0.0, %v5869
      %v5871 = vpop.f32.mrb[0].mxu0
      %v5872 = vpop.f32.mrb[0].mxu0
      %v5873 = vadd.f32 0.0, %v5872
      %v5874 = vpop.f32.mrb[0].mxu0
      %5875 = vdwg.mxu0
      %v5876 = vadd.f32 %v5782, %v5854
      %v5877 = vadd.f32 %v5783, %v5857
      %v5878 = vadd.f32 %v5784, %v5862
      %v5879 = vadd.f32 %v5785, %v5865
      %v5880 = vadd.f32 %v5786, %v5870
      %v5881 = vadd.f32 %v5787, %v5873
      %s5882 = scalar_lea.vmem %s8, 48
      %v5883 = vld [vmem:[%s5882] sm:$0xf]
      %v5884 = vld [vmem:[%s5882 + $0x4] sm:$0xf]
      %v5885 = vld [vmem:[%s5882 + $0x8] sm:$0xf]
      %v5886 = vld [vmem:[%s5882 + $0xc] sm:$0xf]
      %v5887 = vld [vmem:[%s5882 + $0x10] sm:$0xf]
      %v5888 = vld [vmem:[%s5882 + $0x14] sm:$0xf]
      %v5895 = vunpack.c.l.b16 %v5883
      %v5896 = vunpack.c.l.b16 %v5884
      %v5897 = vunpack.c.l.b16 %v5885
      %v5898 = vunpack.c.l.b16 %v5886
      %v5899 = vunpack.c.l.b16 %v5887
      %v5900 = vunpack.c.l.b16 %v5888
      %v5901 = vpack.c.b16 %v5896, %v5895
      %v5902 = vpack.c.b16 %v5898, %v5897
      %v5903 = vpack.c.b16 %v5900, %v5899
      %v5905 = vsel %vm2487, %v5901, 0
      %v5908 = vsel %vm2487, %v5902, 0
      %v5911 = vsel %vm2487, %v5903, 0
      %5913 = vmatprep.subr.bf16.mxu0 0
      %5914 = vmatpush1.bf16.msra.mxu0 %v5679
      %5915 = vmatprep.subr.bf16.mxu0 0
      %5916 = vmatpush1.bf16.msra.mxu0 %v5683
      %5917 = vmatprep.subr.bf16.mxu0 0
      %5918 = vmatpush1.bf16.msra.mxu0 %v5687
      %5919 = vmatprep.subr.bf16.mxu0 0
      %5920 = vmatpush1.bf16.msra.mxu0 0
      %5921 = vmatprep.subr.bf16.mxu0 0
      %5922 = vmatpush1.bf16.msra.mxu0 0
      %5923 = vmatprep.subr.bf16.mxu0 0
      %5924 = vmatpush1.bf16.msra.mxu0 0
      %5925 = vmatprep.subr.bf16.mxu0 0
      %5926 = vmatpush1.bf16.msra.mxu0 0
      %5927 = vmatprep.subr.bf16.mxu0 0
      %5928 = vmatpush1.bf16.msra.mxu0 0
      %5929 = vmatprep.subr.bf16.mxu0 0
      %5930 = vmatpush1.bf16.msra.mxu0 0
      %5931 = vmatprep.subr.bf16.mxu0 0
      %5932 = vmatpush1.bf16.msra.mxu0 0
      %5933 = vmatprep.subr.bf16.mxu0 0
      %5934 = vmatpush1.bf16.msra.mxu0 0
      %5935 = vmatprep.subr.bf16.mxu0 0
      %5936 = vmatpush1.bf16.msra.mxu0 0
      %5937 = vmatprep.subr.bf16.mxu0 0
      %5938 = vmatpush1.bf16.msra.mxu0 0
      %5939 = vmatprep.subr.bf16.mxu0 0
      %5940 = vmatpush1.bf16.msra.mxu0 0
      %5941 = vmatprep.subr.bf16.mxu0 0
      %5942 = vmatpush1.bf16.msra.mxu0 0
      %5943 = vmatprep.subr.bf16.mxu0 0
      %5944 = vmatpush1.bf16.msra.mxu0 0
      %5945 = vmatprep.mubr.bf16.mxu0 0
      %5946 = vmatmul.mubr.bf16.gmra.mrb[0].mxu0 %v5905
      %v5947 = vpop.f32.mrb[0].mxu0
      %v5948 = vadd.f32 0.0, %v5947
      %v5949 = vpop.f32.mrb[0].mxu0
      %v5950 = vpop.f32.mrb[0].mxu0
      %v5951 = vadd.f32 0.0, %v5950
      %v5952 = vpop.f32.mrb[0].mxu0
      %5953 = vmatprep.mubr.bf16.mxu0 0
      %5954 = vmatmul.mubr.bf16.gmra.mrb[0].mxu0 %v5908
      %v5955 = vpop.f32.mrb[0].mxu0
      %v5956 = vadd.f32 0.0, %v5955
      %v5957 = vpop.f32.mrb[0].mxu0
      %v5958 = vpop.f32.mrb[0].mxu0
      %v5959 = vadd.f32 0.0, %v5958
      %v5960 = vpop.f32.mrb[0].mxu0
      %5961 = vmatprep.mubr.bf16.mxu0 0
      %5962 = vmatmul.mubr.bf16.gmra.mrb[0].mxu0 %v5911
      %v5963 = vpop.f32.mrb[0].mxu0
      %v5964 = vadd.f32 0.0, %v5963
      %v5965 = vpop.f32.mrb[0].mxu0
      %v5966 = vpop.f32.mrb[0].mxu0
      %v5967 = vadd.f32 0.0, %v5966
      %v5968 = vpop.f32.mrb[0].mxu0
      %5969 = vdwg.mxu0
      %v5970 = vadd.f32 %v5876, %v5948
      %v5971 = vadd.f32 %v5877, %v5951
      %v5972 = vadd.f32 %v5878, %v5956
      %v5973 = vadd.f32 %v5879, %v5959
      %v5974 = vadd.f32 %v5880, %v5964
      %v5975 = vadd.f32 %v5881, %v5967
      %s5976 = scalar_lea.vmem %s8, 72
      %v5977 = vld [vmem:[%s5976] sm:$0xf]
      %v5978 = vld [vmem:[%s5976 + $0x4] sm:$0xf]
      %v5979 = vld [vmem:[%s5976 + $0x8] sm:$0xf]
      %v5980 = vld [vmem:[%s5976 + $0xc] sm:$0xf]
      %v5981 = vld [vmem:[%s5976 + $0x10] sm:$0xf]
      %v5982 = vld [vmem:[%s5976 + $0x14] sm:$0xf]
      %v5989 = vunpack.c.l.b16 %v5977
      %v5990 = vunpack.c.l.b16 %v5978
      %v5991 = vunpack.c.l.b16 %v5979
      %v5992 = vunpack.c.l.b16 %v5980
      %v5993 = vunpack.c.l.b16 %v5981
      %v5994 = vunpack.c.l.b16 %v5982
      %v5995 = vpack.c.b16 %v5990, %v5989
      %v5996 = vpack.c.b16 %v5992, %v5991
      %v5997 = vpack.c.b16 %v5994, %v5993
      %v5999 = vsel %vm2487, %v5995, 0
      %v6002 = vsel %vm2487, %v5996, 0
      %v6005 = vsel %vm2487, %v5997, 0
      %6007 = vmatprep.subr.bf16.mxu0 0
      %6008 = vmatpush1.bf16.msra.mxu0 %v5680
      %6009 = vmatprep.subr.bf16.mxu0 0
      %6010 = vmatpush1.bf16.msra.mxu0 %v5684
      %6011 = vmatprep.subr.bf16.mxu0 0
      %6012 = vmatpush1.bf16.msra.mxu0 %v5688
      %6013 = vmatprep.subr.bf16.mxu0 0
      %6014 = vmatpush1.bf16.msra.mxu0 0
      %6015 = vmatprep.subr.bf16.mxu0 0
      %6016 = vmatpush1.bf16.msra.mxu0 0
      %6017 = vmatprep.subr.bf16.mxu0 0
      %6018 = vmatpush1.bf16.msra.mxu0 0
      %6019 = vmatprep.subr.bf16.mxu0 0
      %6020 = vmatpush1.bf16.msra.mxu0 0
      %6021 = vmatprep.subr.bf16.mxu0 0
      %6022 = vmatpush1.bf16.msra.mxu0 0
      %6023 = vmatprep.subr.bf16.mxu0 0
      %6024 = vmatpush1.bf16.msra.mxu0 0
      %6025 = vmatprep.subr.bf16.mxu0 0
      %6026 = vmatpush1.bf16.msra.mxu0 0
      %6027 = vmatprep.subr.bf16.mxu0 0
      %6028 = vmatpush1.bf16.msra.mxu0 0
      %6029 = vmatprep.subr.bf16.mxu0 0
      %6030 = vmatpush1.bf16.msra.mxu0 0
      %6031 = vmatprep.subr.bf16.mxu0 0
      %6032 = vmatpush1.bf16.msra.mxu0 0
      %6033 = vmatprep.subr.bf16.mxu0 0
      %6034 = vmatpush1.bf16.msra.mxu0 0
      %6035 = vmatprep.subr.bf16.mxu0 0
      %6036 = vmatpush1.bf16.msra.mxu0 0
      %6037 = vmatprep.subr.bf16.mxu0 0
      %6038 = vmatpush1.bf16.msra.mxu0 0
      %6039 = vmatprep.mubr.bf16.mxu0 0
      %6040 = vmatmul.mubr.bf16.gmra.mrb[0].mxu0 %v5999
      %v6041 = vpop.f32.mrb[0].mxu0
      %v6042 = vadd.f32 0.0, %v6041
      %v6043 = vpop.f32.mrb[0].mxu0
      %v6044 = vpop.f32.mrb[0].mxu0
      %v6045 = vadd.f32 0.0, %v6044
      %v6046 = vpop.f32.mrb[0].mxu0
      %6047 = vmatprep.mubr.bf16.mxu0 0
      %6048 = vmatmul.mubr.bf16.gmra.mrb[0].mxu0 %v6002
      %v6049 = vpop.f32.mrb[0].mxu0
      %v6050 = vadd.f32 0.0, %v6049
      %v6051 = vpop.f32.mrb[0].mxu0
      %v6052 = vpop.f32.mrb[0].mxu0
      %v6053 = vadd.f32 0.0, %v6052
      %v6054 = vpop.f32.mrb[0].mxu0
      %6055 = vmatprep.mubr.bf16.mxu0 0
      %6056 = vmatmul.mubr.bf16.gmra.mrb[0].mxu0 %v6005
      %v6057 = vpop.f32.mrb[0].mxu0
      %v6058 = vadd.f32 0.0, %v6057
      %v6059 = vpop.f32.mrb[0].mxu0
      %v6060 = vpop.f32.mrb[0].mxu0
      %v6061 = vadd.f32 0.0, %v6060
      %v6062 = vpop.f32.mrb[0].mxu0
      %6063 = vdwg.mxu0
      %v6064 = vadd.f32 %v5970, %v6042
      %v6065 = vadd.f32 %v5971, %v6045
      %v6066 = vadd.f32 %v5972, %v6050
      %v6067 = vadd.f32 %v5973, %v6053
      %v6068 = vadd.f32 %v5974, %v6058
      %v6069 = vadd.f32 %v5975, %v6061
      %v6070 = vtanh.pop %v6064
      %v6071 = vtanh.pop %v6065
      %v6072 = vtanh.pop %v6066
      %v6073 = vtanh.pop %v6067
      %v6074 = vtanh.pop %v6068
      %v6075 = vtanh.pop %v6069
      %v6076 = vpack.c.bf16 %v6071, %v6070
      %v6077 = vpack.c.bf16 %v6073, %v6072
      %v6078 = vpack.c.bf16 %v6075, %v6074
      %v6079 = vld [vmem:[%s10] sm:$0xff]
      %v6080 = vld [vmem:[%s10 + $0x8] sm:$0xff]
      %v6081 = vld [vmem:[%s10 + $0x10] sm:$0xff]
      %v6082 = vld [vmem:[%s10 + $0x18] sm:$0xff]
      %v6083 = vld [vmem:[%s10 + $0x20] sm:$0xff]
      %v6084 = vld [vmem:[%s10 + $0x28] sm:$0xff]
      %v6085 = vld [vmem:[%s10 + $0x30] sm:$0x11]
      %v6086 = vld [vmem:[%s10 + $0x38] sm:$0x11]
      %v6095 = vunpack.c.l.b16 %v6079
      %v6096 = vunpack.c.h.b16 %v6079
      %v6097 = vunpack.c.l.b16 %v6080
      %v6098 = vunpack.c.h.b16 %v6080
      %v6099 = vunpack.c.l.b16 %v6081
      %v6100 = vunpack.c.h.b16 %v6081
      %v6101 = vunpack.c.l.b16 %v6082
      %v6102 = vunpack.c.h.b16 %v6082
      %v6103 = vunpack.c.l.b16 %v6083
      %v6104 = vunpack.c.h.b16 %v6083
      %v6105 = vunpack.c.l.b16 %v6084
      %v6106 = vunpack.c.h.b16 %v6084
      %v6107 = vunpack.c.l.b16 %v6085
      %v6108 = vunpack.c.h.b16 %v6085
      %v6109 = vunpack.c.l.b16 %v6086
      %v6110 = vunpack.c.h.b16 %v6086
      %v6111 = vpack.c.b16 %v6099, %v6095
      %v6112 = vpack.c.b16 %v6100, %v6096
      %v6113 = vpack.c.b16 %v6101, %v6097
      %v6114 = vpack.c.b16 %v6102, %v6098
      %v6115 = vpack.c.b16 %v6107, %v6103
      %v6116 = vpack.c.b16 %v6108, %v6104
      %v6117 = vpack.c.b16 %v6109, %v6105
      %v6118 = vpack.c.b16 %v6110, %v6106
      %vm6123 = vcmask 203776
      %v6125 = vsel %vm6123, %v6076, 0
      %v6128 = vsel %vm6123, %v6077, 0
      %v6131 = vsel %vm6123, %v6078, 0
      %vm6133 = vcmask 1043456
      %vm6134 = vcmask 1044480
      %v6135 = vsel %vm6133, 4294967295, 65535
      %v6136 = vsel %vm6134, %v6135, 0
      %v6138 = vand.u32 %v6115, %v6136
      %v6141 = vand.u32 %v6116, %v6136
      %v6144 = vand.u32 %v6117, %v6136
      %v6147 = vand.u32 %v6118, %v6136
      %6149 = vmatprep.subr.bf16.mxu0 %v6112
      %6150 = vmatpush1.bf16.msra.mxu0 %v6111
      %6151 = vmatprep.subr.bf16.mxu0 %v6141
      %6152 = vmatpush1.bf16.msra.mxu0 %v6138
      %6153 = vmatprep.subr.bf16.mxu0 0
      %6154 = vmatpush1.bf16.msra.mxu0 0
      %6155 = vmatprep.subr.bf16.mxu0 0
      %6156 = vmatpush1.bf16.msra.mxu0 0
      %6157 = vmatprep.subr.bf16.mxu0 0
      %6158 = vmatpush1.bf16.msra.mxu0 0
      %6159 = vmatprep.subr.bf16.mxu0 0
      %6160 = vmatpush1.bf16.msra.mxu0 0
      %6161 = vmatprep.subr.bf16.mxu0 0
      %6162 = vmatpush1.bf16.msra.mxu0 0
      %6163 = vmatprep.subr.bf16.mxu0 0
      %6164 = vmatpush1.bf16.msra.mxu0 0
      %6165 = vmatprep.subr.bf16.mxu0 0
      %6166 = vmatpush1.bf16.msra.mxu0 0
      %6167 = vmatprep.subr.bf16.mxu0 0
      %6168 = vmatpush1.bf16.msra.mxu0 0
      %6169 = vmatprep.subr.bf16.mxu0 0
      %6170 = vmatpush1.bf16.msra.mxu0 0
      %6171 = vmatprep.subr.bf16.mxu0 0
      %6172 = vmatpush1.bf16.msra.mxu0 0
      %6173 = vmatprep.subr.bf16.mxu0 0
      %6174 = vmatpush1.bf16.msra.mxu0 0
      %6175 = vmatprep.subr.bf16.mxu0 0
      %6176 = vmatpush1.bf16.msra.mxu0 0
      %6177 = vmatprep.subr.bf16.mxu0 0
      %6178 = vmatpush1.bf16.msra.mxu0 0
      %6179 = vmatprep.subr.bf16.mxu0 0
      %6180 = vmatpush1.bf16.msra.mxu0 0
      %6181 = vmatprep.mubr.bf16.mxu0 0
      %6182 = vmatmul.mubr.bf16.gmra.mrb[0].mxu0 %v6125
      %v6183 = vpop.f32.mrb[0].mxu0
      %v6184 = vadd.f32 0.0, %v6183
      %v6185 = vpop.f32.mrb[0].mxu0
      %v6186 = vadd.f32 0.0, %v6185
      %v6187 = vpop.f32.mrb[0].mxu0
      %v6188 = vadd.f32 0.0, %v6187
      %v6189 = vpop.f32.mrb[0].mxu0
      %v6190 = vadd.f32 0.0, %v6189
      %6191 = vmatprep.mubr.bf16.mxu0 0
      %6192 = vmatmul.mubr.bf16.gmra.mrb[0].mxu0 %v6128
      %v6193 = vpop.f32.mrb[0].mxu0
      %v6194 = vadd.f32 0.0, %v6193
      %v6195 = vpop.f32.mrb[0].mxu0
      %v6196 = vadd.f32 0.0, %v6195
      %v6197 = vpop.f32.mrb[0].mxu0
      %v6198 = vadd.f32 0.0, %v6197
      %v6199 = vpop.f32.mrb[0].mxu0
      %v6200 = vadd.f32 0.0, %v6199
      %6201 = vmatprep.mubr.bf16.mxu0 0
      %6202 = vmatmul.mubr.bf16.gmra.mrb[0].mxu0 %v6131
      %v6203 = vpop.f32.mrb[0].mxu0
      %v6204 = vadd.f32 0.0, %v6203
      %v6205 = vpop.f32.mrb[0].mxu0
      %v6206 = vadd.f32 0.0, %v6205
      %v6207 = vpop.f32.mrb[0].mxu0
      %v6208 = vadd.f32 0.0, %v6207
      %v6209 = vpop.f32.mrb[0].mxu0
      %v6210 = vadd.f32 0.0, %v6209
      %6211 = vdwg.mxu0
      %6212 = vmatprep.subr.bf16.mxu0 %v6114
      %6213 = vmatpush1.bf16.msra.mxu0 %v6113
      %6214 = vmatprep.subr.bf16.mxu0 %v6147
      %6215 = vmatpush1.bf16.msra.mxu0 %v6144
      %6216 = vmatprep.subr.bf16.mxu0 0
      %6217 = vmatpush1.bf16.msra.mxu0 0
      %6218 = vmatprep.subr.bf16.mxu0 0
      %6219 = vmatpush1.bf16.msra.mxu0 0
      %6220 = vmatprep.subr.bf16.mxu0 0
      %6221 = vmatpush1.bf16.msra.mxu0 0
      %6222 = vmatprep.subr.bf16.mxu0 0
      %6223 = vmatpush1.bf16.msra.mxu0 0
      %6224 = vmatprep.subr.bf16.mxu0 0
      %6225 = vmatpush1.bf16.msra.mxu0 0
      %6226 = vmatprep.subr.bf16.mxu0 0
      %6227 = vmatpush1.bf16.msra.mxu0 0
      %6228 = vmatprep.subr.bf16.mxu0 0
      %6229 = vmatpush1.bf16.msra.mxu0 0
      %6230 = vmatprep.subr.bf16.mxu0 0
      %6231 = vmatpush1.bf16.msra.mxu0 0
      %6232 = vmatprep.subr.bf16.mxu0 0
      %6233 = vmatpush1.bf16.msra.mxu0 0
      %6234 = vmatprep.subr.bf16.mxu0 0
      %6235 = vmatpush1.bf16.msra.mxu0 0
      %6236 = vmatprep.subr.bf16.mxu0 0
      %6237 = vmatpush1.bf16.msra.mxu0 0
      %6238 = vmatprep.subr.bf16.mxu0 0
      %6239 = vmatpush1.bf16.msra.mxu0 0
      %6240 = vmatprep.subr.bf16.mxu0 0
      %6241 = vmatpush1.bf16.msra.mxu0 0
      %6242 = vmatprep.subr.bf16.mxu0 0
      %6243 = vmatpush1.bf16.msra.mxu0 0
      %6244 = vmatprep.mubr.bf16.mxu0 0
      %6245 = vmatmul.mubr.bf16.gmra.mrb[0].mxu0 %v6125
      %v6246 = vpop.f32.mrb[0].mxu0
      %v6247 = vadd.f32 0.0, %v6246
      %v6248 = vpop.f32.mrb[0].mxu0
      %v6249 = vadd.f32 0.0, %v6248
      %v6250 = vpop.f32.mrb[0].mxu0
      %v6251 = vadd.f32 0.0, %v6250
      %v6252 = vpop.f32.mrb[0].mxu0
      %v6253 = vadd.f32 0.0, %v6252
      %6254 = vmatprep.mubr.bf16.mxu0 0
      %6255 = vmatmul.mubr.bf16.gmra.mrb[0].mxu0 %v6128
      %v6256 = vpop.f32.mrb[0].mxu0
      %v6257 = vadd.f32 0.0, %v6256
      %v6258 = vpop.f32.mrb[0].mxu0
      %v6259 = vadd.f32 0.0, %v6258
      %v6260 = vpop.f32.mrb[0].mxu0
      %v6261 = vadd.f32 0.0, %v6260
      %v6262 = vpop.f32.mrb[0].mxu0
      %v6263 = vadd.f32 0.0, %v6262
      %6264 = vmatprep.mubr.bf16.mxu0 0
      %6265 = vmatmul.mubr.bf16.gmra.mrb[0].mxu0 %v6131
      %v6266 = vpop.f32.mrb[0].mxu0
      %v6267 = vadd.f32 0.0, %v6266
      %v6268 = vpop.f32.mrb[0].mxu0
      %v6269 = vadd.f32 0.0, %v6268
      %v6270 = vpop.f32.mrb[0].mxu0
      %v6271 = vadd.f32 0.0, %v6270
      %v6272 = vpop.f32.mrb[0].mxu0
      %v6273 = vadd.f32 0.0, %v6272
      %6274 = vdwg.mxu0
      %v6275 = vpack.c.bf16 %v6188, %v6184
      %v6276 = vpack.c.bf16 %v6190, %v6186
      %v6277 = vpack.c.bf16 %v6251, %v6247
      %v6278 = vpack.c.bf16 %v6253, %v6249
      %v6279 = vpack.c.bf16 %v6198, %v6194
      %v6280 = vpack.c.bf16 %v6200, %v6196
      %v6281 = vpack.c.bf16 %v6261, %v6257
      %v6282 = vpack.c.bf16 %v6263, %v6259
      %v6283 = vpack.c.bf16 %v6208, %v6204
      %v6284 = vpack.c.bf16 %v6210, %v6206
      %v6285 = vpack.c.bf16 %v6271, %v6267
      %v6286 = vpack.c.bf16 %v6273, %v6269
      %v6287 = vld [vmem:[%s12] sm:$0xff]
      %v6288 = vld [vmem:[%s12 + $0x8] sm:$0xff]
      %v6289 = vld [vmem:[%s12 + $0x10] sm:$0xff]
      %v6290 = vld [vmem:[%s12 + $0x18] sm:$0xff]
      %v6291 = vld [vmem:[%s12 + $0x20] sm:$0xff]
      %v6292 = vld [vmem:[%s12 + $0x28] sm:$0xff]
      %v6293 = vld [vmem:[%s11] sm:$0xf]
      %v6294 = vld [vmem:[%s11 + $0x4] sm:$0xf]
      %v6295 = vld [vmem:[%s11 + $0x8] sm:$0xf]
      %v6296 = vld [vmem:[%s11 + $0xc] sm:$0xf]
      %v6297 = vld [vmem:[%s11 + $0x10] sm:$0xf]
      %v6298 = vld [vmem:[%s11 + $0x14] sm:$0xf]
      %v6305 = vunpack.c.l.b16 %v6293
      %v6306 = vunpack.c.l.b16 %v6294
      %v6307 = vunpack.c.l.b16 %v6295
      %v6308 = vunpack.c.l.b16 %v6296
      %v6309 = vunpack.c.l.b16 %v6297
      %v6310 = vunpack.c.l.b16 %v6298
      %v6311 = vpack.c.b16 %v6306, %v6305
      %v6312 = vpack.c.b16 %v6308, %v6307
      %v6313 = vpack.c.b16 %v6310, %v6309
      %v6315 = vsel %vm2487, %v6311, 0
      %v6318 = vsel %vm2487, %v6312, 0
      %v6321 = vsel %vm2487, %v6313, 0
      %6323 = vmatprep.subr.bf16.mxu0 0
      %6324 = vmatpush1.bf16.msra.mxu0 %v6275
      %6325 = vmatprep.subr.bf16.mxu0 0
      %6326 = vmatpush1.bf16.msra.mxu0 %v6279
      %6327 = vmatprep.subr.bf16.mxu0 0
      %6328 = vmatpush1.bf16.msra.mxu0 %v6283
      %6329 = vmatprep.subr.bf16.mxu0 0
      %6330 = vmatpush1.bf16.msra.mxu0 0
      %6331 = vmatprep.subr.bf16.mxu0 0
      %6332 = vmatpush1.bf16.msra.mxu0 0
      %6333 = vmatprep.subr.bf16.mxu0 0
      %6334 = vmatpush1.bf16.msra.mxu0 0
      %6335 = vmatprep.subr.bf16.mxu0 0
      %6336 = vmatpush1.bf16.msra.mxu0 0
      %6337 = vmatprep.subr.bf16.mxu0 0
      %6338 = vmatpush1.bf16.msra.mxu0 0
      %6339 = vmatprep.subr.bf16.mxu0 0
      %6340 = vmatpush1.bf16.msra.mxu0 0
      %6341 = vmatprep.subr.bf16.mxu0 0
      %6342 = vmatpush1.bf16.msra.mxu0 0
      %6343 = vmatprep.subr.bf16.mxu0 0
      %6344 = vmatpush1.bf16.msra.mxu0 0
      %6345 = vmatprep.subr.bf16.mxu0 0
      %6346 = vmatpush1.bf16.msra.mxu0 0
      %6347 = vmatprep.subr.bf16.mxu0 0
      %6348 = vmatpush1.bf16.msra.mxu0 0
      %6349 = vmatprep.subr.bf16.mxu0 0
      %6350 = vmatpush1.bf16.msra.mxu0 0
      %6351 = vmatprep.subr.bf16.mxu0 0
      %6352 = vmatpush1.bf16.msra.mxu0 0
      %6353 = vmatprep.subr.bf16.mxu0 0
      %6354 = vmatpush1.bf16.msra.mxu0 0
      %6355 = vmatprep.mubr.bf16.mxu0 0
      %6356 = vmatmul.mubr.bf16.gmra.mrb[0].mxu0 %v6315
      %v6357 = vpop.f32.mrb[0].mxu0
      %v6358 = vadd.f32 0.0, %v6357
      %v6359 = vpop.f32.mrb[0].mxu0
      %v6360 = vpop.f32.mrb[0].mxu0
      %v6361 = vadd.f32 0.0, %v6360
      %v6362 = vpop.f32.mrb[0].mxu0
      %6363 = vmatprep.mubr.bf16.mxu0 0
      %6364 = vmatmul.mubr.bf16.gmra.mrb[0].mxu0 %v6318
      %v6365 = vpop.f32.mrb[0].mxu0
      %v6366 = vadd.f32 0.0, %v6365
      %v6367 = vpop.f32.mrb[0].mxu0
      %v6368 = vpop.f32.mrb[0].mxu0
      %v6369 = vadd.f32 0.0, %v6368
      %v6370 = vpop.f32.mrb[0].mxu0
      %6371 = vmatprep.mubr.bf16.mxu0 0
      %6372 = vmatmul.mubr.bf16.gmra.mrb[0].mxu0 %v6321
      %v6373 = vpop.f32.mrb[0].mxu0
      %v6374 = vadd.f32 0.0, %v6373
      %v6375 = vpop.f32.mrb[0].mxu0
      %v6376 = vpop.f32.mrb[0].mxu0
      %v6377 = vadd.f32 0.0, %v6376
      %v6378 = vpop.f32.mrb[0].mxu0
      %6379 = vdwg.mxu0
      %v6380 = vadd.f32 %v6287, %v6358
      %v6381 = vadd.f32 %v6288, %v6361
      %v6382 = vadd.f32 %v6289, %v6366
      %v6383 = vadd.f32 %v6290, %v6369
      %v6384 = vadd.f32 %v6291, %v6374
      %v6385 = vadd.f32 %v6292, %v6377
      %s6386 = scalar_lea.vmem %s11, 24
      %v6387 = vld [vmem:[%s6386] sm:$0xf]
      %v6388 = vld [vmem:[%s6386 + $0x4] sm:$0xf]
      %v6389 = vld [vmem:[%s6386 + $0x8] sm:$0xf]
      %v6390 = vld [vmem:[%s6386 + $0xc] sm:$0xf]
      %v6391 = vld [vmem:[%s6386 + $0x10] sm:$0xf]
      %v6392 = vld [vmem:[%s6386 + $0x14] sm:$0xf]
      %v6399 = vunpack.c.l.b16 %v6387
      %v6400 = vunpack.c.l.b16 %v6388
      %v6401 = vunpack.c.l.b16 %v6389
      %v6402 = vunpack.c.l.b16 %v6390
      %v6403 = vunpack.c.l.b16 %v6391
      %v6404 = vunpack.c.l.b16 %v6392
      %v6405 = vpack.c.b16 %v6400, %v6399
      %v6406 = vpack.c.b16 %v6402, %v6401
      %v6407 = vpack.c.b16 %v6404, %v6403
      %v6409 = vsel %vm2487, %v6405, 0
      %v6412 = vsel %vm2487, %v6406, 0
      %v6415 = vsel %vm2487, %v6407, 0
      %6417 = vmatprep.subr.bf16.mxu0 0
      %6418 = vmatpush1.bf16.msra.mxu0 %v6276
      %6419 = vmatprep.subr.bf16.mxu0 0
      %6420 = vmatpush1.bf16.msra.mxu0 %v6280
      %6421 = vmatprep.subr.bf16.mxu0 0
      %6422 = vmatpush1.bf16.msra.mxu0 %v6284
      %6423 = vmatprep.subr.bf16.mxu0 0
      %6424 = vmatpush1.bf16.msra.mxu0 0
      %6425 = vmatprep.subr.bf16.mxu0 0
      %6426 = vmatpush1.bf16.msra.mxu0 0
      %6427 = vmatprep.subr.bf16.mxu0 0
      %6428 = vmatpush1.bf16.msra.mxu0 0
      %6429 = vmatprep.subr.bf16.mxu0 0
      %6430 = vmatpush1.bf16.msra.mxu0 0
      %6431 = vmatprep.subr.bf16.mxu0 0
      %6432 = vmatpush1.bf16.msra.mxu0 0
      %6433 = vmatprep.subr.bf16.mxu0 0
      %6434 = vmatpush1.bf16.msra.mxu0 0
      %6435 = vmatprep.subr.bf16.mxu0 0
      %6436 = vmatpush1.bf16.msra.mxu0 0
      %6437 = vmatprep.subr.bf16.mxu0 0
      %6438 = vmatpush1.bf16.msra.mxu0 0
      %6439 = vmatprep.subr.bf16.mxu0 0
      %6440 = vmatpush1.bf16.msra.mxu0 0
      %6441 = vmatprep.subr.bf16.mxu0 0
      %6442 = vmatpush1.bf16.msra.mxu0 0
      %6443 = vmatprep.subr.bf16.mxu0 0
      %6444 = vmatpush1.bf16.msra.mxu0 0
      %6445 = vmatprep.subr.bf16.mxu0 0
      %6446 = vmatpush1.bf16.msra.mxu0 0
      %6447 = vmatprep.subr.bf16.mxu0 0
      %6448 = vmatpush1.bf16.msra.mxu0 0
      %6449 = vmatprep.mubr.bf16.mxu0 0
      %6450 = vmatmul.mubr.bf16.gmra.mrb[0].mxu0 %v6409
      %v6451 = vpop.f32.mrb[0].mxu0
      %v6452 = vadd.f32 0.0, %v6451
      %v6453 = vpop.f32.mrb[0].mxu0
      %v6454 = vpop.f32.mrb[0].mxu0
      %v6455 = vadd.f32 0.0, %v6454
      %v6456 = vpop.f32.mrb[0].mxu0
      %6457 = vmatprep.mubr.bf16.mxu0 0
      %6458 = vmatmul.mubr.bf16.gmra.mrb[0].mxu0 %v6412
      %v6459 = vpop.f32.mrb[0].mxu0
      %v6460 = vadd.f32 0.0, %v6459
      %v6461 = vpop.f32.mrb[0].mxu0
      %v6462 = vpop.f32.mrb[0].mxu0
      %v6463 = vadd.f32 0.0, %v6462
      %v6464 = vpop.f32.mrb[0].mxu0
      %6465 = vmatprep.mubr.bf16.mxu0 0
      %6466 = vmatmul.mubr.bf16.gmra.mrb[0].mxu0 %v6415
      %v6467 = vpop.f32.mrb[0].mxu0
      %v6468 = vadd.f32 0.0, %v6467
      %v6469 = vpop.f32.mrb[0].mxu0
      %v6470 = vpop.f32.mrb[0].mxu0
      %v6471 = vadd.f32 0.0, %v6470
      %v6472 = vpop.f32.mrb[0].mxu0
      %6473 = vdwg.mxu0
      %v6474 = vadd.f32 %v6380, %v6452
      %v6475 = vadd.f32 %v6381, %v6455
      %v6476 = vadd.f32 %v6382, %v6460
      %v6477 = vadd.f32 %v6383, %v6463
      %v6478 = vadd.f32 %v6384, %v6468
      %v6479 = vadd.f32 %v6385, %v6471
      %s6480 = scalar_lea.vmem %s11, 48
      %v6481 = vld [vmem:[%s6480] sm:$0xf]
      %v6482 = vld [vmem:[%s6480 + $0x4] sm:$0xf]
      %v6483 = vld [vmem:[%s6480 + $0x8] sm:$0xf]
      %v6484 = vld [vmem:[%s6480 + $0xc] sm:$0xf]
      %v6485 = vld [vmem:[%s6480 + $0x10] sm:$0xf]
      %v6486 = vld [vmem:[%s6480 + $0x14] sm:$0xf]
      %v6493 = vunpack.c.l.b16 %v6481
      %v6494 = vunpack.c.l.b16 %v6482
      %v6495 = vunpack.c.l.b16 %v6483
      %v6496 = vunpack.c.l.b16 %v6484
      %v6497 = vunpack.c.l.b16 %v6485
      %v6498 = vunpack.c.l.b16 %v6486
      %v6499 = vpack.c.b16 %v6494, %v6493
      %v6500 = vpack.c.b16 %v6496, %v6495
      %v6501 = vpack.c.b16 %v6498, %v6497
      %v6503 = vsel %vm2487, %v6499, 0
      %v6506 = vsel %vm2487, %v6500, 0
      %v6509 = vsel %vm2487, %v6501, 0
      %6511 = vmatprep.subr.bf16.mxu0 0
      %6512 = vmatpush1.bf16.msra.mxu0 %v6277
      %6513 = vmatprep.subr.bf16.mxu0 0
      %6514 = vmatpush1.bf16.msra.mxu0 %v6281
      %6515 = vmatprep.subr.bf16.mxu0 0
      %6516 = vmatpush1.bf16.msra.mxu0 %v6285
      %6517 = vmatprep.subr.bf16.mxu0 0
      %6518 = vmatpush1.bf16.msra.mxu0 0
      %6519 = vmatprep.subr.bf16.mxu0 0
      %6520 = vmatpush1.bf16.msra.mxu0 0
      %6521 = vmatprep.subr.bf16.mxu0 0
      %6522 = vmatpush1.bf16.msra.mxu0 0
      %6523 = vmatprep.subr.bf16.mxu0 0
      %6524 = vmatpush1.bf16.msra.mxu0 0
      %6525 = vmatprep.subr.bf16.mxu0 0
      %6526 = vmatpush1.bf16.msra.mxu0 0
      %6527 = vmatprep.subr.bf16.mxu0 0
      %6528 = vmatpush1.bf16.msra.mxu0 0
      %6529 = vmatprep.subr.bf16.mxu0 0
      %6530 = vmatpush1.bf16.msra.mxu0 0
      %6531 = vmatprep.subr.bf16.mxu0 0
      %6532 = vmatpush1.bf16.msra.mxu0 0
      %6533 = vmatprep.subr.bf16.mxu0 0
      %6534 = vmatpush1.bf16.msra.mxu0 0
      %6535 = vmatprep.subr.bf16.mxu0 0
      %6536 = vmatpush1.bf16.msra.mxu0 0
      %6537 = vmatprep.subr.bf16.mxu0 0
      %6538 = vmatpush1.bf16.msra.mxu0 0
      %6539 = vmatprep.subr.bf16.mxu0 0
      %6540 = vmatpush1.bf16.msra.mxu0 0
      %6541 = vmatprep.subr.bf16.mxu0 0
      %6542 = vmatpush1.bf16.msra.mxu0 0
      %6543 = vmatprep.mubr.bf16.mxu0 0
      %6544 = vmatmul.mubr.bf16.gmra.mrb[0].mxu0 %v6503
      %v6545 = vpop.f32.mrb[0].mxu0
      %v6546 = vadd.f32 0.0, %v6545
      %v6547 = vpop.f32.mrb[0].mxu0
      %v6548 = vpop.f32.mrb[0].mxu0
      %v6549 = vadd.f32 0.0, %v6548
      %v6550 = vpop.f32.mrb[0].mxu0
      %6551 = vmatprep.mubr.bf16.mxu0 0
      %6552 = vmatmul.mubr.bf16.gmra.mrb[0].mxu0 %v6506
      %v6553 = vpop.f32.mrb[0].mxu0
      %v6554 = vadd.f32 0.0, %v6553
      %v6555 = vpop.f32.mrb[0].mxu0
      %v6556 = vpop.f32.mrb[0].mxu0
      %v6557 = vadd.f32 0.0, %v6556
      %v6558 = vpop.f32.mrb[0].mxu0
      %6559 = vmatprep.mubr.bf16.mxu0 0
      %6560 = vmatmul.mubr.bf16.gmra.mrb[0].mxu0 %v6509
      %v6561 = vpop.f32.mrb[0].mxu0
      %v6562 = vadd.f32 0.0, %v6561
      %v6563 = vpop.f32.mrb[0].mxu0
      %v6564 = vpop.f32.mrb[0].mxu0
      %v6565 = vadd.f32 0.0, %v6564
      %v6566 = vpop.f32.mrb[0].mxu0
      %6567 = vdwg.mxu0
      %v6568 = vadd.f32 %v6474, %v6546
      %v6569 = vadd.f32 %v6475, %v6549
      %v6570 = vadd.f32 %v6476, %v6554
      %v6571 = vadd.f32 %v6477, %v6557
      %v6572 = vadd.f32 %v6478, %v6562
      %v6573 = vadd.f32 %v6479, %v6565
      %s6574 = scalar_lea.vmem %s11, 72
      %v6575 = vld [vmem:[%s6574] sm:$0xf]
      %v6576 = vld [vmem:[%s6574 + $0x4] sm:$0xf]
      %v6577 = vld [vmem:[%s6574 + $0x8] sm:$0xf]
      %v6578 = vld [vmem:[%s6574 + $0xc] sm:$0xf]
      %v6579 = vld [vmem:[%s6574 + $0x10] sm:$0xf]
      %v6580 = vld [vmem:[%s6574 + $0x14] sm:$0xf]
      %v6587 = vunpack.c.l.b16 %v6575
      %v6588 = vunpack.c.l.b16 %v6576
      %v6589 = vunpack.c.l.b16 %v6577
      %v6590 = vunpack.c.l.b16 %v6578
      %v6591 = vunpack.c.l.b16 %v6579
      %v6592 = vunpack.c.l.b16 %v6580
      %v6593 = vpack.c.b16 %v6588, %v6587
      %v6594 = vpack.c.b16 %v6590, %v6589
      %v6595 = vpack.c.b16 %v6592, %v6591
      %v6597 = vsel %vm2487, %v6593, 0
      %v6600 = vsel %vm2487, %v6594, 0
      %v6603 = vsel %vm2487, %v6595, 0
      %6605 = vmatprep.subr.bf16.mxu0 0
      %6606 = vmatpush1.bf16.msra.mxu0 %v6278
      %6607 = vmatprep.subr.bf16.mxu0 0
      %6608 = vmatpush1.bf16.msra.mxu0 %v6282
      %6609 = vmatprep.subr.bf16.mxu0 0
      %6610 = vmatpush1.bf16.msra.mxu0 %v6286
      %6611 = vmatprep.subr.bf16.mxu0 0
      %6612 = vmatpush1.bf16.msra.mxu0 0
      %6613 = vmatprep.subr.bf16.mxu0 0
      %6614 = vmatpush1.bf16.msra.mxu0 0
      %6615 = vmatprep.subr.bf16.mxu0 0
      %6616 = vmatpush1.bf16.msra.mxu0 0
      %6617 = vmatprep.subr.bf16.mxu0 0
      %6618 = vmatpush1.bf16.msra.mxu0 0
      %6619 = vmatprep.subr.bf16.mxu0 0
      %6620 = vmatpush1.bf16.msra.mxu0 0
      %6621 = vmatprep.subr.bf16.mxu0 0
      %6622 = vmatpush1.bf16.msra.mxu0 0
      %6623 = vmatprep.subr.bf16.mxu0 0
      %6624 = vmatpush1.bf16.msra.mxu0 0
      %6625 = vmatprep.subr.bf16.mxu0 0
      %6626 = vmatpush1.bf16.msra.mxu0 0
      %6627 = vmatprep.subr.bf16.mxu0 0
      %6628 = vmatpush1.bf16.msra.mxu0 0
      %6629 = vmatprep.subr.bf16.mxu0 0
      %6630 = vmatpush1.bf16.msra.mxu0 0
      %6631 = vmatprep.subr.bf16.mxu0 0
      %6632 = vmatpush1.bf16.msra.mxu0 0
      %6633 = vmatprep.subr.bf16.mxu0 0
      %6634 = vmatpush1.bf16.msra.mxu0 0
      %6635 = vmatprep.subr.bf16.mxu0 0
      %6636 = vmatpush1.bf16.msra.mxu0 0
      %6637 = vmatprep.mubr.bf16.mxu0 0
      %6638 = vmatmul.mubr.bf16.gmra.mrb[0].mxu0 %v6597
      %v6639 = vpop.f32.mrb[0].mxu0
      %v6640 = vadd.f32 0.0, %v6639
      %v6641 = vpop.f32.mrb[0].mxu0
      %v6642 = vpop.f32.mrb[0].mxu0
      %v6643 = vadd.f32 0.0, %v6642
      %v6644 = vpop.f32.mrb[0].mxu0
      %6645 = vmatprep.mubr.bf16.mxu0 0
      %6646 = vmatmul.mubr.bf16.gmra.mrb[0].mxu0 %v6600
      %v6647 = vpop.f32.mrb[0].mxu0
      %v6648 = vadd.f32 0.0, %v6647
      %v6649 = vpop.f32.mrb[0].mxu0
      %v6650 = vpop.f32.mrb[0].mxu0
      %v6651 = vadd.f32 0.0, %v6650
      %v6652 = vpop.f32.mrb[0].mxu0
      %6653 = vmatprep.mubr.bf16.mxu0 0
      %6654 = vmatmul.mubr.bf16.gmra.mrb[0].mxu0 %v6603
      %v6655 = vpop.f32.mrb[0].mxu0
      %v6656 = vadd.f32 0.0, %v6655
      %v6657 = vpop.f32.mrb[0].mxu0
      %v6658 = vpop.f32.mrb[0].mxu0
      %v6659 = vadd.f32 0.0, %v6658
      %v6660 = vpop.f32.mrb[0].mxu0
      %6661 = vdwg.mxu0
      %v6662 = vadd.f32 %v6568, %v6640
      %v6663 = vadd.f32 %v6569, %v6643
      %v6664 = vadd.f32 %v6570, %v6648
      %v6665 = vadd.f32 %v6571, %v6651
      %v6666 = vadd.f32 %v6572, %v6656
      %v6667 = vadd.f32 %v6573, %v6659
      %6668 = vst.msk [vmem:[%s445] sm:$0xff] %vm6123, %v6662
      %6669 = vst.msk [vmem:[%s445 + $0x8] sm:$0xff] %vm6123, %v6663
      %6670 = vst.msk [vmem:[%s445 + $0x10] sm:$0xff] %vm6123, %v6664
      %6671 = vst.msk [vmem:[%s445 + $0x18] sm:$0xff] %vm6123, %v6665
      %6672 = vst.msk [vmem:[%s445 + $0x20] sm:$0xff] %vm6123, %v6666
      %6673 = vst.msk [vmem:[%s445 + $0x28] sm:$0xff] %vm6123, %v6667
      %s6674 = smul.u32 6, %s24
      %p6675 = scmp.lt.s32.totalorder %s6674, 11
      %s6676 = scalar_select %p6675, %s6674, 11
      %s6677 = smul.addr %s6676, 8
      %s6678 = scalar_lea.vmem %s13, %s6677
      // Predicated region
      $region73: #{forward.1} parent=71 // pred_check
        %p6679 = pneg %p320
      $region74: #{forward.1} parent=71 // pred_check_branch
        %6681 = sbr.rel (%p6679) target = $region76
      $region75: #{forward.1} parent=71 // pred_region
        %s6682 = smul.u32 6, %s24
      $region76: #{forward.1} parent=71 // pred_fallthru
        _
    $region72: #{forward.1} parent=5 // pred_fallthru
      _
    %p6683 = scmp.le.s32.totalorder 2, %s19
    // Predicated region
    $region77: #{forward.1} parent=5 // pred_check
      %p6684 = pneg %p6683
    $region78: #{forward.1} parent=5 // pred_check_branch
      %6686 = sbr.rel (%p6684) target = $region80
    $region79: #{forward.1} parent=5 // pred_region
      %s6687 = ssub.s32 %s19, 2
      // Predicated region
      $region81: #{forward.1} parent=79 // pred_check
        %p6688 = pneg %p326
      $region82: #{forward.1} parent=79 // pred_check_branch
        %6690 = sbr.rel (%p6688) target = $region84
      $region83: #{forward.1} parent=79 // pred_region
        %s6691 = smul.u32 6, %s25
        %p6692 = scmp.lt.s32.totalorder %s6691, 11
        %s6693 = scalar_select %p6692, %s6691, 11
        %s6694 = smul.addr %s6693, 8
        %s6695 = scalar_lea.vmem %s13, %s6694
      $region84: #{forward.1} parent=79 // pred_fallthru
        _
    $region80: #{forward.1} parent=5 // pred_fallthru
      _
  $region6: #{forward.1} parent=0 // loop_footer
    %s23 = sadd.s32 1, %s19
  $region7: #{forward.1} parent=0 // loop_footer_branch
    %18 = sbr.rel target = $region3
  $region8: #{forward.1} parent=0 // loop_exit
    _

</llo_original>
